<compile_context>
chip_gen: v5e
topology: v5e:2x2
jax: 0.10.0
libtpu: 0.0.40
codegen_flags: <defaults>
</compile_context>

<pallas_src>
import functools

import jax
import jax.numpy as jnp
from jax import lax
from jax.experimental import pallas as pl
from jax.experimental.pallas import tpu as pltpu

_VMEM_LIMIT = 48 * 1024 * 1024     # explicit scoped-VMEM limit (safe on v5e/v6e/v7x)
_TILE_BUDGET = 4 * 1024 * 1024     # per-row-tile working-set budget (bytes)


def _apply_act(x, act):
    if act == "relu":
        return jnp.maximum(x, 0.0)
    if act == "sigmoid":
        return jax.nn.sigmoid(x)
    return x


# ----------------------------------------------------------------------------
# Fused conv kernel: one output row-tile per grid step; taps + channel chunks
# folded into a single big-K matmul; zero-padding built into an in-VMEM slab.
# ----------------------------------------------------------------------------
def _conv_kernel(*refs, n_in, kh, kw, pad, th, n_tiles, wo, act, use_slab):
    x_refs = refs[:n_in]
    w_ref = refs[n_in]
    b_ref = refs[n_in + 1]
    o_ref = refs[n_in + 2]
    slab_refs = refs[n_in + 3:]

    t = pl.program_id(1)
    r0 = t * th
    rows = th * wo
    cout = o_ref.shape[-1]

    if use_slab:
        for x_ref, slab in zip(x_refs, slab_refs):
            win = x_ref.shape[2]
            if pad > 0:
                # zero halo (top/bottom rows at image edges + left/right cols)
                slab[...] = jnp.zeros(slab.shape, slab.dtype)
                slab[pad:pad + th, pad:pad + win, :] = x_ref[0, pl.ds(r0, th), :, :]

                @pl.when(t > 0)
                def _():
                    slab[0:pad, pad:pad + win, :] = (
                        x_ref[0, pl.ds(r0 - pad, pad), :, :])

                @pl.when(t < n_tiles - 1)
                def _():
                    slab[pad + th:, pad:pad + win, :] = (
                        x_ref[0, pl.ds(r0 + th, pad), :, :])
            else:                       # "valid" conv (stride-2 via s2d): no halo
                slab[...] = x_ref[0, pl.ds(r0, th + kh - 1), :, :]

    # im2col patch in VMEM: (rows, kh*kw*cin_total), tap-major / chunk-minor,
    # matching w.reshape(kh*kw*cin_total, cout) row ordering.
    pieces = []
    for i in range(kh):
        for j in range(kw):
            for idx in range(n_in):
                if use_slab:
                    blk = slab_refs[idx][i:i + th, j:j + wo, :]
                else:                   # 1x1 / pad 0: read the row window directly
                    blk = x_refs[idx][0, pl.ds(r0, th), :, :]
                pieces.append(blk.reshape(rows, blk.shape[-1]))
    patch = pieces[0] if len(pieces) == 1 else jnp.concatenate(pieces, axis=-1)

    acc = jnp.dot(patch, w_ref[...], preferred_element_type=jnp.float32)
    acc = _apply_act(acc + b_ref[...], act)
    o_ref[0] = acc.reshape(th, wo, cout).astype(o_ref.dtype)


def _pick_tile_rows(ho, wo, kh, kw, cins, cout):
    """Largest divisor of Ho whose per-tile working set fits the budget; prefer
    >=2 row tiles so both v7x TensorCores get work even at batch 1."""
    k_dim = kh * kw * sum(cins)

    def cost(d):
        rows = d * wo
        patch = rows * k_dim * 2                              # bf16 patch
        acc = rows * max(cout, 128) * 4                       # lane-padded f32 acc
        slabs = sum((d + kh - 1) * (wo + kw - 1) * c * 2 for c in cins)
        out_blk = 2 * d * wo * max(cout, 128) * 2             # double-buffered out
        return patch + acc + slabs + out_blk

    divs = [d for d in range(ho, 0, -1) if ho % d == 0]
    ok = [d for d in divs if cost(d) <= _TILE_BUDGET] or [divs[-1]]
    th = ok[0]
    if ho >= 16 and th == ho and len(ok) > 1:
        th = ok[1]
    return th


# ----------------------------------------------------------------------------
# Stride-2 -> stride-1 rewrite (space-to-depth), so the kernel never strides.
# ----------------------------------------------------------------------------
def space_to_depth2(x):
    n, h, w, c = x.shape
    x = x.reshape(n, h // 2, 2, w // 2, 2, c)
    x = jnp.transpose(x, (0, 1, 3, 2, 4, 5))
    return x.reshape(n, h // 2, w // 2, 4 * c)


def _s2d_weight(w):
    """(3,3,c,cout) stride-2 kernel -> (2,2,4c,cout) stride-1 kernel on s2d input."""
    _, _, c, cout = w.shape
    w4 = jnp.pad(w, ((0, 1), (0, 1), (0, 0), (0, 0)))
    w4 = w4.reshape(2, 2, 2, 2, c, cout).transpose(0, 2, 1, 3, 4, 5)
    return w4.reshape(2, 2, 4 * c, cout)


# ----------------------------------------------------------------------------
# Fused conv wrapper (multi-chunk input; no materialized channel concat in HBM)
# ----------------------------------------------------------------------------
def conv2d_fused(xs, p, *, down=False, act="relu"):
    xs = list(xs) if isinstance(xs, (list, tuple)) else [xs]
    w, b = p["w"], p["b"]
    kh, kw, cin_total, cout = w.shape
    cins = [int(x.shape[-1]) for x in xs]
    assert sum(cins) == cin_total, (cins, cin_total)

    if down:
        assert (kh, kw) == (3, 3)
        offs = [0]
        for c in cins:
            offs.append(offs[-1] + c)
        w = jnp.concatenate(
            [_s2d_weight(w[:, :, offs[i]:offs[i + 1], :]) for i in range(len(xs))],
            axis=2)
        xs = [space_to_depth2(jnp.pad(x, ((0, 0), (1, 1), (1, 1), (0, 0))))
              for x in xs]
        cins = [int(x.shape[-1]) for x in xs]
        cin_total = sum(cins)
        kh = kw = 2
        pad = 0
    else:
        pad = (kh - 1) // 2

    n, hin, win, _ = xs[0].shape
    ho = hin + 2 * pad - kh + 1
    wo = win + 2 * pad - kw + 1

    th = _pick_tile_rows(ho, wo, kh, kw, cins, cout)
    n_tiles = ho // th
    use_slab = (kh > 1) or (kw > 1) or (pad > 0)
    k_dim = kh * kw * cin_total

    w_mat = w.reshape(k_dim, cout).astype(jnp.bfloat16)   # single merged weight

    in_specs = [pl.BlockSpec((1, hin, win, c), lambda b_, t_: (b_, 0, 0, 0))
                for c in cins]
    in_specs.append(pl.BlockSpec((k_dim, cout), lambda b_, t_: (0, 0)))
    in_specs.append(pl.BlockSpec((1, cout), lambda b_, t_: (0, 0)))

    scratch_shapes = []
    if use_slab:
        scratch_shapes = [
            pltpu.VMEM((th + kh - 1, wo + kw - 1, c), jnp.bfloat16) for c in cins]

    kernel = functools.partial(
        _conv_kernel, n_in=len(xs), kh=kh, kw=kw, pad=pad, th=th,
        n_tiles=n_tiles, wo=wo, act=act, use_slab=use_slab)

    return pl.pallas_call(
        kernel,
        out_shape=jax.ShapeDtypeStruct((n, ho, wo, cout), jnp.bfloat16),
        grid=(n, n_tiles),
        in_specs=in_specs,
        out_specs=pl.BlockSpec((1, th, wo, cout), lambda b_, t_: (b_, t_, 0, 0)),
        scratch_shapes=scratch_shapes,
        compiler_params=pltpu.CompilerParams(
            dimension_semantics=("parallel", "parallel"),
            vmem_limit_bytes=_VMEM_LIMIT),
    )(*[x.astype(jnp.bfloat16) for x in xs], w_mat,
      b.reshape(1, cout).astype(jnp.float32))


# ----------------------------------------------------------------------------
# Tiny pooled / attention kernels
# ----------------------------------------------------------------------------
def _dense_kernel(x_ref, w_ref, b_ref, o_ref, *, act):
    acc = jnp.dot(x_ref[...], w_ref[...], preferred_element_type=jnp.float32)
    o_ref[...] = _apply_act(acc + b_ref[...], act).astype(o_ref.dtype)


def dense_1x1(p, x2d, act):
    """Pooled 1x1 conv == tiny full-block matmul."""
    _, _, cin, cout = p["w"].shape
    n = x2d.shape[0]
    return pl.pallas_call(
        functools.partial(_dense_kernel, act=act),
        out_shape=jax.ShapeDtypeStruct((n, cout), jnp.bfloat16),
    )(x2d.astype(jnp.bfloat16), p["w"].reshape(cin, cout).astype(jnp.bfloat16),
      p["b"].reshape(1, cout).astype(jnp.float32))


def _ffm_att_kernel(x_ref, w1_ref, b1_ref, w2_ref, b2_ref, o_ref):
    h = jnp.dot(x_ref[...], w1_ref[...], preferred_element_type=jnp.float32)
    h = jnp.maximum(h + b1_ref[...], 0.0).astype(jnp.bfloat16)
    a = jnp.dot(h, w2_ref[...], preferred_element_type=jnp.float32)
    o_ref[...] = jax.nn.sigmoid(a + b2_ref[...]).astype(o_ref.dtype)


def ffm_attention(x2d, p1, p2):
    """Fused pooled attention chain: sigmoid(relu(x@w1+b1)@w2+b2) in one call."""
    n = x2d.shape[0]
    _, _, c0, c1 = p1["w"].shape
    _, _, _, c2 = p2["w"].shape
    return pl.pallas_call(
        _ffm_att_kernel,
        out_shape=jax.ShapeDtypeStruct((n, c2), jnp.bfloat16),
    )(x2d.astype(jnp.bfloat16),
      p1["w"].reshape(c0, c1).astype(jnp.bfloat16),
      p1["b"].reshape(1, c1).astype(jnp.float32),
      p2["w"].reshape(c1, c2).astype(jnp.bfloat16),
      p2["b"].reshape(1, c2).astype(jnp.float32))


# ----------------------------------------------------------------------------
# Plain-JAX glue (tiny tensors)
# ----------------------------------------------------------------------------
def up_nearest2(x):
    return jnp.repeat(jnp.repeat(x, 2, axis=1), 2, axis=2)


def up_bilinear2(x):
    n, h, w, c = x.shape
    y = jax.image.resize(x.astype(jnp.float32), (n, 2 * h, 2 * w, c),
                         method="bilinear")
    return y.astype(jnp.bfloat16)


def gap(x_chunks):
    if not isinstance(x_chunks, (list, tuple)):
        x_chunks = [x_chunks]
    means = [jnp.mean(c.astype(jnp.float32), axis=(1, 2)) for c in x_chunks]
    return means[0] if len(means) == 1 else jnp.concatenate(means, axis=-1)


# ----------------------------------------------------------------------------
# Parameter construction (synthetic, BN folded into weights)
# ----------------------------------------------------------------------------
def _conv_bn(key, cin, cout, k):
    w = jax.random.normal(key, (k, k, cin, cout), jnp.float32)
    w = w * jnp.sqrt(2.0 / (k * k * cin))
    scale = 1.0 / jnp.sqrt(1.0 + 1e-5)     # BN folded: gamma=1, beta=0, mean=0, var=1
    return {"w": (w * scale).astype(jnp.bfloat16),
            "b": jnp.zeros((cout,), jnp.float32)}


def _conv_bias(key, cin, cout, k):
    w = jax.random.normal(key, (k, k, cin, cout), jnp.float32)
    w = w * jnp.sqrt(1.0 / (k * k * cin))
    return {"w": w.astype(jnp.bfloat16), "b": jnp.zeros((cout,), jnp.float32)}


def build_params(key, out_channels=2):
    keys = iter(jax.random.split(key, 64))
    nk = lambda: next(keys)

    def cat_convx(cin, cout):
        half = cout // 2
        return {"conv1": _conv_bn(nk(), cin, half, 3),
                "conv2": _conv_bn(nk(), half, half, 3)}

    def stdc_stage(cin, cout):
        return {"down": cat_convx(cin, cout), "conv": cat_convx(cout, cout)}

    def arm_plus(cin, cout):
        return {"conv": _conv_bn(nk(), cin, cout, 3),
                "att": _conv_bn(nk(), cout, cout, 1)}

    return {
        "stem": {"conv1": cat_convx(3, 16), "conv2": cat_convx(16, 32),
                 "conv3": cat_convx(32, 64)},
        "context": {"stage1": stdc_stage(64, 128), "stage2": stdc_stage(128, 256)},
        "fusion": {"arm16": arm_plus(128, 64), "conv16": cat_convx(64, 64),
                   "arm32": arm_plus(256, 64), "pool32": _conv_bn(nk(), 256, 64, 1),
                   "conv32": _conv_bn(nk(), 64, 64, 3)},
        "ffm": {"conv": _conv_bn(nk(), 128, 32, 1),
                "att1": _conv_bias(nk(), 32, 32, 1),
                "att2": _conv_bias(nk(), 32, 32, 1)},
        "up_4x_2x": {"conv1": _conv_bn(nk(), 64, 16, 3),
                     "conv2": _conv_bn(nk(), 32, 16, 3)},
        "up_2x_1x": {"conv1": _conv_bn(nk(), 32, 16, 3),
                     "conv_out": _conv_bias(nk(), 16, out_channels, 1)},
    }


# ----------------------------------------------------------------------------
# Network blocks (channel-concat features stay as chunk tuples; never
# materialized in HBM -- the conv kernel consumes them directly)
# ----------------------------------------------------------------------------
def cat_convx_fwd(p, x, down):
    x1 = conv2d_fused(x, p["conv1"], down=down, act="relu")
    x2 = conv2d_fused(x1, p["conv2"], down=False, act="relu")
    return (x1, x2)


def stem_fwd(p, x):
    x2 = cat_convx_fwd(p["conv1"], x, True)
    x4 = cat_convx_fwd(p["conv2"], x2, True)
    x8 = cat_convx_fwd(p["conv3"], x4, True)
    return x, x2, x4, x8


def stdc_stage_fwd(p, x):
    x = cat_convx_fwd(p["down"], x, True)
    x = cat_convx_fwd(p["conv"], x, False)
    return x


def context_fwd(p, x):
    x1 = stdc_stage_fwd(p["stage1"], x)
    x2 = stdc_stage_fwd(p["stage2"], x1)
    return x1, x2


def arm_plus_fwd(p, x):
    feat = conv2d_fused(x, p["conv"], act="relu")
    att = dense_1x1(p["att"], gap(feat), "sigmoid")
    return feat * att[:, None, None, :]


def gpool_interp_conv_fwd(p, x_chunks, hw):
    y = dense_1x1(p, gap(x_chunks), "relu")
    n, cout = y.shape
    h, w = hw
    return jnp.broadcast_to(y[:, None, None, :], (n, h, w, cout))


def arm_fusion_fwd(p, x16, x32):
    h32, w32 = x32[0].shape[1], x32[0].shape[2]
    x32_arm = arm_plus_fwd(p["arm32"], x32)
    x32_arm = x32_arm + gpool_interp_conv_fwd(p["pool32"], x32, (h32, w32))
    x32_arm = up_nearest2(x32_arm)
    x32_arm = conv2d_fused(x32_arm, p["conv32"], act="relu")
    x16_arm = arm_plus_fwd(p["arm16"], x16)
    x16_arm = x16_arm + x32_arm
    x16_arm = up_nearest2(x16_arm)
    return cat_convx_fwd(p["conv16"], x16_arm, False)


def ffm_fwd(p, x1, x2):
    feat = conv2d_fused(list(x1) + list(x2), p["conv"], act="relu")
    a = ffm_attention(gap(feat), p["att1"], p["att2"])
    return feat + feat * a[:, None, None, :]


def up_predict_v2_fwd(p, x, skip_same, skip_up):
    x = conv2d_fused([x] + list(skip_same), p["conv1"], act="relu")
    x = up_nearest2(x)
    x = conv2d_fused([x] + list(skip_up), p["conv2"], act="relu")
    return x


def last_conv_fwd(p, x, skip):
    # TODO(synk): LastConv `factor=4` semantics inferred: conv -> 1x1 -> 2x nearest.
    x = conv2d_fused([x] + list(skip), p["conv1"], act="relu")
    x = conv2d_fused(x, p["conv_out"], act="none")
    return up_nearest2(x)


def hvsnetv2_forward(params, x_nchw):
    x = jnp.transpose(x_nchw, (0, 2, 3, 1)).astype(jnp.bfloat16)  # NCHW -> NHWC bf16
    x, x2, x4, x8 = stem_fwd(params["stem"], x)
    x16, x32 = context_fwd(params["context"], x8)
    x8_2 = arm_fusion_fwd(params["fusion"], x16, x32)
    x8_fusion = ffm_fwd(params["ffm"], x8, x8_2)
    x4_2 = up_bilinear2(x8_fusion)
    x2_2 = up_predict_v2_fwd(params["up_4x_2x"], x4_2, x4, x2)
    out = last_conv_fwd(params["up_2x_1x"], x2_2, x2)
    out_nchw = jnp.transpose(out, (0, 3, 1, 2)).astype(jnp.float32)
    if out_nchw.shape[1] == 1:            # torch's .squeeze(1) for the matting head
        out_nchw = out_nchw[:, 0]
    return out_nchw


# ----------------------------------------------------------------------------
# Reference conv (used to validate the fused kernel + the s2d stride-2 rewrite)
# ----------------------------------------------------------------------------
def _conv_reference(xs, p, *, stride, pad, act):
    x = jnp.concatenate([c.astype(jnp.float32) for c in xs], axis=-1)
    w = p["w"].astype(jnp.float32)
    out = lax.conv_general_dilated(
        x, w, window_strides=(stride, stride),
        padding=((pad, pad), (pad, pad)),
        dimension_numbers=("NHWC", "HWIO", "NHWC"))
    out = out + p["b"].astype(jnp.float32)
    if act == "relu":
        out = jnp.maximum(out, 0.0)
    return out


# ----------------------------------------------------------------------------
if __name__ == "__main__":
    root = jax.random.PRNGKey(0)
    pkey, xkey, vkey = jax.random.split(root, 3)

    # ---- kernel vs lax.conv validation (multi-chunk stride-1 and s2d stride-2) ----
    k1, k2, k3, k4 = jax.random.split(vkey, 4)
    xa = jax.random.normal(k1, (2, 16, 16, 8), jnp.float32).astype(jnp.bfloat16)
    xb = jax.random.normal(k2, (2, 16, 16, 16), jnp.float32).astype(jnp.bfloat16)
    pv1 = {"w": (jax.random.normal(k3, (3, 3, 24, 16), jnp.float32) * 0.1
                 ).astype(jnp.bfloat16),
           "b": jax.random.normal(k4, (16,), jnp.float32) * 0.1}
    out1 = conv2d_fused([xa, xb], pv1, down=False, act="relu").astype(jnp.float32)
    ref1 = _conv_reference([xa, xb], pv1, stride=1, pad=1, act="relu")
    err1 = float(jnp.max(jnp.abs(out1 - ref1)))
    tol1 = 0.05 * (float(jnp.max(jnp.abs(ref1))) + 1.0)
    assert err1 <= tol1, ("stride-1 conv mismatch", err1, tol1)

    xc = jax.random.normal(k2, (2, 16, 16, 3), jnp.float32).astype(jnp.bfloat16)
    pv2 = {"w": (jax.random.normal(k4, (3, 3, 3, 8), jnp.float32) * 0.1
                 ).astype(jnp.bfloat16),
           "b": jax.random.normal(k1, (8,), jnp.float32) * 0.1}
    out2 = conv2d_fused([xc], pv2, down=True, act="none").astype(jnp.float32)
    ref2 = _conv_reference([xc], pv2, stride=2, pad=1, act="none")
    err2 = float(jnp.max(jnp.abs(out2 - ref2)))
    tol2 = 0.05 * (float(jnp.max(jnp.abs(ref2))) + 1.0)
    assert err2 <= tol2, ("stride-2 conv mismatch", err2, tol2)

    # ---- full network ----
    params = build_params(pkey, out_channels=2)          # type='segmentation'
    # small input; spatial must be divisible by 32 (network downsamples /32)
    x = jax.random.normal(xkey, (2, 3, 64, 64), jnp.float32)

    fwd = jax.jit(hvsnetv2_forward)
    out = jax.block_until_ready(fwd(params, x))
    assert out.shape == (2, 2, 64, 64), out.shape
    assert bool(jnp.all(jnp.isfinite(out)))
    print("KERNEL_OK")
</pallas_src>

<mosaic_0001>
module attributes {stable_mosaic.version = 11 : i64} {
  func.func @_conv_kernel(%arg0: i32, %arg1: i32, %arg2: memref<1x16x16x8xbf16, #tpu.memory_space<vmem>>, %arg3: memref<1x16x16x16xbf16, #tpu.memory_space<vmem>>, %arg4: memref<216x16xbf16, #tpu.memory_space<vmem>>, %arg5: memref<1x16xf32, #tpu.memory_space<vmem>>, %arg6: memref<1x8x16x16xbf16, #tpu.memory_space<vmem>>, %arg7: memref<10x18x8xbf16, #tpu.memory_space<vmem>>, %arg8: memref<10x18x16xbf16, #tpu.memory_space<vmem>>) attributes {dimension_semantics = [#tpu.dimension_semantics<parallel>, #tpu.dimension_semantics<parallel>], iteration_bounds = array<i64: 2, 2>, scalar_prefetch = 0 : i64, scratch_operands = 2 : i64, tpu.core_type = #tpu.core_type<tc>, window_params = [{transform_indices = @transform_0, window_bounds = array<i64: 1, 16, 16, 8>}, {transform_indices = @transform_1, window_bounds = array<i64: 1, 16, 16, 16>}, {pipeline_mode = #tpu.pipeline_mode<synchronous>, transform_indices = @transform_2, window_bounds = array<i64: 216, 16>}, {pipeline_mode = #tpu.pipeline_mode<synchronous>, transform_indices = @transform_3, window_bounds = array<i64: 1, 16>}, {transform_indices = @transform_4, window_bounds = array<i64: 1, 8, 16, 16>}]} {
    %c8_i32 = arith.constant 8 : i32
    %0 = arith.muli %arg1, %c8_i32 : i32
    %cst = arith.constant 0.000000e+00 : bf16
    %1 = vector.broadcast %cst : bf16 to vector<10x18x8xbf16>
    %c0 = arith.constant 0 : index
    %c0_0 = arith.constant 0 : index
    %c0_1 = arith.constant 0 : index
    %2 = vector.load %arg7[%c0, %c0_0, %c0_1] : memref<10x18x8xbf16, #tpu.memory_space<vmem>>, vector<10x18x8xbf16>
    tpu.vector_store %arg7[%c0, %c0_0, %c0_1], %1 {strides = array<i32>} : memref<10x18x8xbf16, #tpu.memory_space<vmem>>, vector<10x18x8xbf16>,
    %c0_2 = arith.constant 0 : index
    %3 = arith.index_cast %0 : i32 to index
    %c0_3 = arith.constant 0 : index
    %c0_4 = arith.constant 0 : index
    %4 = vector.load %arg2[%c0_2, %3, %c0_3, %c0_4] : memref<1x16x16x8xbf16, #tpu.memory_space<vmem>>, vector<1x8x16x8xbf16>
    %5 = vector.shape_cast %4 : vector<1x8x16x8xbf16> to vector<8x16x8xbf16>
    %c1 = arith.constant 1 : index
    %c1_5 = arith.constant 1 : index
    %c0_6 = arith.constant 0 : index
    %6 = vector.load %arg7[%c1, %c1_5, %c0_6] : memref<10x18x8xbf16, #tpu.memory_space<vmem>>, vector<8x16x8xbf16>
    tpu.vector_store %arg7[%c1, %c1_5, %c0_6], %5 {strides = array<i32>} : memref<10x18x8xbf16, #tpu.memory_space<vmem>>, vector<8x16x8xbf16>,
    %c0_i32 = arith.constant 0 : i32
    %7 = arith.cmpi sgt, %arg1, %c0_i32 : i32
    %8 = arith.extui %7 : i1 to i32
    %c0_i32_7 = arith.constant 0 : i32
    %9 = arith.cmpi ne, %8, %c0_i32_7 : i32
    scf.if %9 {
      %c1_i32_86 = arith.constant 1 : i32
      %76 = arith.subi %0, %c1_i32_86 : i32
      %c0_87 = arith.constant 0 : index
      %77 = arith.index_cast %76 : i32 to index
      %c0_88 = arith.constant 0 : index
      %c0_89 = arith.constant 0 : index
      %78 = vector.load %arg2[%c0_87, %77, %c0_88, %c0_89] : memref<1x16x16x8xbf16, #tpu.memory_space<vmem>>, vector<1x1x16x8xbf16>
      %79 = vector.shape_cast %78 : vector<1x1x16x8xbf16> to vector<1x16x8xbf16>
      %c0_90 = arith.constant 0 : index
      %c1_91 = arith.constant 1 : index
      %c0_92 = arith.constant 0 : index
      %80 = vector.load %arg7[%c0_90, %c1_91, %c0_92] : memref<10x18x8xbf16, #tpu.memory_space<vmem>>, vector<1x16x8xbf16>
      tpu.vector_store %arg7[%c0_90, %c1_91, %c0_92], %79 {strides = array<i32>} : memref<10x18x8xbf16, #tpu.memory_space<vmem>>, vector<1x16x8xbf16>,
    } else {
    }
    %c1_i32 = arith.constant 1 : i32
    %10 = arith.cmpi slt, %arg1, %c1_i32 : i32
    %11 = arith.extui %10 : i1 to i32
    %c0_i32_8 = arith.constant 0 : i32
    %12 = arith.cmpi ne, %11, %c0_i32_8 : i32
    scf.if %12 {
      %c8_i32_86 = arith.constant 8 : i32
      %76 = arith.addi %0, %c8_i32_86 : i32
      %c0_87 = arith.constant 0 : index
      %77 = arith.index_cast %76 : i32 to index
      %c0_88 = arith.constant 0 : index
      %c0_89 = arith.constant 0 : index
      %78 = vector.load %arg2[%c0_87, %77, %c0_88, %c0_89] : memref<1x16x16x8xbf16, #tpu.memory_space<vmem>>, vector<1x1x16x8xbf16>
      %79 = vector.shape_cast %78 : vector<1x1x16x8xbf16> to vector<1x16x8xbf16>
      %c9 = arith.constant 9 : index
      %c1_90 = arith.constant 1 : index
      %c0_91 = arith.constant 0 : index
      %80 = vector.load %arg7[%c9, %c1_90, %c0_91] : memref<10x18x8xbf16, #tpu.memory_space<vmem>>, vector<1x16x8xbf16>
      tpu.vector_store %arg7[%c9, %c1_90, %c0_91], %79 {strides = array<i32>} : memref<10x18x8xbf16, #tpu.memory_space<vmem>>, vector<1x16x8xbf16>,
    } else {
    }
    %cst_9 = arith.constant 0.000000e+00 : bf16
    %13 = vector.broadcast %cst_9 : bf16 to vector<10x18x16xbf16>
    %c0_10 = arith.constant 0 : index
    %c0_11 = arith.constant 0 : index
    %c0_12 = arith.constant 0 : index
    %14 = vector.load %arg8[%c0_10, %c0_11, %c0_12] : memref<10x18x16xbf16, #tpu.memory_space<vmem>>, vector<10x18x16xbf16>
    tpu.vector_store %arg8[%c0_10, %c0_11, %c0_12], %13 {strides = array<i32>} : memref<10x18x16xbf16, #tpu.memory_space<vmem>>, vector<10x18x16xbf16>,
    %c0_13 = arith.constant 0 : index
    %15 = arith.index_cast %0 : i32 to index
    %c0_14 = arith.constant 0 : index
    %c0_15 = arith.constant 0 : index
    %16 = vector.load %arg3[%c0_13, %15, %c0_14, %c0_15] : memref<1x16x16x16xbf16, #tpu.memory_space<vmem>>, vector<1x8x16x16xbf16>
    %17 = vector.shape_cast %16 : vector<1x8x16x16xbf16> to vector<8x16x16xbf16>
    %c1_16 = arith.constant 1 : index
    %c1_17 = arith.constant 1 : index
    %c0_18 = arith.constant 0 : index
    %18 = vector.load %arg8[%c1_16, %c1_17, %c0_18] : memref<10x18x16xbf16, #tpu.memory_space<vmem>>, vector<8x16x16xbf16>
    tpu.vector_store %arg8[%c1_16, %c1_17, %c0_18], %17 {strides = array<i32>} : memref<10x18x16xbf16, #tpu.memory_space<vmem>>, vector<8x16x16xbf16>,
    %c0_i32_19 = arith.constant 0 : i32
    %19 = arith.cmpi sgt, %arg1, %c0_i32_19 : i32
    %20 = arith.extui %19 : i1 to i32
    %c0_i32_20 = arith.constant 0 : i32
    %21 = arith.cmpi ne, %20, %c0_i32_20 : i32
    scf.if %21 {
      %c1_i32_86 = arith.constant 1 : i32
      %76 = arith.subi %0, %c1_i32_86 : i32
      %c0_87 = arith.constant 0 : index
      %77 = arith.index_cast %76 : i32 to index
      %c0_88 = arith.constant 0 : index
      %c0_89 = arith.constant 0 : index
      %78 = vector.load %arg3[%c0_87, %77, %c0_88, %c0_89] : memref<1x16x16x16xbf16, #tpu.memory_space<vmem>>, vector<1x1x16x16xbf16>
      %79 = vector.shape_cast %78 : vector<1x1x16x16xbf16> to vector<1x16x16xbf16>
      %c0_90 = arith.constant 0 : index
      %c1_91 = arith.constant 1 : index
      %c0_92 = arith.constant 0 : index
      %80 = vector.load %arg8[%c0_90, %c1_91, %c0_92] : memref<10x18x16xbf16, #tpu.memory_space<vmem>>, vector<1x16x16xbf16>
      tpu.vector_store %arg8[%c0_90, %c1_91, %c0_92], %79 {strides = array<i32>} : memref<10x18x16xbf16, #tpu.memory_space<vmem>>, vector<1x16x16xbf16>,
    } else {
    }
    %c1_i32_21 = arith.constant 1 : i32
    %22 = arith.cmpi slt, %arg1, %c1_i32_21 : i32
    %23 = arith.extui %22 : i1 to i32
    %c0_i32_22 = arith.constant 0 : i32
    %24 = arith.cmpi ne, %23, %c0_i32_22 : i32
    scf.if %24 {
      %c8_i32_86 = arith.constant 8 : i32
      %76 = arith.addi %0, %c8_i32_86 : i32
      %c0_87 = arith.constant 0 : index
      %77 = arith.index_cast %76 : i32 to index
      %c0_88 = arith.constant 0 : index
      %c0_89 = arith.constant 0 : index
      %78 = vector.load %arg3[%c0_87, %77, %c0_88, %c0_89] : memref<1x16x16x16xbf16, #tpu.memory_space<vmem>>, vector<1x1x16x16xbf16>
      %79 = vector.shape_cast %78 : vector<1x1x16x16xbf16> to vector<1x16x16xbf16>
      %c9 = arith.constant 9 : index
      %c1_90 = arith.constant 1 : index
      %c0_91 = arith.constant 0 : index
      %80 = vector.load %arg8[%c9, %c1_90, %c0_91] : memref<10x18x16xbf16, #tpu.memory_space<vmem>>, vector<1x16x16xbf16>
      tpu.vector_store %arg8[%c9, %c1_90, %c0_91], %79 {strides = array<i32>} : memref<10x18x16xbf16, #tpu.memory_space<vmem>>, vector<1x16x16xbf16>,
    } else {
    }
    %c0_23 = arith.constant 0 : index
    %c0_24 = arith.constant 0 : index
    %c0_25 = arith.constant 0 : index
    %25 = vector.load %arg7[%c0_23, %c0_24, %c0_25] : memref<10x18x8xbf16, #tpu.memory_space<vmem>>, vector<8x16x8xbf16>
    %26 = vector.shape_cast %25 : vector<8x16x8xbf16> to vector<128x8xbf16>
    %c0_26 = arith.constant 0 : index
    %c0_27 = arith.constant 0 : index
    %c0_28 = arith.constant 0 : index
    %27 = vector.load %arg8[%c0_26, %c0_27, %c0_28] : memref<10x18x16xbf16, #tpu.memory_space<vmem>>, vector<8x16x16xbf16>
    %28 = vector.shape_cast %27 : vector<8x16x16xbf16> to vector<128x16xbf16>
    %c0_29 = arith.constant 0 : index
    %c1_30 = arith.constant 1 : index
    %c0_31 = arith.constant 0 : index
    %29 = vector.load %arg7[%c0_29, %c1_30, %c0_31] : memref<10x18x8xbf16, #tpu.memory_space<vmem>>, vector<8x16x8xbf16>
    %30 = vector.shape_cast %29 : vector<8x16x8xbf16> to vector<128x8xbf16>
    %c0_32 = arith.constant 0 : index
    %c1_33 = arith.constant 1 : index
    %c0_34 = arith.constant 0 : index
    %31 = vector.load %arg8[%c0_32, %c1_33, %c0_34] : memref<10x18x16xbf16, #tpu.memory_space<vmem>>, vector<8x16x16xbf16>
    %32 = vector.shape_cast %31 : vector<8x16x16xbf16> to vector<128x16xbf16>
    %c0_35 = arith.constant 0 : index
    %c2 = arith.constant 2 : index
    %c0_36 = arith.constant 0 : index
    %33 = vector.load %arg7[%c0_35, %c2, %c0_36] : memref<10x18x8xbf16, #tpu.memory_space<vmem>>, vector<8x16x8xbf16>
    %34 = vector.shape_cast %33 : vector<8x16x8xbf16> to vector<128x8xbf16>
    %c0_37 = arith.constant 0 : index
    %c2_38 = arith.constant 2 : index
    %c0_39 = arith.constant 0 : index
    %35 = vector.load %arg8[%c0_37, %c2_38, %c0_39] : memref<10x18x16xbf16, #tpu.memory_space<vmem>>, vector<8x16x16xbf16>
    %36 = vector.shape_cast %35 : vector<8x16x16xbf16> to vector<128x16xbf16>
    %c1_40 = arith.constant 1 : index
    %c0_41 = arith.constant 0 : index
    %c0_42 = arith.constant 0 : index
    %37 = vector.load %arg7[%c1_40, %c0_41, %c0_42] : memref<10x18x8xbf16, #tpu.memory_space<vmem>>, vector<8x16x8xbf16>
    %38 = vector.shape_cast %37 : vector<8x16x8xbf16> to vector<128x8xbf16>
    %c1_43 = arith.constant 1 : index
    %c0_44 = arith.constant 0 : index
    %c0_45 = arith.constant 0 : index
    %39 = vector.load %arg8[%c1_43, %c0_44, %c0_45] : memref<10x18x16xbf16, #tpu.memory_space<vmem>>, vector<8x16x16xbf16>
    %40 = vector.shape_cast %39 : vector<8x16x16xbf16> to vector<128x16xbf16>
    %c1_46 = arith.constant 1 : index
    %c1_47 = arith.constant 1 : index
    %c0_48 = arith.constant 0 : index
    %41 = vector.load %arg7[%c1_46, %c1_47, %c0_48] : memref<10x18x8xbf16, #tpu.memory_space<vmem>>, vector<8x16x8xbf16>
    %42 = vector.shape_cast %41 : vector<8x16x8xbf16> to vector<128x8xbf16>
    %c1_49 = arith.constant 1 : index
    %c1_50 = arith.constant 1 : index
    %c0_51 = arith.constant 0 : index
    %43 = vector.load %arg8[%c1_49, %c1_50, %c0_51] : memref<10x18x16xbf16, #tpu.memory_space<vmem>>, vector<8x16x16xbf16>
    %44 = vector.shape_cast %43 : vector<8x16x16xbf16> to vector<128x16xbf16>
    %c1_52 = arith.constant 1 : index
    %c2_53 = arith.constant 2 : index
    %c0_54 = arith.constant 0 : index
    %45 = vector.load %arg7[%c1_52, %c2_53, %c0_54] : memref<10x18x8xbf16, #tpu.memory_space<vmem>>, vector<8x16x8xbf16>
    %46 = vector.shape_cast %45 : vector<8x16x8xbf16> to vector<128x8xbf16>
    %c1_55 = arith.constant 1 : index
    %c2_56 = arith.constant 2 : index
    %c0_57 = arith.constant 0 : index
    %47 = vector.load %arg8[%c1_55, %c2_56, %c0_57] : memref<10x18x16xbf16, #tpu.memory_space<vmem>>, vector<8x16x16xbf16>
    %48 = vector.shape_cast %47 : vector<8x16x16xbf16> to vector<128x16xbf16>
    %c2_58 = arith.constant 2 : index
    %c0_59 = arith.constant 0 : index
    %c0_60 = arith.constant 0 : index
    %49 = vector.load %arg7[%c2_58, %c0_59, %c0_60] : memref<10x18x8xbf16, #tpu.memory_space<vmem>>, vector<8x16x8xbf16>
    %50 = vector.shape_cast %49 : vector<8x16x8xbf16> to vector<128x8xbf16>
    %c2_61 = arith.constant 2 : index
    %c0_62 = arith.constant 0 : index
    %c0_63 = arith.constant 0 : index
    %51 = vector.load %arg8[%c2_61, %c0_62, %c0_63] : memref<10x18x16xbf16, #tpu.memory_space<vmem>>, vector<8x16x16xbf16>
    %52 = vector.shape_cast %51 : vector<8x16x16xbf16> to vector<128x16xbf16>
    %c2_64 = arith.constant 2 : index
    %c1_65 = arith.constant 1 : index
    %c0_66 = arith.constant 0 : index
    %53 = vector.load %arg7[%c2_64, %c1_65, %c0_66] : memref<10x18x8xbf16, #tpu.memory_space<vmem>>, vector<8x16x8xbf16>
    %54 = vector.shape_cast %53 : vector<8x16x8xbf16> to vector<128x8xbf16>
    %c2_67 = arith.constant 2 : index
    %c1_68 = arith.constant 1 : index
    %c0_69 = arith.constant 0 : index
    %55 = vector.load %arg8[%c2_67, %c1_68, %c0_69] : memref<10x18x16xbf16, #tpu.memory_space<vmem>>, vector<8x16x16xbf16>
    %56 = vector.shape_cast %55 : vector<8x16x16xbf16> to vector<128x16xbf16>
    %c2_70 = arith.constant 2 : index
    %c2_71 = arith.constant 2 : index
    %c0_72 = arith.constant 0 : index
    %57 = vector.load %arg7[%c2_70, %c2_71, %c0_72] : memref<10x18x8xbf16, #tpu.memory_space<vmem>>, vector<8x16x8xbf16>
    %58 = vector.shape_cast %57 : vector<8x16x8xbf16> to vector<128x8xbf16>
    %c2_73 = arith.constant 2 : index
    %c2_74 = arith.constant 2 : index
    %c0_75 = arith.constant 0 : index
    %59 = vector.load %arg8[%c2_73, %c2_74, %c0_75] : memref<10x18x16xbf16, #tpu.memory_space<vmem>>, vector<8x16x16xbf16>
    %60 = vector.shape_cast %59 : vector<8x16x16xbf16> to vector<128x16xbf16>
    %61 = tpu.concatenate %26, %28, %30, %32, %34, %36, %38, %40, %42, %44, %46, %48, %50, %52, %54, %56 in 1 : vector<128x8xbf16>, vector<128x16xbf16>, vector<128x8xbf16>, vector<128x16xbf16>, vector<128x8xbf16>, vector<128x16xbf16>, vector<128x8xbf16>, vector<128x16xbf16>, vector<128x8xbf16>, vector<128x16xbf16>, vector<128x8xbf16>, vector<128x16xbf16>, vector<128x8xbf16>, vector<128x16xbf16>, vector<128x8xbf16>, vector<128x16xbf16> -> vector<128x192xbf16>
    %62 = tpu.concatenate %58, %60 in 1 : vector<128x8xbf16>, vector<128x16xbf16> -> vector<128x24xbf16>
    %63 = tpu.concatenate %61, %62 in 1 : vector<128x192xbf16>, vector<128x24xbf16> -> vector<128x216xbf16>
    %c0_76 = arith.constant 0 : index
    %c0_77 = arith.constant 0 : index
    %64 = vector.load %arg4[%c0_76, %c0_77] : memref<216x16xbf16, #tpu.memory_space<vmem>>, vector<216x16xbf16>
    %cst_78 = arith.constant dense<0.000000e+00> : vector<128x16xf32>
    %65 = tpu.matmul %63, %64, %cst_78 {dimension_numbers = #tpu.dot_dimension_numbers<[1], [0], [0], [1], [0, 0, 1, 1], [], []>} : vector<128x216xbf16>, vector<216x16xbf16>, vector<128x16xf32> -> vector<128x16xf32>
    %c0_79 = arith.constant 0 : index
    %c0_80 = arith.constant 0 : index
    %66 = vector.load %arg5[%c0_79, %c0_80] : memref<1x16xf32, #tpu.memory_space<vmem>>, vector<1x16xf32>
    %67 = vector.broadcast %66 : vector<1x16xf32> to vector<128x16xf32>
    %68 = arith.addf %65, %67 : vector<128x16xf32>
    %cst_81 = arith.constant 0.000000e+00 : f32
    %69 = vector.broadcast %cst_81 : f32 to vector<128x16xf32>
    %70 = arith.maximumf %68, %69 : vector<128x16xf32>
    %71 = vector.shape_cast %70 : vector<128x16xf32> to vector<8x16x16xf32>
    %72 = arith.truncf %71 : vector<8x16x16xf32> to vector<8x16x16xbf16>
    %c0_82 = arith.constant 0 : index
    %c0_83 = arith.constant 0 : index
    %c0_84 = arith.constant 0 : index
    %c0_85 = arith.constant 0 : index
    %73 = vector.load %arg6[%c0_82, %c0_83, %c0_84, %c0_85] : memref<1x8x16x16xbf16, #tpu.memory_space<vmem>>, vector<1x8x16x16xbf16>
    %74 = vector.shape_cast %73 : vector<1x8x16x16xbf16> to vector<8x16x16xbf16>
    %75 = vector.shape_cast %72 : vector<8x16x16xbf16> to vector<1x8x16x16xbf16>
    tpu.vector_store %arg6[%c0_82, %c0_83, %c0_84, %c0_85], %75 {strides = array<i32>} : memref<1x8x16x16xbf16, #tpu.memory_space<vmem>>, vector<1x8x16x16xbf16>,
    return
  }
  func.func @transform_0(%arg0: i32, %arg1: i32) -> (i32, i32, i32, i32) {
    %c0_i32 = arith.constant 0 : i32
    %c0_i32_0 = arith.constant 0 : i32
    %c0_i32_1 = arith.constant 0 : i32
    %c0_i32_2 = arith.constant 0 : i32
    return %arg0, %c0_i32, %c0_i32_0, %c0_i32_1 : i32, i32, i32, i32
  }
  func.func @transform_1(%arg0: i32, %arg1: i32) -> (i32, i32, i32, i32) {
    %c0_i32 = arith.constant 0 : i32
    %c0_i32_0 = arith.constant 0 : i32
    %c0_i32_1 = arith.constant 0 : i32
    %c0_i32_2 = arith.constant 0 : i32
    return %arg0, %c0_i32, %c0_i32_0, %c0_i32_1 : i32, i32, i32, i32
  }
  func.func @transform_2(%arg0: i32, %arg1: i32) -> (i32, i32) {
    %c0_i32 = arith.constant 0 : i32
    %c0_i32_0 = arith.constant 0 : i32
    %c0_i32_1 = arith.constant 0 : i32
    return %c0_i32, %c0_i32_0 : i32, i32
  }
  func.func @transform_3(%arg0: i32, %arg1: i32) -> (i32, i32) {
    %c0_i32 = arith.constant 0 : i32
    %c0_i32_0 = arith.constant 0 : i32
    %c0_i32_1 = arith.constant 0 : i32
    return %c0_i32, %c0_i32_0 : i32, i32
  }
  func.func @transform_4(%arg0: i32, %arg1: i32) -> (i32, i32, i32, i32) {
    %c0_i32 = arith.constant 0 : i32
    %c0_i32_0 = arith.constant 0 : i32
    %c0_i32_1 = arith.constant 0 : i32
    return %arg0, %arg1, %c0_i32, %c0_i32_0 : i32, i32, i32, i32
  }
}

</mosaic_0001>

<llo_original>
// kernel: tpu_custom_call.1
$region0: #{tpu_custom_call.1}
  #allocation0 [shape = 'u32[]', space=smem, size = 0x4, offset = 0x4, fixed_abs, tag = 'smem constant byte address 0x4 - core index']
  #allocation1 [shape = 'u32[72,128]{1,0:T(1,128)}', space=vmem, size = 0x9000, scoped, tag = 'internal scratch']
  #allocation2 [shape = 'bf16[10,18,8]{2,1,0:T(8,128)(2,1)}', space=vmem, size = 0xf000, scoped, tag = 'scratch operand']
  #allocation3 [shape = 'bf16[10,18,16]{2,1,0:T(8,128)(2,1)}', space=vmem, size = 0xf000, scoped, tag = 'scratch operand']
  %s0 = inlined_call_operand.vmem [shape: bf16[2,16,16,8], index: 0, kind: input, shape index: {}]
  %s1 = inlined_call_operand.vmem [shape: bf16[2,16,16,16], index: 1, kind: input, shape index: {}]
  %s2 = inlined_call_operand.vmem [shape: bf16[216,16], index: 2, kind: input, shape index: {}]
  %s3 = inlined_call_operand.vmem [shape: f32[1,16], index: 3, kind: input, shape index: {}]
  %s4 = inlined_call_operand.hbm [shape: bf16[2,16,16,16], index: 4, kind: output, shape index: {}]
  %s5 = sld [smem:[#allocation0]]
  $region65: #{tpu_custom_call.1} parent=0
    _
  %s7 = ssub.s32 1, %s5
  %s8 = scalar_select 0, %s7, %s5
  $region1: #{tpu_custom_call.1} parent=0
    #allocation4 [shape = 'u8[65536]{0}', space=vmem, size = 0x10000, scoped, tag = 'output window, operand 0']
    #allocation5 [shape = 's32[2]{0}', space=sflag, size = 0x8, scoped, tag = 'scoped memory for tpu_custom_call.1']
    %9 = vsyncpa [#allocation5], 0
    %s10 = scalar_lea.sflag [#allocation5], 1
    %11 = vsyncpa %s10, 0
    loop: start=0, step=1, limit=6
    $region2: #{tpu_custom_call.1} parent=1 // loop_pre_header
      _
    $region3: #{tpu_custom_call.1} parent=1 // loop_header
      %s13 = sphi 0, %s17
      %p14 = scmp.ge.s32.totalorder %s13, 6
      %s20 = sphi 0, %s32
      %s21 = sphi 0, %s28
      %s22 = sphi 0, %s20
      %s23 = sphi 0, %s21
      %s24 = sphi 0, %s22
      %s25 = sphi 0, %s23
      %s35 = sphi 0, %s37
      %s38 = sphi 0, %s35
      %s39 = sphi 0, %s38
      %s55 = sphi 0, %s39
      %s61 = sphi 0, %s63
      %s64 = sphi 0, %s61
      %s65 = sphi 0, %s64
      %s81 = sphi 0, %s65
      %s85 = sphi 0, %s85
      %s87 = sphi 0, %s85
      %s88 = sphi 0, %s87
      %s102 = sphi 0, %s88
      %s106 = sphi 0, %s106
      %s108 = sphi 0, %s106
      %s109 = sphi 0, %s108
      %s123 = sphi 0, %s109
      %s131 = sphi 0, %s133
      %s134 = sphi 0, %s131
      %s135 = sphi 0, %s134
      %s151 = sphi 0, %s135
    $region4: #{tpu_custom_call.1} parent=1 // loop_header_branch
      %16 = sbr.rel (%p14) target = $region8
    $region5: #{tpu_custom_call.1} parent=1 // loop_body
      %s18 = ssub.s32 %s13, 1
      %s19 = ssub.s32 %s13, 2
      %s26 = sadd.s32 1, %s21
      %p27 = scmp.ge.s32.totalorder %s26, 2
      %s28 = scalar_select %p27, 0, %s26
      %s29 = sadd.s32 1, %s20
      %s30 = scalar_select %p27, %s29, %s20
      %p31 = scmp.ge.s32.totalorder %s30, 2
      %s32 = scalar_select %p31, 0, %s30
      %s33 = ssub.s32 %s20, %s32
      %p34 = scmp.eq.s32.totalorder %s33, 0
      %s36 = sadd.s32 %s35, 1
      %s37 = scalar_select %p34, %s35, %s36
      %p40 = pneg %p34
      %p41 = scmp.eq.s32.totalorder %s13, 3
      %p42 = por %p40, %p41
      %p43 = scmp.ne.s32.totalorder %s35, %s38
      %p44 = scmp.eq.s32.totalorder %s13, 0
      %p45 = por %p43, %p44
      %p46 = scmp.ne.s32.totalorder %s35, %s38
      %p47 = scmp.eq.s32.totalorder %s18, 3
      %p48 = por %p46, %p47
      %p49 = scmp.ne.s32.totalorder %s38, %s39
      %p50 = scmp.eq.s32.totalorder %s18, 0
      %p51 = por %p49, %p50
      %p52 = scmp.ne.s32.totalorder %s38, %s39
      %p53 = scmp.eq.s32.totalorder %s19, 3
      %p54 = por %p52, %p53
      %p56 = scmp.ne.s32.totalorder %s39, %s55
      %p57 = scmp.eq.s32.totalorder %s19, 0
      %p58 = por %p56, %p57
      %s59 = ssub.s32 %s20, %s32
      %p60 = scmp.eq.s32.totalorder %s59, 0
      %s62 = sadd.s32 %s61, 1
      %s63 = scalar_select %p60, %s61, %s62
      %p66 = pneg %p60
      %p67 = scmp.eq.s32.totalorder %s13, 3
      %p68 = por %p66, %p67
      %p69 = scmp.ne.s32.totalorder %s61, %s64
      %p70 = scmp.eq.s32.totalorder %s13, 0
      %p71 = por %p69, %p70
      %p72 = scmp.ne.s32.totalorder %s61, %s64
      %p73 = scmp.eq.s32.totalorder %s18, 3
      %p74 = por %p72, %p73
      %p75 = scmp.ne.s32.totalorder %s64, %s65
      %p76 = scmp.eq.s32.totalorder %s18, 0
      %p77 = por %p75, %p76
      %p78 = scmp.ne.s32.totalorder %s64, %s65
      %p79 = scmp.eq.s32.totalorder %s19, 3
      %p80 = por %p78, %p79
      %p82 = scmp.ne.s32.totalorder %s65, %s81
      %p83 = scmp.eq.s32.totalorder %s19, 0
      %p84 = por %p82, %p83
      %s86 = sadd.s32 %s85, 1
      %p89 = scmp.eq.s32.totalorder %s13, 3
      %p90 = scmp.ne.s32.totalorder %s85, %s87
      %p91 = scmp.eq.s32.totalorder %s13, 0
      %p92 = por %p90, %p91
      %p93 = scmp.ne.s32.totalorder %s85, %s87
      %p94 = scmp.eq.s32.totalorder %s18, 3
      %p95 = por %p93, %p94
      %p96 = scmp.ne.s32.totalorder %s87, %s88
      %p97 = scmp.eq.s32.totalorder %s18, 0
      %p98 = por %p96, %p97
      %p99 = scmp.ne.s32.totalorder %s87, %s88
      %p100 = scmp.eq.s32.totalorder %s19, 3
      %p101 = por %p99, %p100
      %p103 = scmp.ne.s32.totalorder %s88, %s102
      %p104 = scmp.eq.s32.totalorder %s19, 0
      %p105 = por %p103, %p104
      %s107 = sadd.s32 %s106, 1
      %p110 = scmp.eq.s32.totalorder %s13, 3
      %p111 = scmp.ne.s32.totalorder %s106, %s108
      %p112 = scmp.eq.s32.totalorder %s13, 0
      %p113 = por %p111, %p112
      %p114 = scmp.ne.s32.totalorder %s106, %s108
      %p115 = scmp.eq.s32.totalorder %s18, 3
      %p116 = por %p114, %p115
      %p117 = scmp.ne.s32.totalorder %s108, %s109
      %p118 = scmp.eq.s32.totalorder %s18, 0
      %p119 = por %p117, %p118
      %p120 = scmp.ne.s32.totalorder %s108, %s109
      %p121 = scmp.eq.s32.totalorder %s19, 3
      %p122 = por %p120, %p121
      %p124 = scmp.ne.s32.totalorder %s109, %s123
      %p125 = scmp.eq.s32.totalorder %s19, 0
      %p126 = por %p124, %p125
      %s127 = ssub.s32 %s20, %s32
      %s128 = ssub.s32 %s21, %s28
      %s129 = sor.u32 %s127, %s128
      %p130 = scmp.eq.s32.totalorder %s129, 0
      %s132 = sadd.s32 %s131, 1
      %s133 = scalar_select %p130, %s131, %s132
      %p136 = pneg %p130
      %p137 = scmp.eq.s32.totalorder %s13, 3
      %p138 = por %p136, %p137
      %p139 = scmp.ne.s32.totalorder %s131, %s134
      %p140 = scmp.eq.s32.totalorder %s13, 0
      %p141 = por %p139, %p140
      %p142 = scmp.ne.s32.totalorder %s131, %s134
      %p143 = scmp.eq.s32.totalorder %s18, 3
      %p144 = por %p142, %p143
      %p145 = scmp.ne.s32.totalorder %s134, %s135
      %p146 = scmp.eq.s32.totalorder %s18, 0
      %p147 = por %p145, %p146
      %p148 = scmp.ne.s32.totalorder %s134, %s135
      %p149 = scmp.eq.s32.totalorder %s19, 3
      %p150 = por %p148, %p149
      %p152 = scmp.ne.s32.totalorder %s135, %s151
      %p153 = scmp.eq.s32.totalorder %s19, 0
      %p154 = por %p152, %p153
      %p155 = scmp.le.s32.totalorder 1, %s13
      %p156 = scmp.lt.s32.totalorder %s13, 5
      %p157 = pnand %p155, %p156
      %p158 = pneg %p157
      // Predicated region
      $region9: #{tpu_custom_call.1} parent=5 // pred_check
        _
      $region10: #{tpu_custom_call.1} parent=5 // pred_check_branch
        %160 = sbr.rel (%p157) target = $region12
      $region11: #{tpu_custom_call.1} parent=5 // pred_region
        %s161 = ssub.s32 %s13, 1
        // Predicated region
        $region13: #{tpu_custom_call.1} parent=11 // pred_check
          %p162 = pneg %p98
        $region14: #{tpu_custom_call.1} parent=11 // pred_check_branch
          %164 = sbr.rel (%p162) target = $region16
        $region15: #{tpu_custom_call.1} parent=11 // pred_region
          _
        $region16: #{tpu_custom_call.1} parent=11 // pred_fallthru
          _
        // Predicated region
        $region17: #{tpu_custom_call.1} parent=11 // pred_check
          %p165 = pneg %p119
        $region18: #{tpu_custom_call.1} parent=11 // pred_check_branch
          %167 = sbr.rel (%p165) target = $region20
        $region19: #{tpu_custom_call.1} parent=11 // pred_region
          _
        $region20: #{tpu_custom_call.1} parent=11 // pred_fallthru
          _
      $region12: #{tpu_custom_call.1} parent=5 // pred_fallthru
        _
      %p168 = scmp.lt.s32.totalorder %s13, 4
      // Predicated region
      $region21: #{tpu_custom_call.1} parent=5 // pred_check
        %p169 = pneg %p168
      $region22: #{tpu_custom_call.1} parent=5 // pred_check_branch
        %171 = sbr.rel (%p169) target = $region24
      $region23: #{tpu_custom_call.1} parent=5 // pred_region
        // Predicated region
        $region25: #{tpu_custom_call.1} parent=23 // pred_check
          %p172 = pneg %p45
        $region26: #{tpu_custom_call.1} parent=23 // pred_check_branch
          %174 = sbr.rel (%p172) target = $region28
        $region27: #{tpu_custom_call.1} parent=23 // pred_region
          %p175 = scmp.lt.s32.totalorder %s20, 1
          %s176 = scalar_select %p175, %s20, 1
          %s177 = smul.addr %s176, 32
          %s178 = smul.addr %s177, 4
          %s179 = scalar_lea.vmem %s0, %s178
        $region28: #{tpu_custom_call.1} parent=23 // pred_fallthru
          _
        // Predicated region
        $region29: #{tpu_custom_call.1} parent=23 // pred_check
          %p180 = pneg %p71
        $region30: #{tpu_custom_call.1} parent=23 // pred_check_branch
          %182 = sbr.rel (%p180) target = $region32
        $region31: #{tpu_custom_call.1} parent=23 // pred_region
          %p183 = scmp.lt.s32.totalorder %s20, 1
          %s184 = scalar_select %p183, %s20, 1
          %s185 = smul.addr %s184, 32
          %s186 = smul.addr %s185, 4
          %s187 = scalar_lea.vmem %s1, %s186
        $region32: #{tpu_custom_call.1} parent=23 // pred_fallthru
          _
      $region24: #{tpu_custom_call.1} parent=5 // pred_fallthru
        _
      %p188 = scmp.le.s32.totalorder 1, %s13
      %p189 = scmp.lt.s32.totalorder %s13, 5
      %p190 = pnand %p188, %p189
      %p191 = pneg %p190
      // Predicated region
      $region33: #{tpu_custom_call.1} parent=5 // pred_check
        _
      $region34: #{tpu_custom_call.1} parent=5 // pred_check_branch
        %193 = sbr.rel (%p190) target = $region36
      $region35: #{tpu_custom_call.1} parent=5 // pred_region
        %s194 = ssub.s32 %s13, 1
        %p195 = scmp.lt.s32.totalorder %s22, 1
        %s196 = scalar_select %p195, %s22, 1
        %s197 = smul.addr %s196, 32
        %s198 = smul.addr %s197, 4
        %s199 = scalar_lea.vmem %s0, %s198
        %p200 = pneg %p51
        %p201 = pneg %p48
        %p202 = scmp.lt.s32.totalorder %s22, 1
        %s203 = scalar_select %p202, %s22, 1
        %s204 = smul.addr %s203, 32
        %s205 = smul.addr %s204, 4
        %s206 = scalar_lea.vmem %s1, %s205
        %p207 = pneg %p77
        %p208 = pneg %p74
        %p209 = pneg %p98
        %p210 = pneg %p95
        %p211 = pneg %p119
        %p212 = pneg %p116
        %p213 = pneg %p147
        %p214 = pneg %p144
        %s215 = sand.u32 %s134, 1
        %s216 = scalar_lea.sflag [#allocation5], %s215
        %s217 = sand.u32 %s134, 1
        %s218 = smul.addr %s217, 64
        %s219 = scalar_lea.vmem [#allocation4], %s218
        %p220 = scmp.lt.s32.totalorder %s22, 1
        %s221 = scalar_select %p220, %s22, 1
        %s222 = smul.addr %s221, 32
        %s223 = smul.addr %s222, 4
        %s224 = scalar_lea.vmem %s0, %s223
        %p225 = scmp.lt.s32.totalorder %s22, 1
        %s226 = scalar_select %p225, %s22, 1
        %s227 = smul.addr %s226, 32
        %s228 = smul.addr %s227, 4
        %s229 = scalar_lea.vmem %s1, %s228
        %s230 = smul.u32 8, %s23
        %s232 = smul.u32 %s23, 8
        %vm233 = vcmask 60416
        %234 = vst.msk [vmem:[#allocation2] sm:$0xf] %vm233, 0
        %235 = vst.msk [vmem:[#allocation2 + $0x4] sm:$0xf] %vm233, 0
        %vm236 = vcmask 57344
        %237 = vst.msk [vmem:[#allocation2 + $0x8] sm:$0x1] %vm236, 0
        %238 = vst.msk [vmem:[#allocation2 + $0xc] sm:$0xf] %vm233, 0
        %239 = vst.msk [vmem:[#allocation2 + $0x10] sm:$0xf] %vm233, 0
        %240 = vst.msk [vmem:[#allocation2 + $0x14] sm:$0x1] %vm236, 0
        %241 = vst.msk [vmem:[#allocation2 + $0x18] sm:$0xf] %vm233, 0
        %242 = vst.msk [vmem:[#allocation2 + $0x1c] sm:$0xf] %vm233, 0
        %243 = vst.msk [vmem:[#allocation2 + $0x20] sm:$0x1] %vm236, 0
        %244 = vst.msk [vmem:[#allocation2 + $0x24] sm:$0xf] %vm233, 0
        %245 = vst.msk [vmem:[#allocation2 + $0x28] sm:$0xf] %vm233, 0
        %246 = vst.msk [vmem:[#allocation2 + $0x2c] sm:$0x1] %vm236, 0
        %247 = vst.msk [vmem:[#allocation2 + $0x30] sm:$0xf] %vm233, 0
        %248 = vst.msk [vmem:[#allocation2 + $0x34] sm:$0xf] %vm233, 0
        %249 = vst.msk [vmem:[#allocation2 + $0x38] sm:$0x1] %vm236, 0
        %250 = vst.msk [vmem:[#allocation2 + $0x3c] sm:$0xf] %vm233, 0
        %251 = vst.msk [vmem:[#allocation2 + $0x40] sm:$0xf] %vm233, 0
        %252 = vst.msk [vmem:[#allocation2 + $0x44] sm:$0x1] %vm236, 0
        %253 = vst.msk [vmem:[#allocation2 + $0x48] sm:$0xf] %vm233, 0
        %254 = vst.msk [vmem:[#allocation2 + $0x4c] sm:$0xf] %vm233, 0
        %255 = vst.msk [vmem:[#allocation2 + $0x50] sm:$0x1] %vm236, 0
        %256 = vst.msk [vmem:[#allocation2 + $0x54] sm:$0xf] %vm233, 0
        %257 = vst.msk [vmem:[#allocation2 + $0x58] sm:$0xf] %vm233, 0
        %258 = vst.msk [vmem:[#allocation2 + $0x5c] sm:$0x1] %vm236, 0
        %259 = vst.msk [vmem:[#allocation2 + $0x60] sm:$0xf] %vm233, 0
        %260 = vst.msk [vmem:[#allocation2 + $0x64] sm:$0xf] %vm233, 0
        %261 = vst.msk [vmem:[#allocation2 + $0x68] sm:$0x1] %vm236, 0
        %262 = vst.msk [vmem:[#allocation2 + $0x6c] sm:$0xf] %vm233, 0
        %263 = vst.msk [vmem:[#allocation2 + $0x70] sm:$0xf] %vm233, 0
        %264 = vst.msk [vmem:[#allocation2 + $0x74] sm:$0x1] %vm236, 0
        %s265 = smul.u32 %s232, 2
        %s266 = smul.addr %s265, 4
        %s267 = scalar_lea.vmem %s224, %s266
        %v268 = vld [vmem:[%s267] sm:$0xf]
        %v269 = vld [vmem:[%s267 + $0x4] sm:$0xf]
        %v270 = vld [vmem:[%s267 + $0x8] sm:$0xf]
        %v271 = vld [vmem:[%s267 + $0xc] sm:$0xf]
        %v272 = vld [vmem:[%s267 + $0x10] sm:$0xf]
        %v273 = vld [vmem:[%s267 + $0x14] sm:$0xf]
        %v274 = vld [vmem:[%s267 + $0x18] sm:$0xf]
        %v275 = vld [vmem:[%s267 + $0x1c] sm:$0xf]
        %v276 = vld [vmem:[%s267 + $0x20] sm:$0xf]
        %v277 = vld [vmem:[%s267 + $0x24] sm:$0xf]
        %v278 = vld [vmem:[%s267 + $0x28] sm:$0xf]
        %v279 = vld [vmem:[%s267 + $0x2c] sm:$0xf]
        %v280 = vld [vmem:[%s267 + $0x30] sm:$0xf]
        %v281 = vld [vmem:[%s267 + $0x34] sm:$0xf]
        %v282 = vld [vmem:[%s267 + $0x38] sm:$0xf]
        %v283 = vld [vmem:[%s267 + $0x3c] sm:$0xf]
        %vm284 = vsmask.f32 256
        %vm285 = vsmask.f32 4368
        %vm286 = vmor %vm284, %vm285
        %v288 = vshrl.u32 %v268, 16
        %v290 = vrot.slane %v288, 7
        %v291 = vshll.u32 %v268, 16
        %v293 = vor.u32 %v290, %v291
        %v294 = vrot.slane %v290, 4
        %v296 = vshrl.u32 %v269, 16
        %v298 = vrot.slane %v296, 7
        %v299 = vshll.u32 %v269, 16
        %v301 = vor.u32 %v298, %v299
        %v302 = vsel %vm286, %v294, %v301
        %v303 = vrot.slane %v298, 4
        %v305 = vshrl.u32 %v270, 16
        %v307 = vrot.slane %v305, 7
        %v308 = vshll.u32 %v270, 16
        %v310 = vor.u32 %v307, %v308
        %v311 = vrot.slane %v307, 4
        %v313 = vshrl.u32 %v271, 16
        %v315 = vrot.slane %v313, 7
        %v316 = vshll.u32 %v271, 16
        %v318 = vor.u32 %v315, %v316
        %v319 = vsel %vm286, %v311, %v318
        %v320 = vrot.slane %v315, 4
        %v322 = vshrl.u32 %v272, 16
        %v324 = vrot.slane %v322, 7
        %v325 = vshll.u32 %v272, 16
        %v327 = vor.u32 %v324, %v325
        %v328 = vrot.slane %v324, 4
        %v330 = vshrl.u32 %v273, 16
        %v332 = vrot.slane %v330, 7
        %v333 = vshll.u32 %v273, 16
        %v335 = vor.u32 %v332, %v333
        %v336 = vsel %vm286, %v328, %v335
        %v337 = vrot.slane %v332, 4
        %v339 = vshrl.u32 %v274, 16
        %v341 = vrot.slane %v339, 7
        %v342 = vshll.u32 %v274, 16
        %v344 = vor.u32 %v341, %v342
        %v345 = vrot.slane %v341, 4
        %v347 = vshrl.u32 %v275, 16
        %v349 = vrot.slane %v347, 7
        %v350 = vshll.u32 %v275, 16
        %v352 = vor.u32 %v349, %v350
        %v353 = vsel %vm286, %v345, %v352
        %v354 = vrot.slane %v349, 4
        %v356 = vshrl.u32 %v276, 16
        %v358 = vrot.slane %v356, 7
        %v359 = vshll.u32 %v276, 16
        %v361 = vor.u32 %v358, %v359
        %v362 = vrot.slane %v358, 4
        %v364 = vshrl.u32 %v277, 16
        %v366 = vrot.slane %v364, 7
        %v367 = vshll.u32 %v277, 16
        %v369 = vor.u32 %v366, %v367
        %v370 = vsel %vm286, %v362, %v369
        %v371 = vrot.slane %v366, 4
        %v373 = vshrl.u32 %v278, 16
        %v375 = vrot.slane %v373, 7
        %v376 = vshll.u32 %v278, 16
        %v378 = vor.u32 %v375, %v376
        %v379 = vrot.slane %v375, 4
        %v381 = vshrl.u32 %v279, 16
        %v383 = vrot.slane %v381, 7
        %v384 = vshll.u32 %v279, 16
        %v386 = vor.u32 %v383, %v384
        %v387 = vsel %vm286, %v379, %v386
        %v388 = vrot.slane %v383, 4
        %v390 = vshrl.u32 %v280, 16
        %v392 = vrot.slane %v390, 7
        %v393 = vshll.u32 %v280, 16
        %v395 = vor.u32 %v392, %v393
        %v396 = vrot.slane %v392, 4
        %v398 = vshrl.u32 %v281, 16
        %v400 = vrot.slane %v398, 7
        %v401 = vshll.u32 %v281, 16
        %v403 = vor.u32 %v400, %v401
        %v404 = vsel %vm286, %v396, %v403
        %v405 = vrot.slane %v400, 4
        %v407 = vshrl.u32 %v282, 16
        %v409 = vrot.slane %v407, 7
        %v410 = vshll.u32 %v282, 16
        %v412 = vor.u32 %v409, %v410
        %v413 = vrot.slane %v409, 4
        %v415 = vshrl.u32 %v283, 16
        %v417 = vrot.slane %v415, 7
        %v418 = vshll.u32 %v283, 16
        %v420 = vor.u32 %v417, %v418
        %v421 = vsel %vm286, %v413, %v420
        %v422 = vrot.slane %v417, 4
        %s447 = scalar_lea.vmem [#allocation2], 12
        %vm448 = vcmask 60416
        %vm449 = vsmask.f32 7938
        %vm450 = vmand %vm448, %vm449
        %v451 = vld [vmem:[%s447] sm:$0xf]
        %v452 = vsel %vm450, %v293, %v451
        %453 = vst [vmem:[%s447] sm:$0xf] %v452
        %454 = vst.msk [vmem:[%s447 + $0x4] sm:$0xf] %vm233, %v302
        %vm455 = vcmask 57344
        %vm456 = vmand %vm455, %vm284
        %v457 = vld [vmem:[%s447 + $0x8] sm:$0x1]
        %v458 = vsel %vm456, %v303, %v457
        %459 = vst [vmem:[%s447 + $0x8] sm:$0x1] %v458
        %v460 = vld [vmem:[%s447 + $0xc] sm:$0xf]
        %v461 = vsel %vm450, %v310, %v460
        %462 = vst [vmem:[%s447 + $0xc] sm:$0xf] %v461
        %463 = vst.msk [vmem:[%s447 + $0x10] sm:$0xf] %vm233, %v319
        %v464 = vld [vmem:[%s447 + $0x14] sm:$0x1]
        %v465 = vsel %vm456, %v320, %v464
        %466 = vst [vmem:[%s447 + $0x14] sm:$0x1] %v465
        %v467 = vld [vmem:[%s447 + $0x18] sm:$0xf]
        %v468 = vsel %vm450, %v327, %v467
        %469 = vst [vmem:[%s447 + $0x18] sm:$0xf] %v468
        %470 = vst.msk [vmem:[%s447 + $0x1c] sm:$0xf] %vm233, %v336
        %v471 = vld [vmem:[%s447 + $0x20] sm:$0x1]
        %v472 = vsel %vm456, %v337, %v471
        %473 = vst [vmem:[%s447 + $0x20] sm:$0x1] %v472
        %v474 = vld [vmem:[%s447 + $0x24] sm:$0xf]
        %v475 = vsel %vm450, %v344, %v474
        %476 = vst [vmem:[%s447 + $0x24] sm:$0xf] %v475
        %477 = vst.msk [vmem:[%s447 + $0x28] sm:$0xf] %vm233, %v353
        %v478 = vld [vmem:[%s447 + $0x2c] sm:$0x1]
        %v479 = vsel %vm456, %v354, %v478
        %480 = vst [vmem:[%s447 + $0x2c] sm:$0x1] %v479
        %v481 = vld [vmem:[%s447 + $0x30] sm:$0xf]
        %v482 = vsel %vm450, %v361, %v481
        %483 = vst [vmem:[%s447 + $0x30] sm:$0xf] %v482
        %484 = vst.msk [vmem:[%s447 + $0x34] sm:$0xf] %vm233, %v370
        %v485 = vld [vmem:[%s447 + $0x38] sm:$0x1]
        %v486 = vsel %vm456, %v371, %v485
        %487 = vst [vmem:[%s447 + $0x38] sm:$0x1] %v486
        %v488 = vld [vmem:[%s447 + $0x3c] sm:$0xf]
        %v489 = vsel %vm450, %v378, %v488
        %490 = vst [vmem:[%s447 + $0x3c] sm:$0xf] %v489
        %491 = vst.msk [vmem:[%s447 + $0x40] sm:$0xf] %vm233, %v387
        %v492 = vld [vmem:[%s447 + $0x44] sm:$0x1]
        %v493 = vsel %vm456, %v388, %v492
        %494 = vst [vmem:[%s447 + $0x44] sm:$0x1] %v493
        %v495 = vld [vmem:[%s447 + $0x48] sm:$0xf]
        %v496 = vsel %vm450, %v395, %v495
        %497 = vst [vmem:[%s447 + $0x48] sm:$0xf] %v496
        %498 = vst.msk [vmem:[%s447 + $0x4c] sm:$0xf] %vm233, %v404
        %v499 = vld [vmem:[%s447 + $0x50] sm:$0x1]
        %v500 = vsel %vm456, %v405, %v499
        %501 = vst [vmem:[%s447 + $0x50] sm:$0x1] %v500
        %v502 = vld [vmem:[%s447 + $0x54] sm:$0xf]
        %v503 = vsel %vm450, %v412, %v502
        %504 = vst [vmem:[%s447 + $0x54] sm:$0xf] %v503
        %505 = vst.msk [vmem:[%s447 + $0x58] sm:$0xf] %vm233, %v421
        %v506 = vld [vmem:[%s447 + $0x5c] sm:$0x1]
        %v507 = vsel %vm456, %v422, %v506
        %508 = vst [vmem:[%s447 + $0x5c] sm:$0x1] %v507
        %p509 = scmp.gt.s32.totalorder %s23, 0
        // Predicated region
        $region37: #{tpu_custom_call.1} parent=35 // pred_check
          %p510 = pneg %p509
        $region38: #{tpu_custom_call.1} parent=35 // pred_check_branch
          %512 = sbr.rel (%p510) target = $region40
        $region39: #{tpu_custom_call.1} parent=35 // pred_region
          %s513 = ssub.s32 %s232, 1
          %s514 = smul.u32 %s513, 2
          %s515 = smul.addr %s514, 4
          %s516 = scalar_lea.vmem %s224, %s515
          %v517 = vld [vmem:[%s516] sm:$0xf]
          %v518 = vld [vmem:[%s516 + $0x4] sm:$0xf]
          %v520 = vshrl.u32 %v517, 16
          %v522 = vrot.slane %v520, 7
          %v523 = vshll.u32 %v517, 16
          %v525 = vor.u32 %v522, %v523
          %v526 = vrot.slane %v522, 4
          %v528 = vshrl.u32 %v518, 16
          %v530 = vrot.slane %v528, 7
          %v531 = vshll.u32 %v518, 16
          %v533 = vor.u32 %v530, %v531
          %v534 = vsel %vm286, %v526, %v533
          %v535 = vrot.slane %v530, 4
          %v539 = vld [vmem:[#allocation2] sm:$0xf]
          %v540 = vsel %vm450, %v525, %v539
          %541 = vst [vmem:[#allocation2] sm:$0xf] %v540
          %542 = vst.msk [vmem:[#allocation2 + $0x4] sm:$0xf] %vm233, %v534
          %v543 = vld [vmem:[#allocation2 + $0x8] sm:$0x1]
          %v544 = vsel %vm456, %v535, %v543
          %545 = vst [vmem:[#allocation2 + $0x8] sm:$0x1] %v544
        $region40: #{tpu_custom_call.1} parent=35 // pred_fallthru
          _
        %p546 = scmp.lt.s32.totalorder %s23, 1
        // Predicated region
        $region41: #{tpu_custom_call.1} parent=35 // pred_check
          %p547 = pneg %p546
        $region42: #{tpu_custom_call.1} parent=35 // pred_check_branch
          %549 = sbr.rel (%p547) target = $region44
        $region43: #{tpu_custom_call.1} parent=35 // pred_region
          %s550 = sadd.s32 %s232, 8
          %s551 = smul.u32 %s550, 2
          %s552 = smul.addr %s551, 4
          %s553 = scalar_lea.vmem %s224, %s552
          %v554 = vld [vmem:[%s553] sm:$0xf]
          %v555 = vld [vmem:[%s553 + $0x4] sm:$0xf]
          %v557 = vshrl.u32 %v554, 16
          %v559 = vrot.slane %v557, 7
          %v560 = vshll.u32 %v554, 16
          %v562 = vor.u32 %v559, %v560
          %v563 = vrot.slane %v559, 4
          %v565 = vshrl.u32 %v555, 16
          %v567 = vrot.slane %v565, 7
          %v568 = vshll.u32 %v555, 16
          %v570 = vor.u32 %v567, %v568
          %v571 = vsel %vm286, %v563, %v570
          %v572 = vrot.slane %v567, 4
          %s576 = scalar_lea.vmem [#allocation2], 108
          %v577 = vld [vmem:[%s576] sm:$0xf]
          %v578 = vsel %vm450, %v562, %v577
          %579 = vst [vmem:[%s576] sm:$0xf] %v578
          %580 = vst.msk [vmem:[%s576 + $0x4] sm:$0xf] %vm233, %v571
          %v581 = vld [vmem:[%s576 + $0x8] sm:$0x1]
          %v582 = vsel %vm456, %v572, %v581
          %583 = vst [vmem:[%s576 + $0x8] sm:$0x1] %v582
        $region44: #{tpu_custom_call.1} parent=35 // pred_fallthru
          _
        %vm584 = vcmask 125952
        %585 = vst.msk [vmem:[#allocation3] sm:$0xf] %vm584, 0
        %586 = vst.msk [vmem:[#allocation3 + $0x4] sm:$0xf] %vm584, 0
        %vm587 = vcmask 122880
        %588 = vst.msk [vmem:[#allocation3 + $0x8] sm:$0x1] %vm587, 0
        %589 = vst.msk [vmem:[#allocation3 + $0xc] sm:$0xf] %vm584, 0
        %590 = vst.msk [vmem:[#allocation3 + $0x10] sm:$0xf] %vm584, 0
        %591 = vst.msk [vmem:[#allocation3 + $0x14] sm:$0x1] %vm587, 0
        %592 = vst.msk [vmem:[#allocation3 + $0x18] sm:$0xf] %vm584, 0
        %593 = vst.msk [vmem:[#allocation3 + $0x1c] sm:$0xf] %vm584, 0
        %594 = vst.msk [vmem:[#allocation3 + $0x20] sm:$0x1] %vm587, 0
        %595 = vst.msk [vmem:[#allocation3 + $0x24] sm:$0xf] %vm584, 0
        %596 = vst.msk [vmem:[#allocation3 + $0x28] sm:$0xf] %vm584, 0
        %597 = vst.msk [vmem:[#allocation3 + $0x2c] sm:$0x1] %vm587, 0
        %598 = vst.msk [vmem:[#allocation3 + $0x30] sm:$0xf] %vm584, 0
        %599 = vst.msk [vmem:[#allocation3 + $0x34] sm:$0xf] %vm584, 0
        %600 = vst.msk [vmem:[#allocation3 + $0x38] sm:$0x1] %vm587, 0
        %601 = vst.msk [vmem:[#allocation3 + $0x3c] sm:$0xf] %vm584, 0
        %602 = vst.msk [vmem:[#allocation3 + $0x40] sm:$0xf] %vm584, 0
        %603 = vst.msk [vmem:[#allocation3 + $0x44] sm:$0x1] %vm587, 0
        %604 = vst.msk [vmem:[#allocation3 + $0x48] sm:$0xf] %vm584, 0
        %605 = vst.msk [vmem:[#allocation3 + $0x4c] sm:$0xf] %vm584, 0
        %606 = vst.msk [vmem:[#allocation3 + $0x50] sm:$0x1] %vm587, 0
        %607 = vst.msk [vmem:[#allocation3 + $0x54] sm:$0xf] %vm584, 0
        %608 = vst.msk [vmem:[#allocation3 + $0x58] sm:$0xf] %vm584, 0
        %609 = vst.msk [vmem:[#allocation3 + $0x5c] sm:$0x1] %vm587, 0
        %610 = vst.msk [vmem:[#allocation3 + $0x60] sm:$0xf] %vm584, 0
        %611 = vst.msk [vmem:[#allocation3 + $0x64] sm:$0xf] %vm584, 0
        %612 = vst.msk [vmem:[#allocation3 + $0x68] sm:$0x1] %vm587, 0
        %613 = vst.msk [vmem:[#allocation3 + $0x6c] sm:$0xf] %vm584, 0
        %614 = vst.msk [vmem:[#allocation3 + $0x70] sm:$0xf] %vm584, 0
        %615 = vst.msk [vmem:[#allocation3 + $0x74] sm:$0x1] %vm587, 0
        %s616 = smul.addr %s265, 4
        %s617 = scalar_lea.vmem %s229, %s616
        %v618 = vld [vmem:[%s617] sm:$0xf]
        %v619 = vld [vmem:[%s617 + $0x4] sm:$0xf]
        %v620 = vld [vmem:[%s617 + $0x8] sm:$0xf]
        %v621 = vld [vmem:[%s617 + $0xc] sm:$0xf]
        %v622 = vld [vmem:[%s617 + $0x10] sm:$0xf]
        %v623 = vld [vmem:[%s617 + $0x14] sm:$0xf]
        %v624 = vld [vmem:[%s617 + $0x18] sm:$0xf]
        %v625 = vld [vmem:[%s617 + $0x1c] sm:$0xf]
        %v626 = vld [vmem:[%s617 + $0x20] sm:$0xf]
        %v627 = vld [vmem:[%s617 + $0x24] sm:$0xf]
        %v628 = vld [vmem:[%s617 + $0x28] sm:$0xf]
        %v629 = vld [vmem:[%s617 + $0x2c] sm:$0xf]
        %v630 = vld [vmem:[%s617 + $0x30] sm:$0xf]
        %v631 = vld [vmem:[%s617 + $0x34] sm:$0xf]
        %v632 = vld [vmem:[%s617 + $0x38] sm:$0xf]
        %v633 = vld [vmem:[%s617 + $0x3c] sm:$0xf]
        %v635 = vshrl.u32 %v618, 16
        %v637 = vrot.slane %v635, 7
        %v638 = vshll.u32 %v618, 16
        %v640 = vor.u32 %v637, %v638
        %v641 = vrot.slane %v637, 4
        %v643 = vshrl.u32 %v619, 16
        %v645 = vrot.slane %v643, 7
        %v646 = vshll.u32 %v619, 16
        %v648 = vor.u32 %v645, %v646
        %v649 = vsel %vm286, %v641, %v648
        %v650 = vrot.slane %v645, 4
        %v652 = vshrl.u32 %v620, 16
        %v654 = vrot.slane %v652, 7
        %v655 = vshll.u32 %v620, 16
        %v657 = vor.u32 %v654, %v655
        %v658 = vrot.slane %v654, 4
        %v660 = vshrl.u32 %v621, 16
        %v662 = vrot.slane %v660, 7
        %v663 = vshll.u32 %v621, 16
        %v665 = vor.u32 %v662, %v663
        %v666 = vsel %vm286, %v658, %v665
        %v667 = vrot.slane %v662, 4
        %v669 = vshrl.u32 %v622, 16
        %v671 = vrot.slane %v669, 7
        %v672 = vshll.u32 %v622, 16
        %v674 = vor.u32 %v671, %v672
        %v675 = vrot.slane %v671, 4
        %v677 = vshrl.u32 %v623, 16
        %v679 = vrot.slane %v677, 7
        %v680 = vshll.u32 %v623, 16
        %v682 = vor.u32 %v679, %v680
        %v683 = vsel %vm286, %v675, %v682
        %v684 = vrot.slane %v679, 4
        %v686 = vshrl.u32 %v624, 16
        %v688 = vrot.slane %v686, 7
        %v689 = vshll.u32 %v624, 16
        %v691 = vor.u32 %v688, %v689
        %v692 = vrot.slane %v688, 4
        %v694 = vshrl.u32 %v625, 16
        %v696 = vrot.slane %v694, 7
        %v697 = vshll.u32 %v625, 16
        %v699 = vor.u32 %v696, %v697
        %v700 = vsel %vm286, %v692, %v699
        %v701 = vrot.slane %v696, 4
        %v703 = vshrl.u32 %v626, 16
        %v705 = vrot.slane %v703, 7
        %v706 = vshll.u32 %v626, 16
        %v708 = vor.u32 %v705, %v706
        %v709 = vrot.slane %v705, 4
        %v711 = vshrl.u32 %v627, 16
        %v713 = vrot.slane %v711, 7
        %v714 = vshll.u32 %v627, 16
        %v716 = vor.u32 %v713, %v714
        %v717 = vsel %vm286, %v709, %v716
        %v718 = vrot.slane %v713, 4
        %v720 = vshrl.u32 %v628, 16
        %v722 = vrot.slane %v720, 7
        %v723 = vshll.u32 %v628, 16
        %v725 = vor.u32 %v722, %v723
        %v726 = vrot.slane %v722, 4
        %v728 = vshrl.u32 %v629, 16
        %v730 = vrot.slane %v728, 7
        %v731 = vshll.u32 %v629, 16
        %v733 = vor.u32 %v730, %v731
        %v734 = vsel %vm286, %v726, %v733
        %v735 = vrot.slane %v730, 4
        %v737 = vshrl.u32 %v630, 16
        %v739 = vrot.slane %v737, 7
        %v740 = vshll.u32 %v630, 16
        %v742 = vor.u32 %v739, %v740
        %v743 = vrot.slane %v739, 4
        %v745 = vshrl.u32 %v631, 16
        %v747 = vrot.slane %v745, 7
        %v748 = vshll.u32 %v631, 16
        %v750 = vor.u32 %v747, %v748
        %v751 = vsel %vm286, %v743, %v750
        %v752 = vrot.slane %v747, 4
        %v754 = vshrl.u32 %v632, 16
        %v756 = vrot.slane %v754, 7
        %v757 = vshll.u32 %v632, 16
        %v759 = vor.u32 %v756, %v757
        %v760 = vrot.slane %v756, 4
        %v762 = vshrl.u32 %v633, 16
        %v764 = vrot.slane %v762, 7
        %v765 = vshll.u32 %v633, 16
        %v767 = vor.u32 %v764, %v765
        %v768 = vsel %vm286, %v760, %v767
        %v769 = vrot.slane %v764, 4
        %s794 = scalar_lea.vmem [#allocation3], 12
        %vm795 = vcmask 125952
        %vm796 = vmand %vm795, %vm449
        %v797 = vld [vmem:[%s794] sm:$0xf]
        %v798 = vsel %vm796, %v640, %v797
        %799 = vst [vmem:[%s794] sm:$0xf] %v798
        %800 = vst.msk [vmem:[%s794 + $0x4] sm:$0xf] %vm584, %v649
        %vm801 = vcmask 122880
        %vm802 = vmand %vm801, %vm284
        %v803 = vld [vmem:[%s794 + $0x8] sm:$0x1]
        %v804 = vsel %vm802, %v650, %v803
        %805 = vst [vmem:[%s794 + $0x8] sm:$0x1] %v804
        %v806 = vld [vmem:[%s794 + $0xc] sm:$0xf]
        %v807 = vsel %vm796, %v657, %v806
        %808 = vst [vmem:[%s794 + $0xc] sm:$0xf] %v807
        %809 = vst.msk [vmem:[%s794 + $0x10] sm:$0xf] %vm584, %v666
        %v810 = vld [vmem:[%s794 + $0x14] sm:$0x1]
        %v811 = vsel %vm802, %v667, %v810
        %812 = vst [vmem:[%s794 + $0x14] sm:$0x1] %v811
        %v813 = vld [vmem:[%s794 + $0x18] sm:$0xf]
        %v814 = vsel %vm796, %v674, %v813
        %815 = vst [vmem:[%s794 + $0x18] sm:$0xf] %v814
        %816 = vst.msk [vmem:[%s794 + $0x1c] sm:$0xf] %vm584, %v683
        %v817 = vld [vmem:[%s794 + $0x20] sm:$0x1]
        %v818 = vsel %vm802, %v684, %v817
        %819 = vst [vmem:[%s794 + $0x20] sm:$0x1] %v818
        %v820 = vld [vmem:[%s794 + $0x24] sm:$0xf]
        %v821 = vsel %vm796, %v691, %v820
        %822 = vst [vmem:[%s794 + $0x24] sm:$0xf] %v821
        %823 = vst.msk [vmem:[%s794 + $0x28] sm:$0xf] %vm584, %v700
        %v824 = vld [vmem:[%s794 + $0x2c] sm:$0x1]
        %v825 = vsel %vm802, %v701, %v824
        %826 = vst [vmem:[%s794 + $0x2c] sm:$0x1] %v825
        %v827 = vld [vmem:[%s794 + $0x30] sm:$0xf]
        %v828 = vsel %vm796, %v708, %v827
        %829 = vst [vmem:[%s794 + $0x30] sm:$0xf] %v828
        %830 = vst.msk [vmem:[%s794 + $0x34] sm:$0xf] %vm584, %v717
        %v831 = vld [vmem:[%s794 + $0x38] sm:$0x1]
        %v832 = vsel %vm802, %v718, %v831
        %833 = vst [vmem:[%s794 + $0x38] sm:$0x1] %v832
        %v834 = vld [vmem:[%s794 + $0x3c] sm:$0xf]
        %v835 = vsel %vm796, %v725, %v834
        %836 = vst [vmem:[%s794 + $0x3c] sm:$0xf] %v835
        %837 = vst.msk [vmem:[%s794 + $0x40] sm:$0xf] %vm584, %v734
        %v838 = vld [vmem:[%s794 + $0x44] sm:$0x1]
        %v839 = vsel %vm802, %v735, %v838
        %840 = vst [vmem:[%s794 + $0x44] sm:$0x1] %v839
        %v841 = vld [vmem:[%s794 + $0x48] sm:$0xf]
        %v842 = vsel %vm796, %v742, %v841
        %843 = vst [vmem:[%s794 + $0x48] sm:$0xf] %v842
        %844 = vst.msk [vmem:[%s794 + $0x4c] sm:$0xf] %vm584, %v751
        %v845 = vld [vmem:[%s794 + $0x50] sm:$0x1]
        %v846 = vsel %vm802, %v752, %v845
        %847 = vst [vmem:[%s794 + $0x50] sm:$0x1] %v846
        %v848 = vld [vmem:[%s794 + $0x54] sm:$0xf]
        %v849 = vsel %vm796, %v759, %v848
        %850 = vst [vmem:[%s794 + $0x54] sm:$0xf] %v849
        %851 = vst.msk [vmem:[%s794 + $0x58] sm:$0xf] %vm584, %v768
        %v852 = vld [vmem:[%s794 + $0x5c] sm:$0x1]
        %v853 = vsel %vm802, %v769, %v852
        %854 = vst [vmem:[%s794 + $0x5c] sm:$0x1] %v853
        // Predicated region
        $region45: #{tpu_custom_call.1} parent=35 // pred_check
          %p855 = pneg %p509
        $region46: #{tpu_custom_call.1} parent=35 // pred_check_branch
          %857 = sbr.rel (%p855) target = $region48
        $region47: #{tpu_custom_call.1} parent=35 // pred_region
          %s858 = ssub.s32 %s232, 1
          %s859 = smul.u32 %s858, 2
          %s860 = smul.addr %s859, 4
          %s861 = scalar_lea.vmem %s229, %s860
          %v862 = vld [vmem:[%s861] sm:$0xf]
          %v863 = vld [vmem:[%s861 + $0x4] sm:$0xf]
          %v865 = vshrl.u32 %v862, 16
          %v867 = vrot.slane %v865, 7
          %v868 = vshll.u32 %v862, 16
          %v870 = vor.u32 %v867, %v868
          %v871 = vrot.slane %v867, 4
          %v873 = vshrl.u32 %v863, 16
          %v875 = vrot.slane %v873, 7
          %v876 = vshll.u32 %v863, 16
          %v878 = vor.u32 %v875, %v876
          %v879 = vsel %vm286, %v871, %v878
          %v880 = vrot.slane %v875, 4
          %v884 = vld [vmem:[#allocation3] sm:$0xf]
          %v885 = vsel %vm796, %v870, %v884
          %886 = vst [vmem:[#allocation3] sm:$0xf] %v885
          %887 = vst.msk [vmem:[#allocation3 + $0x4] sm:$0xf] %vm584, %v879
          %v888 = vld [vmem:[#allocation3 + $0x8] sm:$0x1]
          %v889 = vsel %vm802, %v880, %v888
          %890 = vst [vmem:[#allocation3 + $0x8] sm:$0x1] %v889
        $region48: #{tpu_custom_call.1} parent=35 // pred_fallthru
          _
        // Predicated region
        $region49: #{tpu_custom_call.1} parent=35 // pred_check
          %p891 = pneg %p546
        $region50: #{tpu_custom_call.1} parent=35 // pred_check_branch
          %893 = sbr.rel (%p891) target = $region52
        $region51: #{tpu_custom_call.1} parent=35 // pred_region
          %s894 = sadd.s32 %s232, 8
          %s895 = smul.u32 %s894, 2
          %s896 = smul.addr %s895, 4
          %s897 = scalar_lea.vmem %s229, %s896
          %v898 = vld [vmem:[%s897] sm:$0xf]
          %v899 = vld [vmem:[%s897 + $0x4] sm:$0xf]
          %v901 = vshrl.u32 %v898, 16
          %v903 = vrot.slane %v901, 7
          %v904 = vshll.u32 %v898, 16
          %v906 = vor.u32 %v903, %v904
          %v907 = vrot.slane %v903, 4
          %v909 = vshrl.u32 %v899, 16
          %v911 = vrot.slane %v909, 7
          %v912 = vshll.u32 %v899, 16
          %v914 = vor.u32 %v911, %v912
          %v915 = vsel %vm286, %v907, %v914
          %v916 = vrot.slane %v911, 4
          %s920 = scalar_lea.vmem [#allocation3], 108
          %v921 = vld [vmem:[%s920] sm:$0xf]
          %v922 = vsel %vm796, %v906, %v921
          %923 = vst [vmem:[%s920] sm:$0xf] %v922
          %924 = vst.msk [vmem:[%s920 + $0x4] sm:$0xf] %vm584, %v915
          %v925 = vld [vmem:[%s920 + $0x8] sm:$0x1]
          %v926 = vsel %vm802, %v916, %v925
          %927 = vst [vmem:[%s920 + $0x8] sm:$0x1] %v926
        $region52: #{tpu_custom_call.1} parent=35 // pred_fallthru
          _
        %v928 = vld [vmem:[#allocation2] sm:$0xf]
        %v929 = vld [vmem:[#allocation2 + $0x4] sm:$0xf]
        %v930 = vld [vmem:[#allocation2 + $0xc] sm:$0xf]
        %v931 = vld [vmem:[#allocation2 + $0x10] sm:$0xf]
        %v932 = vld [vmem:[#allocation2 + $0x18] sm:$0xf]
        %v933 = vld [vmem:[#allocation2 + $0x1c] sm:$0xf]
        %v934 = vld [vmem:[#allocation2 + $0x24] sm:$0xf]
        %v935 = vld [vmem:[#allocation2 + $0x28] sm:$0xf]
        %v936 = vld [vmem:[#allocation2 + $0x30] sm:$0xf]
        %v937 = vld [vmem:[#allocation2 + $0x34] sm:$0xf]
        %v938 = vld [vmem:[#allocation2 + $0x3c] sm:$0xf]
        %v939 = vld [vmem:[#allocation2 + $0x40] sm:$0xf]
        %v940 = vld [vmem:[#allocation2 + $0x48] sm:$0xf]
        %v941 = vld [vmem:[#allocation2 + $0x4c] sm:$0xf]
        %v942 = vld [vmem:[#allocation2 + $0x54] sm:$0xf]
        %v943 = vld [vmem:[#allocation2 + $0x58] sm:$0xf]
        %v944 = vld [vmem:[#allocation3] sm:$0xf]
        %v945 = vld [vmem:[#allocation3 + $0x4] sm:$0xf]
        %v946 = vld [vmem:[#allocation3 + $0xc] sm:$0xf]
        %v947 = vld [vmem:[#allocation3 + $0x10] sm:$0xf]
        %v948 = vld [vmem:[#allocation3 + $0x18] sm:$0xf]
        %v949 = vld [vmem:[#allocation3 + $0x1c] sm:$0xf]
        %v950 = vld [vmem:[#allocation3 + $0x24] sm:$0xf]
        %v951 = vld [vmem:[#allocation3 + $0x28] sm:$0xf]
        %v952 = vld [vmem:[#allocation3 + $0x30] sm:$0xf]
        %v953 = vld [vmem:[#allocation3 + $0x34] sm:$0xf]
        %v954 = vld [vmem:[#allocation3 + $0x3c] sm:$0xf]
        %v955 = vld [vmem:[#allocation3 + $0x40] sm:$0xf]
        %v956 = vld [vmem:[#allocation3 + $0x48] sm:$0xf]
        %v957 = vld [vmem:[#allocation3 + $0x4c] sm:$0xf]
        %v958 = vld [vmem:[#allocation3 + $0x54] sm:$0xf]
        %v959 = vld [vmem:[#allocation3 + $0x58] sm:$0xf]
        %v960 = vld [vmem:[#allocation2 + $0x8] sm:$0x1]
        %v961 = vld [vmem:[#allocation2 + $0x14] sm:$0x1]
        %v962 = vld [vmem:[#allocation2 + $0x20] sm:$0x1]
        %v963 = vld [vmem:[#allocation2 + $0x2c] sm:$0x1]
        %v964 = vld [vmem:[#allocation2 + $0x38] sm:$0x1]
        %v965 = vld [vmem:[#allocation2 + $0x44] sm:$0x1]
        %v966 = vld [vmem:[#allocation2 + $0x50] sm:$0x1]
        %v967 = vld [vmem:[#allocation2 + $0x5c] sm:$0x1]
        %vm968 = vsmask.f32 3328
        %vm969 = vsmask.f32 7440
        %vm970 = vmor %vm968, %vm969
        %v972 = vshrl.u32 %v928, 16
        %v974 = vrot.slane %v972, 4
        %v975 = vshll.u32 %v928, 16
        %v977 = vrot.slane %v975, 5
        %v978 = vor.u32 %v974, %v977
        %v979 = vrot.slane %v978, 4
        %v981 = vshll.u32 %v929, 16
        %v983 = vrot.slane %v981, 5
        %v984 = vsel %vm970, %v979, %v983
        %v985 = vshrl.u32 %v929, 16
        %v987 = vrot.slane %v985, 4
        %v988 = vor.u32 %v987, %v983
        %v989 = vrot.slane %v988, 4
        %v991 = vshll.u32 %v960, 16
        %v993 = vrot.slane %v991, 5
        %v994 = vsel %vm970, %v989, %v993
        %v996 = vshrl.u32 %v930, 16
        %v998 = vrot.slane %v996, 4
        %v999 = vshll.u32 %v930, 16
        %v1001 = vrot.slane %v999, 5
        %v1002 = vor.u32 %v998, %v1001
        %v1003 = vrot.slane %v1002, 4
        %v1005 = vshll.u32 %v931, 16
        %v1007 = vrot.slane %v1005, 5
        %v1008 = vsel %vm970, %v1003, %v1007
        %v1009 = vshrl.u32 %v931, 16
        %v1011 = vrot.slane %v1009, 4
        %v1012 = vor.u32 %v1011, %v1007
        %v1013 = vrot.slane %v1012, 4
        %v1015 = vshll.u32 %v961, 16
        %v1017 = vrot.slane %v1015, 5
        %v1018 = vsel %vm970, %v1013, %v1017
        %v1020 = vshrl.u32 %v932, 16
        %v1022 = vrot.slane %v1020, 4
        %v1023 = vshll.u32 %v932, 16
        %v1025 = vrot.slane %v1023, 5
        %v1026 = vor.u32 %v1022, %v1025
        %v1027 = vrot.slane %v1026, 4
        %v1029 = vshll.u32 %v933, 16
        %v1031 = vrot.slane %v1029, 5
        %v1032 = vsel %vm970, %v1027, %v1031
        %v1033 = vshrl.u32 %v933, 16
        %v1035 = vrot.slane %v1033, 4
        %v1036 = vor.u32 %v1035, %v1031
        %v1037 = vrot.slane %v1036, 4
        %v1039 = vshll.u32 %v962, 16
        %v1041 = vrot.slane %v1039, 5
        %v1042 = vsel %vm970, %v1037, %v1041
        %v1044 = vshrl.u32 %v934, 16
        %v1046 = vrot.slane %v1044, 4
        %v1047 = vshll.u32 %v934, 16
        %v1049 = vrot.slane %v1047, 5
        %v1050 = vor.u32 %v1046, %v1049
        %v1051 = vrot.slane %v1050, 4
        %v1053 = vshll.u32 %v935, 16
        %v1055 = vrot.slane %v1053, 5
        %v1056 = vsel %vm970, %v1051, %v1055
        %v1057 = vshrl.u32 %v935, 16
        %v1059 = vrot.slane %v1057, 4
        %v1060 = vor.u32 %v1059, %v1055
        %v1061 = vrot.slane %v1060, 4
        %v1063 = vshll.u32 %v963, 16
        %v1065 = vrot.slane %v1063, 5
        %v1066 = vsel %vm970, %v1061, %v1065
        %v1068 = vshrl.u32 %v936, 16
        %v1070 = vrot.slane %v1068, 4
        %v1071 = vshll.u32 %v936, 16
        %v1073 = vrot.slane %v1071, 5
        %v1074 = vor.u32 %v1070, %v1073
        %v1075 = vrot.slane %v1074, 4
        %v1077 = vshll.u32 %v937, 16
        %v1079 = vrot.slane %v1077, 5
        %v1080 = vsel %vm970, %v1075, %v1079
        %v1081 = vshrl.u32 %v937, 16
        %v1083 = vrot.slane %v1081, 4
        %v1084 = vor.u32 %v1083, %v1079
        %v1085 = vrot.slane %v1084, 4
        %v1087 = vshll.u32 %v964, 16
        %v1089 = vrot.slane %v1087, 5
        %v1090 = vsel %vm970, %v1085, %v1089
        %v1092 = vshrl.u32 %v938, 16
        %v1094 = vrot.slane %v1092, 4
        %v1095 = vshll.u32 %v938, 16
        %v1097 = vrot.slane %v1095, 5
        %v1098 = vor.u32 %v1094, %v1097
        %v1099 = vrot.slane %v1098, 4
        %v1101 = vshll.u32 %v939, 16
        %v1103 = vrot.slane %v1101, 5
        %v1104 = vsel %vm970, %v1099, %v1103
        %v1105 = vshrl.u32 %v939, 16
        %v1107 = vrot.slane %v1105, 4
        %v1108 = vor.u32 %v1107, %v1103
        %v1109 = vrot.slane %v1108, 4
        %v1111 = vshll.u32 %v965, 16
        %v1113 = vrot.slane %v1111, 5
        %v1114 = vsel %vm970, %v1109, %v1113
        %v1116 = vshrl.u32 %v940, 16
        %v1118 = vrot.slane %v1116, 4
        %v1119 = vshll.u32 %v940, 16
        %v1121 = vrot.slane %v1119, 5
        %v1122 = vor.u32 %v1118, %v1121
        %v1123 = vrot.slane %v1122, 4
        %v1125 = vshll.u32 %v941, 16
        %v1127 = vrot.slane %v1125, 5
        %v1128 = vsel %vm970, %v1123, %v1127
        %v1129 = vshrl.u32 %v941, 16
        %v1131 = vrot.slane %v1129, 4
        %v1132 = vor.u32 %v1131, %v1127
        %v1133 = vrot.slane %v1132, 4
        %v1135 = vshll.u32 %v966, 16
        %v1137 = vrot.slane %v1135, 5
        %v1138 = vsel %vm970, %v1133, %v1137
        %v1140 = vshrl.u32 %v942, 16
        %v1142 = vrot.slane %v1140, 4
        %v1143 = vshll.u32 %v942, 16
        %v1145 = vrot.slane %v1143, 5
        %v1146 = vor.u32 %v1142, %v1145
        %v1147 = vrot.slane %v1146, 4
        %v1149 = vshll.u32 %v943, 16
        %v1151 = vrot.slane %v1149, 5
        %v1152 = vsel %vm970, %v1147, %v1151
        %v1153 = vshrl.u32 %v943, 16
        %v1155 = vrot.slane %v1153, 4
        %v1156 = vor.u32 %v1155, %v1151
        %v1157 = vrot.slane %v1156, 4
        %v1159 = vshll.u32 %v967, 16
        %v1161 = vrot.slane %v1159, 5
        %v1162 = vsel %vm970, %v1157, %v1161
        %v1163 = vld [vmem:[#allocation3 + $0x8] sm:$0x1]
        %v1164 = vld [vmem:[#allocation3 + $0x14] sm:$0x1]
        %v1165 = vld [vmem:[#allocation3 + $0x20] sm:$0x1]
        %v1166 = vld [vmem:[#allocation3 + $0x2c] sm:$0x1]
        %v1167 = vld [vmem:[#allocation3 + $0x38] sm:$0x1]
        %v1168 = vld [vmem:[#allocation3 + $0x44] sm:$0x1]
        %v1169 = vld [vmem:[#allocation3 + $0x50] sm:$0x1]
        %v1170 = vld [vmem:[#allocation3 + $0x5c] sm:$0x1]
        %v1172 = vshrl.u32 %v944, 16
        %v1174 = vrot.slane %v1172, 4
        %v1175 = vshll.u32 %v944, 16
        %v1177 = vrot.slane %v1175, 5
        %v1178 = vor.u32 %v1174, %v1177
        %v1179 = vrot.slane %v1178, 4
        %v1181 = vshll.u32 %v945, 16
        %v1183 = vrot.slane %v1181, 5
        %v1184 = vsel %vm970, %v1179, %v1183
        %v1185 = vshrl.u32 %v945, 16
        %v1187 = vrot.slane %v1185, 4
        %v1188 = vor.u32 %v1187, %v1183
        %v1189 = vrot.slane %v1188, 4
        %v1191 = vshll.u32 %v1163, 16
        %v1193 = vrot.slane %v1191, 5
        %v1194 = vsel %vm970, %v1189, %v1193
        %v1196 = vshrl.u32 %v946, 16
        %v1198 = vrot.slane %v1196, 4
        %v1199 = vshll.u32 %v946, 16
        %v1201 = vrot.slane %v1199, 5
        %v1202 = vor.u32 %v1198, %v1201
        %v1203 = vrot.slane %v1202, 4
        %v1205 = vshll.u32 %v947, 16
        %v1207 = vrot.slane %v1205, 5
        %v1208 = vsel %vm970, %v1203, %v1207
        %v1209 = vshrl.u32 %v947, 16
        %v1211 = vrot.slane %v1209, 4
        %v1212 = vor.u32 %v1211, %v1207
        %v1213 = vrot.slane %v1212, 4
        %v1215 = vshll.u32 %v1164, 16
        %v1217 = vrot.slane %v1215, 5
        %v1218 = vsel %vm970, %v1213, %v1217
        %v1220 = vshrl.u32 %v948, 16
        %v1222 = vrot.slane %v1220, 4
        %v1223 = vshll.u32 %v948, 16
        %v1225 = vrot.slane %v1223, 5
        %v1226 = vor.u32 %v1222, %v1225
        %v1227 = vrot.slane %v1226, 4
        %v1229 = vshll.u32 %v949, 16
        %v1231 = vrot.slane %v1229, 5
        %v1232 = vsel %vm970, %v1227, %v1231
        %v1233 = vshrl.u32 %v949, 16
        %v1235 = vrot.slane %v1233, 4
        %v1236 = vor.u32 %v1235, %v1231
        %v1237 = vrot.slane %v1236, 4
        %v1239 = vshll.u32 %v1165, 16
        %v1241 = vrot.slane %v1239, 5
        %v1242 = vsel %vm970, %v1237, %v1241
        %v1244 = vshrl.u32 %v950, 16
        %v1246 = vrot.slane %v1244, 4
        %v1247 = vshll.u32 %v950, 16
        %v1249 = vrot.slane %v1247, 5
        %v1250 = vor.u32 %v1246, %v1249
        %v1251 = vrot.slane %v1250, 4
        %v1253 = vshll.u32 %v951, 16
        %v1255 = vrot.slane %v1253, 5
        %v1256 = vsel %vm970, %v1251, %v1255
        %v1257 = vshrl.u32 %v951, 16
        %v1259 = vrot.slane %v1257, 4
        %v1260 = vor.u32 %v1259, %v1255
        %v1261 = vrot.slane %v1260, 4
        %v1263 = vshll.u32 %v1166, 16
        %v1265 = vrot.slane %v1263, 5
        %v1266 = vsel %vm970, %v1261, %v1265
        %v1268 = vshrl.u32 %v952, 16
        %v1270 = vrot.slane %v1268, 4
        %v1271 = vshll.u32 %v952, 16
        %v1273 = vrot.slane %v1271, 5
        %v1274 = vor.u32 %v1270, %v1273
        %v1275 = vrot.slane %v1274, 4
        %v1277 = vshll.u32 %v953, 16
        %v1279 = vrot.slane %v1277, 5
        %v1280 = vsel %vm970, %v1275, %v1279
        %v1281 = vshrl.u32 %v953, 16
        %v1283 = vrot.slane %v1281, 4
        %v1284 = vor.u32 %v1283, %v1279
        %v1285 = vrot.slane %v1284, 4
        %v1287 = vshll.u32 %v1167, 16
        %v1289 = vrot.slane %v1287, 5
        %v1290 = vsel %vm970, %v1285, %v1289
        %v1292 = vshrl.u32 %v954, 16
        %v1294 = vrot.slane %v1292, 4
        %v1295 = vshll.u32 %v954, 16
        %v1297 = vrot.slane %v1295, 5
        %v1298 = vor.u32 %v1294, %v1297
        %v1299 = vrot.slane %v1298, 4
        %v1301 = vshll.u32 %v955, 16
        %v1303 = vrot.slane %v1301, 5
        %v1304 = vsel %vm970, %v1299, %v1303
        %v1305 = vshrl.u32 %v955, 16
        %v1307 = vrot.slane %v1305, 4
        %v1308 = vor.u32 %v1307, %v1303
        %v1309 = vrot.slane %v1308, 4
        %v1311 = vshll.u32 %v1168, 16
        %v1313 = vrot.slane %v1311, 5
        %v1314 = vsel %vm970, %v1309, %v1313
        %v1316 = vshrl.u32 %v956, 16
        %v1318 = vrot.slane %v1316, 4
        %v1319 = vshll.u32 %v956, 16
        %v1321 = vrot.slane %v1319, 5
        %v1322 = vor.u32 %v1318, %v1321
        %v1323 = vrot.slane %v1322, 4
        %v1325 = vshll.u32 %v957, 16
        %v1327 = vrot.slane %v1325, 5
        %v1328 = vsel %vm970, %v1323, %v1327
        %v1329 = vshrl.u32 %v957, 16
        %v1331 = vrot.slane %v1329, 4
        %v1332 = vor.u32 %v1331, %v1327
        %v1333 = vrot.slane %v1332, 4
        %v1335 = vshll.u32 %v1169, 16
        %v1337 = vrot.slane %v1335, 5
        %v1338 = vsel %vm970, %v1333, %v1337
        %v1340 = vshrl.u32 %v958, 16
        %v1342 = vrot.slane %v1340, 4
        %v1343 = vshll.u32 %v958, 16
        %v1345 = vrot.slane %v1343, 5
        %v1346 = vor.u32 %v1342, %v1345
        %v1347 = vrot.slane %v1346, 4
        %v1349 = vshll.u32 %v959, 16
        %v1351 = vrot.slane %v1349, 5
        %v1352 = vsel %vm970, %v1347, %v1351
        %v1353 = vshrl.u32 %v959, 16
        %v1355 = vrot.slane %v1353, 4
        %v1356 = vor.u32 %v1355, %v1351
        %v1357 = vrot.slane %v1356, 4
        %v1359 = vshll.u32 %v1170, 16
        %v1361 = vrot.slane %v1359, 5
        %v1362 = vsel %vm970, %v1357, %v1361
        %v1363 = vld [vmem:[#allocation2] sm:$0xe]
        %v1364 = vld [vmem:[#allocation2 + $0xc] sm:$0xe]
        %v1365 = vld [vmem:[#allocation2 + $0x18] sm:$0xe]
        %v1366 = vld [vmem:[#allocation2 + $0x24] sm:$0xe]
        %v1367 = vld [vmem:[#allocation2 + $0x30] sm:$0xe]
        %v1368 = vld [vmem:[#allocation2 + $0x3c] sm:$0xe]
        %v1369 = vld [vmem:[#allocation2 + $0x48] sm:$0xe]
        %v1370 = vld [vmem:[#allocation2 + $0x54] sm:$0xe]
        %vm1395 = vcmask 1042432
        %vm1396 = vcmask 1046532
        %vm1397 = vmor %vm1395, %vm1396
        %v1398 = vrot.slane %v1363, 5
        %v1399 = vrot.slane %v1398, 4
        %v1400 = vrot.slane %v929, 5
        %v1401 = vsel %vm1397, %v1399, %v1400
        %v1402 = vrot.slane %v1400, 4
        %v1403 = vrot.slane %v960, 5
        %v1404 = vsel %vm1397, %v1402, %v1403
        %v1405 = vrot.slane %v1364, 5
        %v1406 = vrot.slane %v1405, 4
        %v1407 = vrot.slane %v931, 5
        %v1408 = vsel %vm1397, %v1406, %v1407
        %v1409 = vrot.slane %v1407, 4
        %v1410 = vrot.slane %v961, 5
        %v1411 = vsel %vm1397, %v1409, %v1410
        %v1412 = vrot.slane %v1365, 5
        %v1413 = vrot.slane %v1412, 4
        %v1414 = vrot.slane %v933, 5
        %v1415 = vsel %vm1397, %v1413, %v1414
        %v1416 = vrot.slane %v1414, 4
        %v1417 = vrot.slane %v962, 5
        %v1418 = vsel %vm1397, %v1416, %v1417
        %v1419 = vrot.slane %v1366, 5
        %v1420 = vrot.slane %v1419, 4
        %v1421 = vrot.slane %v935, 5
        %v1422 = vsel %vm1397, %v1420, %v1421
        %v1423 = vrot.slane %v1421, 4
        %v1424 = vrot.slane %v963, 5
        %v1425 = vsel %vm1397, %v1423, %v1424
        %v1426 = vrot.slane %v1367, 5
        %v1427 = vrot.slane %v1426, 4
        %v1428 = vrot.slane %v937, 5
        %v1429 = vsel %vm1397, %v1427, %v1428
        %v1430 = vrot.slane %v1428, 4
        %v1431 = vrot.slane %v964, 5
        %v1432 = vsel %vm1397, %v1430, %v1431
        %v1433 = vrot.slane %v1368, 5
        %v1434 = vrot.slane %v1433, 4
        %v1435 = vrot.slane %v939, 5
        %v1436 = vsel %vm1397, %v1434, %v1435
        %v1437 = vrot.slane %v1435, 4
        %v1438 = vrot.slane %v965, 5
        %v1439 = vsel %vm1397, %v1437, %v1438
        %v1440 = vrot.slane %v1369, 5
        %v1441 = vrot.slane %v1440, 4
        %v1442 = vrot.slane %v941, 5
        %v1443 = vsel %vm1397, %v1441, %v1442
        %v1444 = vrot.slane %v1442, 4
        %v1445 = vrot.slane %v966, 5
        %v1446 = vsel %vm1397, %v1444, %v1445
        %v1447 = vrot.slane %v1370, 5
        %v1448 = vrot.slane %v1447, 4
        %v1449 = vrot.slane %v943, 5
        %v1450 = vsel %vm1397, %v1448, %v1449
        %v1451 = vrot.slane %v1449, 4
        %v1452 = vrot.slane %v967, 5
        %v1453 = vsel %vm1397, %v1451, %v1452
        %v1454 = vld [vmem:[#allocation3] sm:$0xe]
        %v1455 = vld [vmem:[#allocation3 + $0xc] sm:$0xe]
        %v1456 = vld [vmem:[#allocation3 + $0x18] sm:$0xe]
        %v1457 = vld [vmem:[#allocation3 + $0x24] sm:$0xe]
        %v1458 = vld [vmem:[#allocation3 + $0x30] sm:$0xe]
        %v1459 = vld [vmem:[#allocation3 + $0x3c] sm:$0xe]
        %v1460 = vld [vmem:[#allocation3 + $0x48] sm:$0xe]
        %v1461 = vld [vmem:[#allocation3 + $0x54] sm:$0xe]
        %v1486 = vrot.slane %v1454, 5
        %v1487 = vrot.slane %v1486, 4
        %v1488 = vrot.slane %v945, 5
        %v1489 = vsel %vm1397, %v1487, %v1488
        %v1490 = vrot.slane %v1488, 4
        %v1491 = vrot.slane %v1163, 5
        %v1492 = vsel %vm1397, %v1490, %v1491
        %v1493 = vrot.slane %v1455, 5
        %v1494 = vrot.slane %v1493, 4
        %v1495 = vrot.slane %v947, 5
        %v1496 = vsel %vm1397, %v1494, %v1495
        %v1497 = vrot.slane %v1495, 4
        %v1498 = vrot.slane %v1164, 5
        %v1499 = vsel %vm1397, %v1497, %v1498
        %v1500 = vrot.slane %v1456, 5
        %v1501 = vrot.slane %v1500, 4
        %v1502 = vrot.slane %v949, 5
        %v1503 = vsel %vm1397, %v1501, %v1502
        %v1504 = vrot.slane %v1502, 4
        %v1505 = vrot.slane %v1165, 5
        %v1506 = vsel %vm1397, %v1504, %v1505
        %v1507 = vrot.slane %v1457, 5
        %v1508 = vrot.slane %v1507, 4
        %v1509 = vrot.slane %v951, 5
        %v1510 = vsel %vm1397, %v1508, %v1509
        %v1511 = vrot.slane %v1509, 4
        %v1512 = vrot.slane %v1166, 5
        %v1513 = vsel %vm1397, %v1511, %v1512
        %v1514 = vrot.slane %v1458, 5
        %v1515 = vrot.slane %v1514, 4
        %v1516 = vrot.slane %v953, 5
        %v1517 = vsel %vm1397, %v1515, %v1516
        %v1518 = vrot.slane %v1516, 4
        %v1519 = vrot.slane %v1167, 5
        %v1520 = vsel %vm1397, %v1518, %v1519
        %v1521 = vrot.slane %v1459, 5
        %v1522 = vrot.slane %v1521, 4
        %v1523 = vrot.slane %v955, 5
        %v1524 = vsel %vm1397, %v1522, %v1523
        %v1525 = vrot.slane %v1523, 4
        %v1526 = vrot.slane %v1168, 5
        %v1527 = vsel %vm1397, %v1525, %v1526
        %v1528 = vrot.slane %v1460, 5
        %v1529 = vrot.slane %v1528, 4
        %v1530 = vrot.slane %v957, 5
        %v1531 = vsel %vm1397, %v1529, %v1530
        %v1532 = vrot.slane %v1530, 4
        %v1533 = vrot.slane %v1169, 5
        %v1534 = vsel %vm1397, %v1532, %v1533
        %v1535 = vrot.slane %v1461, 5
        %v1536 = vrot.slane %v1535, 4
        %v1537 = vrot.slane %v959, 5
        %v1538 = vsel %vm1397, %v1536, %v1537
        %v1539 = vrot.slane %v1537, 4
        %v1540 = vrot.slane %v1170, 5
        %v1541 = vsel %vm1397, %v1539, %v1540
        %v1542 = vld [vmem:[%s447] sm:$0xf]
        %v1543 = vld [vmem:[%s447 + $0x4] sm:$0xf]
        %v1544 = vld [vmem:[%s447 + $0xc] sm:$0xf]
        %v1545 = vld [vmem:[%s447 + $0x10] sm:$0xf]
        %v1546 = vld [vmem:[%s447 + $0x18] sm:$0xf]
        %v1547 = vld [vmem:[%s447 + $0x1c] sm:$0xf]
        %v1548 = vld [vmem:[%s447 + $0x24] sm:$0xf]
        %v1549 = vld [vmem:[%s447 + $0x28] sm:$0xf]
        %v1550 = vld [vmem:[%s447 + $0x30] sm:$0xf]
        %v1551 = vld [vmem:[%s447 + $0x34] sm:$0xf]
        %v1552 = vld [vmem:[%s447 + $0x3c] sm:$0xf]
        %v1553 = vld [vmem:[%s447 + $0x40] sm:$0xf]
        %v1554 = vld [vmem:[%s447 + $0x48] sm:$0xf]
        %v1555 = vld [vmem:[%s447 + $0x4c] sm:$0xf]
        %v1556 = vld [vmem:[%s447 + $0x54] sm:$0xf]
        %v1557 = vld [vmem:[%s447 + $0x58] sm:$0xf]
        %v1558 = vld [vmem:[%s794] sm:$0xf]
        %v1559 = vld [vmem:[%s794 + $0x4] sm:$0xf]
        %v1560 = vld [vmem:[%s794 + $0xc] sm:$0xf]
        %v1561 = vld [vmem:[%s794 + $0x10] sm:$0xf]
        %v1562 = vld [vmem:[%s794 + $0x18] sm:$0xf]
        %v1563 = vld [vmem:[%s794 + $0x1c] sm:$0xf]
        %v1564 = vld [vmem:[%s794 + $0x24] sm:$0xf]
        %v1565 = vld [vmem:[%s794 + $0x28] sm:$0xf]
        %v1566 = vld [vmem:[%s794 + $0x30] sm:$0xf]
        %v1567 = vld [vmem:[%s794 + $0x34] sm:$0xf]
        %v1568 = vld [vmem:[%s794 + $0x3c] sm:$0xf]
        %v1569 = vld [vmem:[%s794 + $0x40] sm:$0xf]
        %v1570 = vld [vmem:[%s794 + $0x48] sm:$0xf]
        %v1571 = vld [vmem:[%s794 + $0x4c] sm:$0xf]
        %v1572 = vld [vmem:[%s794 + $0x54] sm:$0xf]
        %v1573 = vld [vmem:[%s794 + $0x58] sm:$0xf]
        %v1574 = vld [vmem:[%s447 + $0x8] sm:$0x1]
        %v1575 = vld [vmem:[%s447 + $0x14] sm:$0x1]
        %v1576 = vld [vmem:[%s447 + $0x20] sm:$0x1]
        %v1577 = vld [vmem:[%s447 + $0x2c] sm:$0x1]
        %v1578 = vld [vmem:[%s447 + $0x38] sm:$0x1]
        %v1579 = vld [vmem:[%s447 + $0x44] sm:$0x1]
        %v1580 = vld [vmem:[%s447 + $0x50] sm:$0x1]
        %v1581 = vld [vmem:[%s447 + $0x5c] sm:$0x1]
        %v1583 = vshrl.u32 %v1542, 16
        %v1585 = vrot.slane %v1583, 4
        %v1586 = vshll.u32 %v1542, 16
        %v1588 = vrot.slane %v1586, 5
        %v1589 = vor.u32 %v1585, %v1588
        %v1590 = vrot.slane %v1589, 4
        %v1592 = vshll.u32 %v1543, 16
        %v1594 = vrot.slane %v1592, 5
        %v1595 = vsel %vm970, %v1590, %v1594
        %v1596 = vshrl.u32 %v1543, 16
        %v1598 = vrot.slane %v1596, 4
        %v1599 = vor.u32 %v1598, %v1594
        %v1600 = vrot.slane %v1599, 4
        %v1602 = vshll.u32 %v1574, 16
        %v1604 = vrot.slane %v1602, 5
        %v1605 = vsel %vm970, %v1600, %v1604
        %v1607 = vshrl.u32 %v1544, 16
        %v1609 = vrot.slane %v1607, 4
        %v1610 = vshll.u32 %v1544, 16
        %v1612 = vrot.slane %v1610, 5
        %v1613 = vor.u32 %v1609, %v1612
        %v1614 = vrot.slane %v1613, 4
        %v1616 = vshll.u32 %v1545, 16
        %v1618 = vrot.slane %v1616, 5
        %v1619 = vsel %vm970, %v1614, %v1618
        %v1620 = vshrl.u32 %v1545, 16
        %v1622 = vrot.slane %v1620, 4
        %v1623 = vor.u32 %v1622, %v1618
        %v1624 = vrot.slane %v1623, 4
        %v1626 = vshll.u32 %v1575, 16
        %v1628 = vrot.slane %v1626, 5
        %v1629 = vsel %vm970, %v1624, %v1628
        %v1631 = vshrl.u32 %v1546, 16
        %v1633 = vrot.slane %v1631, 4
        %v1634 = vshll.u32 %v1546, 16
        %v1636 = vrot.slane %v1634, 5
        %v1637 = vor.u32 %v1633, %v1636
        %v1638 = vrot.slane %v1637, 4
        %v1640 = vshll.u32 %v1547, 16
        %v1642 = vrot.slane %v1640, 5
        %v1643 = vsel %vm970, %v1638, %v1642
        %v1644 = vshrl.u32 %v1547, 16
        %v1646 = vrot.slane %v1644, 4
        %v1647 = vor.u32 %v1646, %v1642
        %v1648 = vrot.slane %v1647, 4
        %v1650 = vshll.u32 %v1576, 16
        %v1652 = vrot.slane %v1650, 5
        %v1653 = vsel %vm970, %v1648, %v1652
        %v1655 = vshrl.u32 %v1548, 16
        %v1657 = vrot.slane %v1655, 4
        %v1658 = vshll.u32 %v1548, 16
        %v1660 = vrot.slane %v1658, 5
        %v1661 = vor.u32 %v1657, %v1660
        %v1662 = vrot.slane %v1661, 4
        %v1664 = vshll.u32 %v1549, 16
        %v1666 = vrot.slane %v1664, 5
        %v1667 = vsel %vm970, %v1662, %v1666
        %v1668 = vshrl.u32 %v1549, 16
        %v1670 = vrot.slane %v1668, 4
        %v1671 = vor.u32 %v1670, %v1666
        %v1672 = vrot.slane %v1671, 4
        %v1674 = vshll.u32 %v1577, 16
        %v1676 = vrot.slane %v1674, 5
        %v1677 = vsel %vm970, %v1672, %v1676
        %v1679 = vshrl.u32 %v1550, 16
        %v1681 = vrot.slane %v1679, 4
        %v1682 = vshll.u32 %v1550, 16
        %v1684 = vrot.slane %v1682, 5
        %v1685 = vor.u32 %v1681, %v1684
        %v1686 = vrot.slane %v1685, 4
        %v1688 = vshll.u32 %v1551, 16
        %v1690 = vrot.slane %v1688, 5
        %v1691 = vsel %vm970, %v1686, %v1690
        %v1692 = vshrl.u32 %v1551, 16
        %v1694 = vrot.slane %v1692, 4
        %v1695 = vor.u32 %v1694, %v1690
        %v1696 = vrot.slane %v1695, 4
        %v1698 = vshll.u32 %v1578, 16
        %v1700 = vrot.slane %v1698, 5
        %v1701 = vsel %vm970, %v1696, %v1700
        %v1703 = vshrl.u32 %v1552, 16
        %v1705 = vrot.slane %v1703, 4
        %v1706 = vshll.u32 %v1552, 16
        %v1708 = vrot.slane %v1706, 5
        %v1709 = vor.u32 %v1705, %v1708
        %v1710 = vrot.slane %v1709, 4
        %v1712 = vshll.u32 %v1553, 16
        %v1714 = vrot.slane %v1712, 5
        %v1715 = vsel %vm970, %v1710, %v1714
        %v1716 = vshrl.u32 %v1553, 16
        %v1718 = vrot.slane %v1716, 4
        %v1719 = vor.u32 %v1718, %v1714
        %v1720 = vrot.slane %v1719, 4
        %v1722 = vshll.u32 %v1579, 16
        %v1724 = vrot.slane %v1722, 5
        %v1725 = vsel %vm970, %v1720, %v1724
        %v1727 = vshrl.u32 %v1554, 16
        %v1729 = vrot.slane %v1727, 4
        %v1730 = vshll.u32 %v1554, 16
        %v1732 = vrot.slane %v1730, 5
        %v1733 = vor.u32 %v1729, %v1732
        %v1734 = vrot.slane %v1733, 4
        %v1736 = vshll.u32 %v1555, 16
        %v1738 = vrot.slane %v1736, 5
        %v1739 = vsel %vm970, %v1734, %v1738
        %v1740 = vshrl.u32 %v1555, 16
        %v1742 = vrot.slane %v1740, 4
        %v1743 = vor.u32 %v1742, %v1738
        %v1744 = vrot.slane %v1743, 4
        %v1746 = vshll.u32 %v1580, 16
        %v1748 = vrot.slane %v1746, 5
        %v1749 = vsel %vm970, %v1744, %v1748
        %v1751 = vshrl.u32 %v1556, 16
        %v1753 = vrot.slane %v1751, 4
        %v1754 = vshll.u32 %v1556, 16
        %v1756 = vrot.slane %v1754, 5
        %v1757 = vor.u32 %v1753, %v1756
        %v1758 = vrot.slane %v1757, 4
        %v1760 = vshll.u32 %v1557, 16
        %v1762 = vrot.slane %v1760, 5
        %v1763 = vsel %vm970, %v1758, %v1762
        %v1764 = vshrl.u32 %v1557, 16
        %v1766 = vrot.slane %v1764, 4
        %v1767 = vor.u32 %v1766, %v1762
        %v1768 = vrot.slane %v1767, 4
        %v1770 = vshll.u32 %v1581, 16
        %v1772 = vrot.slane %v1770, 5
        %v1773 = vsel %vm970, %v1768, %v1772
        %v1774 = vld [vmem:[%s794 + $0x8] sm:$0x1]
        %v1775 = vld [vmem:[%s794 + $0x14] sm:$0x1]
        %v1776 = vld [vmem:[%s794 + $0x20] sm:$0x1]
        %v1777 = vld [vmem:[%s794 + $0x2c] sm:$0x1]
        %v1778 = vld [vmem:[%s794 + $0x38] sm:$0x1]
        %v1779 = vld [vmem:[%s794 + $0x44] sm:$0x1]
        %v1780 = vld [vmem:[%s794 + $0x50] sm:$0x1]
        %v1781 = vld [vmem:[%s794 + $0x5c] sm:$0x1]
        %v1783 = vshrl.u32 %v1558, 16
        %v1785 = vrot.slane %v1783, 4
        %v1786 = vshll.u32 %v1558, 16
        %v1788 = vrot.slane %v1786, 5
        %v1789 = vor.u32 %v1785, %v1788
        %v1790 = vrot.slane %v1789, 4
        %v1792 = vshll.u32 %v1559, 16
        %v1794 = vrot.slane %v1792, 5
        %v1795 = vsel %vm970, %v1790, %v1794
        %v1796 = vshrl.u32 %v1559, 16
        %v1798 = vrot.slane %v1796, 4
        %v1799 = vor.u32 %v1798, %v1794
        %v1800 = vrot.slane %v1799, 4
        %v1802 = vshll.u32 %v1774, 16
        %v1804 = vrot.slane %v1802, 5
        %v1805 = vsel %vm970, %v1800, %v1804
        %v1807 = vshrl.u32 %v1560, 16
        %v1809 = vrot.slane %v1807, 4
        %v1810 = vshll.u32 %v1560, 16
        %v1812 = vrot.slane %v1810, 5
        %v1813 = vor.u32 %v1809, %v1812
        %v1814 = vrot.slane %v1813, 4
        %v1816 = vshll.u32 %v1561, 16
        %v1818 = vrot.slane %v1816, 5
        %v1819 = vsel %vm970, %v1814, %v1818
        %v1820 = vshrl.u32 %v1561, 16
        %v1822 = vrot.slane %v1820, 4
        %v1823 = vor.u32 %v1822, %v1818
        %v1824 = vrot.slane %v1823, 4
        %v1826 = vshll.u32 %v1775, 16
        %v1828 = vrot.slane %v1826, 5
        %v1829 = vsel %vm970, %v1824, %v1828
        %v1831 = vshrl.u32 %v1562, 16
        %v1833 = vrot.slane %v1831, 4
        %v1834 = vshll.u32 %v1562, 16
        %v1836 = vrot.slane %v1834, 5
        %v1837 = vor.u32 %v1833, %v1836
        %v1838 = vrot.slane %v1837, 4
        %v1840 = vshll.u32 %v1563, 16
        %v1842 = vrot.slane %v1840, 5
        %v1843 = vsel %vm970, %v1838, %v1842
        %v1844 = vshrl.u32 %v1563, 16
        %v1846 = vrot.slane %v1844, 4
        %v1847 = vor.u32 %v1846, %v1842
        %v1848 = vrot.slane %v1847, 4
        %v1850 = vshll.u32 %v1776, 16
        %v1852 = vrot.slane %v1850, 5
        %v1853 = vsel %vm970, %v1848, %v1852
        %v1855 = vshrl.u32 %v1564, 16
        %v1857 = vrot.slane %v1855, 4
        %v1858 = vshll.u32 %v1564, 16
        %v1860 = vrot.slane %v1858, 5
        %v1861 = vor.u32 %v1857, %v1860
        %v1862 = vrot.slane %v1861, 4
        %v1864 = vshll.u32 %v1565, 16
        %v1866 = vrot.slane %v1864, 5
        %v1867 = vsel %vm970, %v1862, %v1866
        %v1868 = vshrl.u32 %v1565, 16
        %v1870 = vrot.slane %v1868, 4
        %v1871 = vor.u32 %v1870, %v1866
        %v1872 = vrot.slane %v1871, 4
        %v1874 = vshll.u32 %v1777, 16
        %v1876 = vrot.slane %v1874, 5
        %v1877 = vsel %vm970, %v1872, %v1876
        %v1879 = vshrl.u32 %v1566, 16
        %v1881 = vrot.slane %v1879, 4
        %v1882 = vshll.u32 %v1566, 16
        %v1884 = vrot.slane %v1882, 5
        %v1885 = vor.u32 %v1881, %v1884
        %v1886 = vrot.slane %v1885, 4
        %v1888 = vshll.u32 %v1567, 16
        %v1890 = vrot.slane %v1888, 5
        %v1891 = vsel %vm970, %v1886, %v1890
        %v1892 = vshrl.u32 %v1567, 16
        %v1894 = vrot.slane %v1892, 4
        %v1895 = vor.u32 %v1894, %v1890
        %v1896 = vrot.slane %v1895, 4
        %v1898 = vshll.u32 %v1778, 16
        %v1900 = vrot.slane %v1898, 5
        %v1901 = vsel %vm970, %v1896, %v1900
        %v1903 = vshrl.u32 %v1568, 16
        %v1905 = vrot.slane %v1903, 4
        %v1906 = vshll.u32 %v1568, 16
        %v1908 = vrot.slane %v1906, 5
        %v1909 = vor.u32 %v1905, %v1908
        %v1910 = vrot.slane %v1909, 4
        %v1912 = vshll.u32 %v1569, 16
        %v1914 = vrot.slane %v1912, 5
        %v1915 = vsel %vm970, %v1910, %v1914
        %v1916 = vshrl.u32 %v1569, 16
        %v1918 = vrot.slane %v1916, 4
        %v1919 = vor.u32 %v1918, %v1914
        %v1920 = vrot.slane %v1919, 4
        %v1922 = vshll.u32 %v1779, 16
        %v1924 = vrot.slane %v1922, 5
        %v1925 = vsel %vm970, %v1920, %v1924
        %v1927 = vshrl.u32 %v1570, 16
        %v1929 = vrot.slane %v1927, 4
        %v1930 = vshll.u32 %v1570, 16
        %v1932 = vrot.slane %v1930, 5
        %v1933 = vor.u32 %v1929, %v1932
        %v1934 = vrot.slane %v1933, 4
        %v1936 = vshll.u32 %v1571, 16
        %v1938 = vrot.slane %v1936, 5
        %v1939 = vsel %vm970, %v1934, %v1938
        %v1940 = vshrl.u32 %v1571, 16
        %v1942 = vrot.slane %v1940, 4
        %v1943 = vor.u32 %v1942, %v1938
        %v1944 = vrot.slane %v1943, 4
        %v1946 = vshll.u32 %v1780, 16
        %v1948 = vrot.slane %v1946, 5
        %v1949 = vsel %vm970, %v1944, %v1948
        %v1951 = vshrl.u32 %v1572, 16
        %v1953 = vrot.slane %v1951, 4
        %v1954 = vshll.u32 %v1572, 16
        %v1956 = vrot.slane %v1954, 5
        %v1957 = vor.u32 %v1953, %v1956
        %v1958 = vrot.slane %v1957, 4
        %v1960 = vshll.u32 %v1573, 16
        %v1962 = vrot.slane %v1960, 5
        %v1963 = vsel %vm970, %v1958, %v1962
        %v1964 = vshrl.u32 %v1573, 16
        %v1966 = vrot.slane %v1964, 4
        %v1967 = vor.u32 %v1966, %v1962
        %v1968 = vrot.slane %v1967, 4
        %v1970 = vshll.u32 %v1781, 16
        %v1972 = vrot.slane %v1970, 5
        %v1973 = vsel %vm970, %v1968, %v1972
        %v1974 = vld [vmem:[%s447] sm:$0xe]
        %v1975 = vld [vmem:[%s447 + $0xc] sm:$0xe]
        %v1976 = vld [vmem:[%s447 + $0x18] sm:$0xe]
        %v1977 = vld [vmem:[%s447 + $0x24] sm:$0xe]
        %v1978 = vld [vmem:[%s447 + $0x30] sm:$0xe]
        %v1979 = vld [vmem:[%s447 + $0x3c] sm:$0xe]
        %v1980 = vld [vmem:[%s447 + $0x48] sm:$0xe]
        %v1981 = vld [vmem:[%s447 + $0x54] sm:$0xe]
        %v2006 = vrot.slane %v1974, 5
        %v2007 = vrot.slane %v2006, 4
        %v2008 = vrot.slane %v1543, 5
        %v2009 = vsel %vm1397, %v2007, %v2008
        %v2010 = vrot.slane %v2008, 4
        %v2011 = vrot.slane %v1574, 5
        %v2012 = vsel %vm1397, %v2010, %v2011
        %v2013 = vrot.slane %v1975, 5
        %v2014 = vrot.slane %v2013, 4
        %v2015 = vrot.slane %v1545, 5
        %v2016 = vsel %vm1397, %v2014, %v2015
        %v2017 = vrot.slane %v2015, 4
        %v2018 = vrot.slane %v1575, 5
        %v2019 = vsel %vm1397, %v2017, %v2018
        %v2020 = vrot.slane %v1976, 5
        %v2021 = vrot.slane %v2020, 4
        %v2022 = vrot.slane %v1547, 5
        %v2023 = vsel %vm1397, %v2021, %v2022
        %v2024 = vrot.slane %v2022, 4
        %v2025 = vrot.slane %v1576, 5
        %v2026 = vsel %vm1397, %v2024, %v2025
        %v2027 = vrot.slane %v1977, 5
        %v2028 = vrot.slane %v2027, 4
        %v2029 = vrot.slane %v1549, 5
        %v2030 = vsel %vm1397, %v2028, %v2029
        %v2031 = vrot.slane %v2029, 4
        %v2032 = vrot.slane %v1577, 5
        %v2033 = vsel %vm1397, %v2031, %v2032
        %v2034 = vrot.slane %v1978, 5
        %v2035 = vrot.slane %v2034, 4
        %v2036 = vrot.slane %v1551, 5
        %v2037 = vsel %vm1397, %v2035, %v2036
        %v2038 = vrot.slane %v2036, 4
        %v2039 = vrot.slane %v1578, 5
        %v2040 = vsel %vm1397, %v2038, %v2039
        %v2041 = vrot.slane %v1979, 5
        %v2042 = vrot.slane %v2041, 4
        %v2043 = vrot.slane %v1553, 5
        %v2044 = vsel %vm1397, %v2042, %v2043
        %v2045 = vrot.slane %v2043, 4
        %v2046 = vrot.slane %v1579, 5
        %v2047 = vsel %vm1397, %v2045, %v2046
        %v2048 = vrot.slane %v1980, 5
        %v2049 = vrot.slane %v2048, 4
        %v2050 = vrot.slane %v1555, 5
        %v2051 = vsel %vm1397, %v2049, %v2050
        %v2052 = vrot.slane %v2050, 4
        %v2053 = vrot.slane %v1580, 5
        %v2054 = vsel %vm1397, %v2052, %v2053
        %v2055 = vrot.slane %v1981, 5
        %v2056 = vrot.slane %v2055, 4
        %v2057 = vrot.slane %v1557, 5
        %v2058 = vsel %vm1397, %v2056, %v2057
        %v2059 = vrot.slane %v2057, 4
        %v2060 = vrot.slane %v1581, 5
        %v2061 = vsel %vm1397, %v2059, %v2060
        %v2062 = vld [vmem:[%s794] sm:$0xe]
        %v2063 = vld [vmem:[%s794 + $0xc] sm:$0xe]
        %v2064 = vld [vmem:[%s794 + $0x18] sm:$0xe]
        %v2065 = vld [vmem:[%s794 + $0x24] sm:$0xe]
        %v2066 = vld [vmem:[%s794 + $0x30] sm:$0xe]
        %v2067 = vld [vmem:[%s794 + $0x3c] sm:$0xe]
        %v2068 = vld [vmem:[%s794 + $0x48] sm:$0xe]
        %v2069 = vld [vmem:[%s794 + $0x54] sm:$0xe]
        %v2094 = vrot.slane %v2062, 5
        %v2095 = vrot.slane %v2094, 4
        %v2096 = vrot.slane %v1559, 5
        %v2097 = vsel %vm1397, %v2095, %v2096
        %v2098 = vrot.slane %v2096, 4
        %v2099 = vrot.slane %v1774, 5
        %v2100 = vsel %vm1397, %v2098, %v2099
        %v2101 = vrot.slane %v2063, 5
        %v2102 = vrot.slane %v2101, 4
        %v2103 = vrot.slane %v1561, 5
        %v2104 = vsel %vm1397, %v2102, %v2103
        %v2105 = vrot.slane %v2103, 4
        %v2106 = vrot.slane %v1775, 5
        %v2107 = vsel %vm1397, %v2105, %v2106
        %v2108 = vrot.slane %v2064, 5
        %v2109 = vrot.slane %v2108, 4
        %v2110 = vrot.slane %v1563, 5
        %v2111 = vsel %vm1397, %v2109, %v2110
        %v2112 = vrot.slane %v2110, 4
        %v2113 = vrot.slane %v1776, 5
        %v2114 = vsel %vm1397, %v2112, %v2113
        %v2115 = vrot.slane %v2065, 5
        %v2116 = vrot.slane %v2115, 4
        %v2117 = vrot.slane %v1565, 5
        %v2118 = vsel %vm1397, %v2116, %v2117
        %v2119 = vrot.slane %v2117, 4
        %v2120 = vrot.slane %v1777, 5
        %v2121 = vsel %vm1397, %v2119, %v2120
        %v2122 = vrot.slane %v2066, 5
        %v2123 = vrot.slane %v2122, 4
        %v2124 = vrot.slane %v1567, 5
        %v2125 = vsel %vm1397, %v2123, %v2124
        %v2126 = vrot.slane %v2124, 4
        %v2127 = vrot.slane %v1778, 5
        %v2128 = vsel %vm1397, %v2126, %v2127
        %v2129 = vrot.slane %v2067, 5
        %v2130 = vrot.slane %v2129, 4
        %v2131 = vrot.slane %v1569, 5
        %v2132 = vsel %vm1397, %v2130, %v2131
        %v2133 = vrot.slane %v2131, 4
        %v2134 = vrot.slane %v1779, 5
        %v2135 = vsel %vm1397, %v2133, %v2134
        %v2136 = vrot.slane %v2068, 5
        %v2137 = vrot.slane %v2136, 4
        %v2138 = vrot.slane %v1571, 5
        %v2139 = vsel %vm1397, %v2137, %v2138
        %v2140 = vrot.slane %v2138, 4
        %v2141 = vrot.slane %v1780, 5
        %v2142 = vsel %vm1397, %v2140, %v2141
        %v2143 = vrot.slane %v2069, 5
        %v2144 = vrot.slane %v2143, 4
        %v2145 = vrot.slane %v1573, 5
        %v2146 = vsel %vm1397, %v2144, %v2145
        %v2147 = vrot.slane %v2145, 4
        %v2148 = vrot.slane %v1781, 5
        %v2149 = vsel %vm1397, %v2147, %v2148
        %s2150 = scalar_lea.vmem [#allocation2], 24
        %v2151 = vld [vmem:[%s2150] sm:$0xf]
        %v2152 = vld [vmem:[%s2150 + $0x4] sm:$0xf]
        %v2153 = vld [vmem:[%s2150 + $0xc] sm:$0xf]
        %v2154 = vld [vmem:[%s2150 + $0x10] sm:$0xf]
        %v2155 = vld [vmem:[%s2150 + $0x18] sm:$0xf]
        %v2156 = vld [vmem:[%s2150 + $0x1c] sm:$0xf]
        %v2157 = vld [vmem:[%s2150 + $0x24] sm:$0xf]
        %v2158 = vld [vmem:[%s2150 + $0x28] sm:$0xf]
        %v2159 = vld [vmem:[%s2150 + $0x30] sm:$0xf]
        %v2160 = vld [vmem:[%s2150 + $0x34] sm:$0xf]
        %v2161 = vld [vmem:[%s2150 + $0x3c] sm:$0xf]
        %v2162 = vld [vmem:[%s2150 + $0x40] sm:$0xf]
        %v2163 = vld [vmem:[%s2150 + $0x48] sm:$0xf]
        %v2164 = vld [vmem:[%s2150 + $0x4c] sm:$0xf]
        %v2165 = vld [vmem:[%s2150 + $0x54] sm:$0xf]
        %v2166 = vld [vmem:[%s2150 + $0x58] sm:$0xf]
        %s2167 = scalar_lea.vmem [#allocation3], 24
        %v2168 = vld [vmem:[%s2167] sm:$0xf]
        %v2169 = vld [vmem:[%s2167 + $0x4] sm:$0xf]
        %v2170 = vld [vmem:[%s2167 + $0xc] sm:$0xf]
        %v2171 = vld [vmem:[%s2167 + $0x10] sm:$0xf]
        %v2172 = vld [vmem:[%s2167 + $0x18] sm:$0xf]
        %v2173 = vld [vmem:[%s2167 + $0x1c] sm:$0xf]
        %v2174 = vld [vmem:[%s2167 + $0x24] sm:$0xf]
        %v2175 = vld [vmem:[%s2167 + $0x28] sm:$0xf]
        %v2176 = vld [vmem:[%s2167 + $0x30] sm:$0xf]
        %v2177 = vld [vmem:[%s2167 + $0x34] sm:$0xf]
        %v2178 = vld [vmem:[%s2167 + $0x3c] sm:$0xf]
        %v2179 = vld [vmem:[%s2167 + $0x40] sm:$0xf]
        %v2180 = vld [vmem:[%s2167 + $0x48] sm:$0xf]
        %v2181 = vld [vmem:[%s2167 + $0x4c] sm:$0xf]
        %v2182 = vld [vmem:[%s2167 + $0x54] sm:$0xf]
        %v2183 = vld [vmem:[%s2167 + $0x58] sm:$0xf]
        %v2184 = vld [vmem:[%s2150 + $0x8] sm:$0x1]
        %v2185 = vld [vmem:[%s2150 + $0x14] sm:$0x1]
        %v2186 = vld [vmem:[%s2150 + $0x20] sm:$0x1]
        %v2187 = vld [vmem:[%s2150 + $0x2c] sm:$0x1]
        %v2188 = vld [vmem:[%s2150 + $0x38] sm:$0x1]
        %v2189 = vld [vmem:[%s2150 + $0x44] sm:$0x1]
        %v2190 = vld [vmem:[%s2150 + $0x50] sm:$0x1]
        %v2191 = vld [vmem:[%s2150 + $0x5c] sm:$0x1]
        %v2193 = vshrl.u32 %v2151, 16
        %v2195 = vrot.slane %v2193, 4
        %v2196 = vshll.u32 %v2151, 16
        %v2198 = vrot.slane %v2196, 5
        %v2199 = vor.u32 %v2195, %v2198
        %v2200 = vrot.slane %v2199, 4
        %v2202 = vshll.u32 %v2152, 16
        %v2204 = vrot.slane %v2202, 5
        %v2205 = vsel %vm970, %v2200, %v2204
        %v2206 = vshrl.u32 %v2152, 16
        %v2208 = vrot.slane %v2206, 4
        %v2209 = vor.u32 %v2208, %v2204
        %v2210 = vrot.slane %v2209, 4
        %v2212 = vshll.u32 %v2184, 16
        %v2214 = vrot.slane %v2212, 5
        %v2215 = vsel %vm970, %v2210, %v2214
        %v2217 = vshrl.u32 %v2153, 16
        %v2219 = vrot.slane %v2217, 4
        %v2220 = vshll.u32 %v2153, 16
        %v2222 = vrot.slane %v2220, 5
        %v2223 = vor.u32 %v2219, %v2222
        %v2224 = vrot.slane %v2223, 4
        %v2226 = vshll.u32 %v2154, 16
        %v2228 = vrot.slane %v2226, 5
        %v2229 = vsel %vm970, %v2224, %v2228
        %v2230 = vshrl.u32 %v2154, 16
        %v2232 = vrot.slane %v2230, 4
        %v2233 = vor.u32 %v2232, %v2228
        %v2234 = vrot.slane %v2233, 4
        %v2236 = vshll.u32 %v2185, 16
        %v2238 = vrot.slane %v2236, 5
        %v2239 = vsel %vm970, %v2234, %v2238
        %v2241 = vshrl.u32 %v2155, 16
        %v2243 = vrot.slane %v2241, 4
        %v2244 = vshll.u32 %v2155, 16
        %v2246 = vrot.slane %v2244, 5
        %v2247 = vor.u32 %v2243, %v2246
        %v2248 = vrot.slane %v2247, 4
        %v2250 = vshll.u32 %v2156, 16
        %v2252 = vrot.slane %v2250, 5
        %v2253 = vsel %vm970, %v2248, %v2252
        %v2254 = vshrl.u32 %v2156, 16
        %v2256 = vrot.slane %v2254, 4
        %v2257 = vor.u32 %v2256, %v2252
        %v2258 = vrot.slane %v2257, 4
        %v2260 = vshll.u32 %v2186, 16
        %v2262 = vrot.slane %v2260, 5
        %v2263 = vsel %vm970, %v2258, %v2262
        %v2265 = vshrl.u32 %v2157, 16
        %v2267 = vrot.slane %v2265, 4
        %v2268 = vshll.u32 %v2157, 16
        %v2270 = vrot.slane %v2268, 5
        %v2271 = vor.u32 %v2267, %v2270
        %v2272 = vrot.slane %v2271, 4
        %v2274 = vshll.u32 %v2158, 16
        %v2276 = vrot.slane %v2274, 5
        %v2277 = vsel %vm970, %v2272, %v2276
        %v2278 = vshrl.u32 %v2158, 16
        %v2280 = vrot.slane %v2278, 4
        %v2281 = vor.u32 %v2280, %v2276
        %v2282 = vrot.slane %v2281, 4
        %v2284 = vshll.u32 %v2187, 16
        %v2286 = vrot.slane %v2284, 5
        %v2287 = vsel %vm970, %v2282, %v2286
        %v2289 = vshrl.u32 %v2159, 16
        %v2291 = vrot.slane %v2289, 4
        %v2292 = vshll.u32 %v2159, 16
        %v2294 = vrot.slane %v2292, 5
        %v2295 = vor.u32 %v2291, %v2294
        %v2296 = vrot.slane %v2295, 4
        %v2298 = vshll.u32 %v2160, 16
        %v2300 = vrot.slane %v2298, 5
        %v2301 = vsel %vm970, %v2296, %v2300
        %v2302 = vshrl.u32 %v2160, 16
        %v2304 = vrot.slane %v2302, 4
        %v2305 = vor.u32 %v2304, %v2300
        %v2306 = vrot.slane %v2305, 4
        %v2308 = vshll.u32 %v2188, 16
        %v2310 = vrot.slane %v2308, 5
        %v2311 = vsel %vm970, %v2306, %v2310
        %v2313 = vshrl.u32 %v2161, 16
        %v2315 = vrot.slane %v2313, 4
        %v2316 = vshll.u32 %v2161, 16
        %v2318 = vrot.slane %v2316, 5
        %v2319 = vor.u32 %v2315, %v2318
        %v2320 = vrot.slane %v2319, 4
        %v2322 = vshll.u32 %v2162, 16
        %v2324 = vrot.slane %v2322, 5
        %v2325 = vsel %vm970, %v2320, %v2324
        %v2326 = vshrl.u32 %v2162, 16
        %v2328 = vrot.slane %v2326, 4
        %v2329 = vor.u32 %v2328, %v2324
        %v2330 = vrot.slane %v2329, 4
        %v2332 = vshll.u32 %v2189, 16
        %v2334 = vrot.slane %v2332, 5
        %v2335 = vsel %vm970, %v2330, %v2334
        %v2337 = vshrl.u32 %v2163, 16
        %v2339 = vrot.slane %v2337, 4
        %v2340 = vshll.u32 %v2163, 16
        %v2342 = vrot.slane %v2340, 5
        %v2343 = vor.u32 %v2339, %v2342
        %v2344 = vrot.slane %v2343, 4
        %v2346 = vshll.u32 %v2164, 16
        %v2348 = vrot.slane %v2346, 5
        %v2349 = vsel %vm970, %v2344, %v2348
        %v2350 = vshrl.u32 %v2164, 16
        %v2352 = vrot.slane %v2350, 4
        %v2353 = vor.u32 %v2352, %v2348
        %v2354 = vrot.slane %v2353, 4
        %v2356 = vshll.u32 %v2190, 16
        %v2358 = vrot.slane %v2356, 5
        %v2359 = vsel %vm970, %v2354, %v2358
        %v2361 = vshrl.u32 %v2165, 16
        %v2363 = vrot.slane %v2361, 4
        %v2364 = vshll.u32 %v2165, 16
        %v2366 = vrot.slane %v2364, 5
        %v2367 = vor.u32 %v2363, %v2366
        %v2368 = vrot.slane %v2367, 4
        %v2370 = vshll.u32 %v2166, 16
        %v2372 = vrot.slane %v2370, 5
        %v2373 = vsel %vm970, %v2368, %v2372
        %v2374 = vshrl.u32 %v2166, 16
        %v2376 = vrot.slane %v2374, 4
        %v2377 = vor.u32 %v2376, %v2372
        %v2378 = vrot.slane %v2377, 4
        %v2380 = vshll.u32 %v2191, 16
        %v2382 = vrot.slane %v2380, 5
        %v2383 = vsel %vm970, %v2378, %v2382
        %v2384 = vld [vmem:[%s2167 + $0x8] sm:$0x1]
        %v2385 = vld [vmem:[%s2167 + $0x14] sm:$0x1]
        %v2386 = vld [vmem:[%s2167 + $0x20] sm:$0x1]
        %v2387 = vld [vmem:[%s2167 + $0x2c] sm:$0x1]
        %v2388 = vld [vmem:[%s2167 + $0x38] sm:$0x1]
        %v2389 = vld [vmem:[%s2167 + $0x44] sm:$0x1]
        %v2390 = vld [vmem:[%s2167 + $0x50] sm:$0x1]
        %v2391 = vld [vmem:[%s2167 + $0x5c] sm:$0x1]
        %v2393 = vshrl.u32 %v2168, 16
        %v2395 = vrot.slane %v2393, 4
        %v2396 = vshll.u32 %v2168, 16
        %v2398 = vrot.slane %v2396, 5
        %v2399 = vor.u32 %v2395, %v2398
        %v2400 = vrot.slane %v2399, 4
        %v2402 = vshll.u32 %v2169, 16
        %v2404 = vrot.slane %v2402, 5
        %v2405 = vsel %vm970, %v2400, %v2404
        %v2406 = vshrl.u32 %v2169, 16
        %v2408 = vrot.slane %v2406, 4
        %v2409 = vor.u32 %v2408, %v2404
        %v2410 = vrot.slane %v2409, 4
        %v2412 = vshll.u32 %v2384, 16
        %v2414 = vrot.slane %v2412, 5
        %v2415 = vsel %vm970, %v2410, %v2414
        %v2417 = vshrl.u32 %v2170, 16
        %v2419 = vrot.slane %v2417, 4
        %v2420 = vshll.u32 %v2170, 16
        %v2422 = vrot.slane %v2420, 5
        %v2423 = vor.u32 %v2419, %v2422
        %v2424 = vrot.slane %v2423, 4
        %v2426 = vshll.u32 %v2171, 16
        %v2428 = vrot.slane %v2426, 5
        %v2429 = vsel %vm970, %v2424, %v2428
        %v2430 = vshrl.u32 %v2171, 16
        %v2432 = vrot.slane %v2430, 4
        %v2433 = vor.u32 %v2432, %v2428
        %v2434 = vrot.slane %v2433, 4
        %v2436 = vshll.u32 %v2385, 16
        %v2438 = vrot.slane %v2436, 5
        %v2439 = vsel %vm970, %v2434, %v2438
        %v2441 = vshrl.u32 %v2172, 16
        %v2443 = vrot.slane %v2441, 4
        %v2444 = vshll.u32 %v2172, 16
        %v2446 = vrot.slane %v2444, 5
        %v2447 = vor.u32 %v2443, %v2446
        %v2448 = vrot.slane %v2447, 4
        %v2450 = vshll.u32 %v2173, 16
        %v2452 = vrot.slane %v2450, 5
        %v2453 = vsel %vm970, %v2448, %v2452
        %v2454 = vshrl.u32 %v2173, 16
        %v2456 = vrot.slane %v2454, 4
        %v2457 = vor.u32 %v2456, %v2452
        %v2458 = vrot.slane %v2457, 4
        %v2460 = vshll.u32 %v2386, 16
        %v2462 = vrot.slane %v2460, 5
        %v2463 = vsel %vm970, %v2458, %v2462
        %v2465 = vshrl.u32 %v2174, 16
        %v2467 = vrot.slane %v2465, 4
        %v2468 = vshll.u32 %v2174, 16
        %v2470 = vrot.slane %v2468, 5
        %v2471 = vor.u32 %v2467, %v2470
        %v2472 = vrot.slane %v2471, 4
        %v2474 = vshll.u32 %v2175, 16
        %v2476 = vrot.slane %v2474, 5
        %v2477 = vsel %vm970, %v2472, %v2476
        %v2478 = vshrl.u32 %v2175, 16
        %v2480 = vrot.slane %v2478, 4
        %v2481 = vor.u32 %v2480, %v2476
        %v2482 = vrot.slane %v2481, 4
        %v2484 = vshll.u32 %v2387, 16
        %v2486 = vrot.slane %v2484, 5
        %v2487 = vsel %vm970, %v2482, %v2486
        %v2489 = vshrl.u32 %v2176, 16
        %v2491 = vrot.slane %v2489, 4
        %v2492 = vshll.u32 %v2176, 16
        %v2494 = vrot.slane %v2492, 5
        %v2495 = vor.u32 %v2491, %v2494
        %v2496 = vrot.slane %v2495, 4
        %v2498 = vshll.u32 %v2177, 16
        %v2500 = vrot.slane %v2498, 5
        %v2501 = vsel %vm970, %v2496, %v2500
        %v2502 = vshrl.u32 %v2177, 16
        %v2504 = vrot.slane %v2502, 4
        %v2505 = vor.u32 %v2504, %v2500
        %v2506 = vrot.slane %v2505, 4
        %v2508 = vshll.u32 %v2388, 16
        %v2510 = vrot.slane %v2508, 5
        %v2511 = vsel %vm970, %v2506, %v2510
        %v2513 = vshrl.u32 %v2178, 16
        %v2515 = vrot.slane %v2513, 4
        %v2516 = vshll.u32 %v2178, 16
        %v2518 = vrot.slane %v2516, 5
        %v2519 = vor.u32 %v2515, %v2518
        %v2520 = vrot.slane %v2519, 4
        %v2522 = vshll.u32 %v2179, 16
        %v2524 = vrot.slane %v2522, 5
        %v2525 = vsel %vm970, %v2520, %v2524
        %v2526 = vshrl.u32 %v2179, 16
        %v2528 = vrot.slane %v2526, 4
        %v2529 = vor.u32 %v2528, %v2524
        %v2530 = vrot.slane %v2529, 4
        %v2532 = vshll.u32 %v2389, 16
        %v2534 = vrot.slane %v2532, 5
        %v2535 = vsel %vm970, %v2530, %v2534
        %v2537 = vshrl.u32 %v2180, 16
        %v2539 = vrot.slane %v2537, 4
        %v2540 = vshll.u32 %v2180, 16
        %v2542 = vrot.slane %v2540, 5
        %v2543 = vor.u32 %v2539, %v2542
        %v2544 = vrot.slane %v2543, 4
        %v2546 = vshll.u32 %v2181, 16
        %v2548 = vrot.slane %v2546, 5
        %v2549 = vsel %vm970, %v2544, %v2548
        %v2550 = vshrl.u32 %v2181, 16
        %v2552 = vrot.slane %v2550, 4
        %v2553 = vor.u32 %v2552, %v2548
        %v2554 = vrot.slane %v2553, 4
        %v2556 = vshll.u32 %v2390, 16
        %v2558 = vrot.slane %v2556, 5
        %v2559 = vsel %vm970, %v2554, %v2558
        %v2561 = vshrl.u32 %v2182, 16
        %v2563 = vrot.slane %v2561, 4
        %v2564 = vshll.u32 %v2182, 16
        %v2566 = vrot.slane %v2564, 5
        %v2567 = vor.u32 %v2563, %v2566
        %v2568 = vrot.slane %v2567, 4
        %v2570 = vshll.u32 %v2183, 16
        %v2572 = vrot.slane %v2570, 5
        %v2573 = vsel %vm970, %v2568, %v2572
        %v2574 = vshrl.u32 %v2183, 16
        %v2576 = vrot.slane %v2574, 4
        %v2577 = vor.u32 %v2576, %v2572
        %v2578 = vrot.slane %v2577, 4
        %v2580 = vshll.u32 %v2391, 16
        %v2582 = vrot.slane %v2580, 5
        %v2583 = vsel %vm970, %v2578, %v2582
        %v2584 = vld [vmem:[%s2150] sm:$0xe]
        %v2585 = vld [vmem:[%s2150 + $0xc] sm:$0xe]
        %v2586 = vld [vmem:[%s2150 + $0x18] sm:$0xe]
        %v2587 = vld [vmem:[%s2150 + $0x24] sm:$0xe]
        %v2588 = vld [vmem:[%s2150 + $0x30] sm:$0xe]
        %v2589 = vld [vmem:[%s2150 + $0x3c] sm:$0xe]
        %v2590 = vld [vmem:[%s2150 + $0x48] sm:$0xe]
        %v2591 = vld [vmem:[%s2150 + $0x54] sm:$0xe]
        %v2616 = vrot.slane %v2584, 5
        %v2617 = vrot.slane %v2616, 4
        %v2618 = vrot.slane %v2152, 5
        %v2619 = vsel %vm1397, %v2617, %v2618
        %v2620 = vrot.slane %v2618, 4
        %v2621 = vrot.slane %v2184, 5
        %v2622 = vsel %vm1397, %v2620, %v2621
        %v2623 = vrot.slane %v2585, 5
        %v2624 = vrot.slane %v2623, 4
        %v2625 = vrot.slane %v2154, 5
        %v2626 = vsel %vm1397, %v2624, %v2625
        %v2627 = vrot.slane %v2625, 4
        %v2628 = vrot.slane %v2185, 5
        %v2629 = vsel %vm1397, %v2627, %v2628
        %v2630 = vrot.slane %v2586, 5
        %v2631 = vrot.slane %v2630, 4
        %v2632 = vrot.slane %v2156, 5
        %v2633 = vsel %vm1397, %v2631, %v2632
        %v2634 = vrot.slane %v2632, 4
        %v2635 = vrot.slane %v2186, 5
        %v2636 = vsel %vm1397, %v2634, %v2635
        %v2637 = vrot.slane %v2587, 5
        %v2638 = vrot.slane %v2637, 4
        %v2639 = vrot.slane %v2158, 5
        %v2640 = vsel %vm1397, %v2638, %v2639
        %v2641 = vrot.slane %v2639, 4
        %v2642 = vrot.slane %v2187, 5
        %v2643 = vsel %vm1397, %v2641, %v2642
        %v2644 = vrot.slane %v2588, 5
        %v2645 = vrot.slane %v2644, 4
        %v2646 = vrot.slane %v2160, 5
        %v2647 = vsel %vm1397, %v2645, %v2646
        %v2648 = vrot.slane %v2646, 4
        %v2649 = vrot.slane %v2188, 5
        %v2650 = vsel %vm1397, %v2648, %v2649
        %v2651 = vrot.slane %v2589, 5
        %v2652 = vrot.slane %v2651, 4
        %v2653 = vrot.slane %v2162, 5
        %v2654 = vsel %vm1397, %v2652, %v2653
        %v2655 = vrot.slane %v2653, 4
        %v2656 = vrot.slane %v2189, 5
        %v2657 = vsel %vm1397, %v2655, %v2656
        %v2658 = vrot.slane %v2590, 5
        %v2659 = vrot.slane %v2658, 4
        %v2660 = vrot.slane %v2164, 5
        %v2661 = vsel %vm1397, %v2659, %v2660
        %v2662 = vrot.slane %v2660, 4
        %v2663 = vrot.slane %v2190, 5
        %v2664 = vsel %vm1397, %v2662, %v2663
        %v2665 = vrot.slane %v2591, 5
        %v2666 = vrot.slane %v2665, 4
        %v2667 = vrot.slane %v2166, 5
        %v2668 = vsel %vm1397, %v2666, %v2667
        %v2669 = vrot.slane %v2667, 4
        %v2670 = vrot.slane %v2191, 5
        %v2671 = vsel %vm1397, %v2669, %v2670
        %v2672 = vld [vmem:[%s2167] sm:$0xe]
        %v2673 = vld [vmem:[%s2167 + $0xc] sm:$0xe]
        %v2674 = vld [vmem:[%s2167 + $0x18] sm:$0xe]
        %v2675 = vld [vmem:[%s2167 + $0x24] sm:$0xe]
        %v2676 = vld [vmem:[%s2167 + $0x30] sm:$0xe]
        %v2677 = vld [vmem:[%s2167 + $0x3c] sm:$0xe]
        %v2678 = vld [vmem:[%s2167 + $0x48] sm:$0xe]
        %v2679 = vld [vmem:[%s2167 + $0x54] sm:$0xe]
        %v2704 = vrot.slane %v2672, 5
        %v2705 = vrot.slane %v2704, 4
        %v2706 = vrot.slane %v2169, 5
        %v2707 = vsel %vm1397, %v2705, %v2706
        %v2708 = vrot.slane %v2706, 4
        %v2709 = vrot.slane %v2384, 5
        %v2710 = vsel %vm1397, %v2708, %v2709
        %v2711 = vrot.slane %v2673, 5
        %v2712 = vrot.slane %v2711, 4
        %v2713 = vrot.slane %v2171, 5
        %v2714 = vsel %vm1397, %v2712, %v2713
        %v2715 = vrot.slane %v2713, 4
        %v2716 = vrot.slane %v2385, 5
        %v2717 = vsel %vm1397, %v2715, %v2716
        %v2718 = vrot.slane %v2674, 5
        %v2719 = vrot.slane %v2718, 4
        %v2720 = vrot.slane %v2173, 5
        %v2721 = vsel %vm1397, %v2719, %v2720
        %v2722 = vrot.slane %v2720, 4
        %v2723 = vrot.slane %v2386, 5
        %v2724 = vsel %vm1397, %v2722, %v2723
        %v2725 = vrot.slane %v2675, 5
        %v2726 = vrot.slane %v2725, 4
        %v2727 = vrot.slane %v2175, 5
        %v2728 = vsel %vm1397, %v2726, %v2727
        %v2729 = vrot.slane %v2727, 4
        %v2730 = vrot.slane %v2387, 5
        %v2731 = vsel %vm1397, %v2729, %v2730
        %v2732 = vrot.slane %v2676, 5
        %v2733 = vrot.slane %v2732, 4
        %v2734 = vrot.slane %v2177, 5
        %v2735 = vsel %vm1397, %v2733, %v2734
        %v2736 = vrot.slane %v2734, 4
        %v2737 = vrot.slane %v2388, 5
        %v2738 = vsel %vm1397, %v2736, %v2737
        %v2739 = vrot.slane %v2677, 5
        %v2740 = vrot.slane %v2739, 4
        %v2741 = vrot.slane %v2179, 5
        %v2742 = vsel %vm1397, %v2740, %v2741
        %v2743 = vrot.slane %v2741, 4
        %v2744 = vrot.slane %v2389, 5
        %v2745 = vsel %vm1397, %v2743, %v2744
        %v2746 = vrot.slane %v2678, 5
        %v2747 = vrot.slane %v2746, 4
        %v2748 = vrot.slane %v2181, 5
        %v2749 = vsel %vm1397, %v2747, %v2748
        %v2750 = vrot.slane %v2748, 4
        %v2751 = vrot.slane %v2390, 5
        %v2752 = vsel %vm1397, %v2750, %v2751
        %v2753 = vrot.slane %v2679, 5
        %v2754 = vrot.slane %v2753, 4
        %v2755 = vrot.slane %v2183, 5
        %v2756 = vsel %vm1397, %v2754, %v2755
        %v2757 = vrot.slane %v2755, 4
        %v2758 = vrot.slane %v2391, 5
        %v2759 = vsel %vm1397, %v2757, %v2758
        %v2768 = vunpack.c.l.b16 %v928
        %v2769 = vunpack.c.l.b16 %v929
        %v2770 = vunpack.c.l.b16 %v930
        %v2771 = vunpack.c.l.b16 %v931
        %v2772 = vunpack.c.l.b16 %v932
        %v2773 = vunpack.c.l.b16 %v933
        %v2774 = vunpack.c.l.b16 %v934
        %v2775 = vunpack.c.l.b16 %v935
        %v2776 = vunpack.c.l.b16 %v936
        %v2777 = vunpack.c.l.b16 %v937
        %v2778 = vunpack.c.l.b16 %v938
        %v2779 = vunpack.c.l.b16 %v939
        %v2780 = vunpack.c.l.b16 %v940
        %v2781 = vunpack.c.l.b16 %v941
        %v2782 = vunpack.c.l.b16 %v942
        %v2783 = vunpack.c.l.b16 %v943
        %v2784 = vpack.c.b16 %v2769, %v2768
        %v2785 = vpack.c.b16 %v2771, %v2770
        %v2786 = vpack.c.b16 %v2773, %v2772
        %v2787 = vpack.c.b16 %v2775, %v2774
        %v2788 = vpack.c.b16 %v2777, %v2776
        %v2789 = vpack.c.b16 %v2779, %v2778
        %v2790 = vpack.c.b16 %v2781, %v2780
        %v2791 = vpack.c.b16 %v2783, %v2782
        %v2800 = vunpack.c.l.b16 %v944
        %v2801 = vunpack.c.l.b16 %v945
        %v2802 = vunpack.c.l.b16 %v946
        %v2803 = vunpack.c.l.b16 %v947
        %v2804 = vunpack.c.l.b16 %v948
        %v2805 = vunpack.c.l.b16 %v949
        %v2806 = vunpack.c.l.b16 %v950
        %v2807 = vunpack.c.l.b16 %v951
        %v2808 = vunpack.c.l.b16 %v952
        %v2809 = vunpack.c.l.b16 %v953
        %v2810 = vunpack.c.l.b16 %v954
        %v2811 = vunpack.c.l.b16 %v955
        %v2812 = vunpack.c.l.b16 %v956
        %v2813 = vunpack.c.l.b16 %v957
        %v2814 = vunpack.c.l.b16 %v958
        %v2815 = vunpack.c.l.b16 %v959
        %v2816 = vpack.c.b16 %v2801, %v2800
        %v2817 = vpack.c.b16 %v2803, %v2802
        %v2818 = vpack.c.b16 %v2805, %v2804
        %v2819 = vpack.c.b16 %v2807, %v2806
        %v2820 = vpack.c.b16 %v2809, %v2808
        %v2821 = vpack.c.b16 %v2811, %v2810
        %v2822 = vpack.c.b16 %v2813, %v2812
        %v2823 = vpack.c.b16 %v2815, %v2814
        %2824 = vrot.lane.b32.xlu0 %v2816, 8
        %v2825 = vpop.permute.xlu0 %2824
        %2826 = vrot.lane.b32.xlu0 %v2817, 8
        %v2827 = vpop.permute.xlu0 %2826
        %2828 = vrot.lane.b32.xlu0 %v2818, 8
        %v2829 = vpop.permute.xlu0 %2828
        %2830 = vrot.lane.b32.xlu0 %v2819, 8
        %v2831 = vpop.permute.xlu0 %2830
        %2832 = vrot.lane.b32.xlu0 %v2820, 8
        %v2833 = vpop.permute.xlu0 %2832
        %2834 = vrot.lane.b32.xlu0 %v2821, 8
        %v2835 = vpop.permute.xlu0 %2834
        %2836 = vrot.lane.b32.xlu0 %v2822, 8
        %v2837 = vpop.permute.xlu0 %2836
        %2838 = vrot.lane.b32.xlu0 %v2823, 8
        %v2839 = vpop.permute.xlu0 %2838
        %v2840 = vunpack.c.l.b16 %v984
        %v2841 = vunpack.c.l.b16 %v994
        %v2842 = vunpack.c.l.b16 %v1008
        %v2843 = vunpack.c.l.b16 %v1018
        %v2844 = vunpack.c.l.b16 %v1032
        %v2845 = vunpack.c.l.b16 %v1042
        %v2846 = vunpack.c.l.b16 %v1056
        %v2847 = vunpack.c.l.b16 %v1066
        %v2848 = vunpack.c.l.b16 %v1080
        %v2849 = vunpack.c.l.b16 %v1090
        %v2850 = vunpack.c.l.b16 %v1104
        %v2851 = vunpack.c.l.b16 %v1114
        %v2852 = vunpack.c.l.b16 %v1128
        %v2853 = vunpack.c.l.b16 %v1138
        %v2854 = vunpack.c.l.b16 %v1152
        %v2855 = vunpack.c.l.b16 %v1162
        %v2856 = vpack.c.b16 %v2841, %v2840
        %v2857 = vpack.c.b16 %v2843, %v2842
        %v2858 = vpack.c.b16 %v2845, %v2844
        %v2859 = vpack.c.b16 %v2847, %v2846
        %v2860 = vpack.c.b16 %v2849, %v2848
        %v2861 = vpack.c.b16 %v2851, %v2850
        %v2862 = vpack.c.b16 %v2853, %v2852
        %v2863 = vpack.c.b16 %v2855, %v2854
        %2864 = vrot.lane.b32.xlu0 %v2856, 24
        %v2865 = vpop.permute.xlu0 %2864
        %2866 = vrot.lane.b32.xlu0 %v2857, 24
        %v2867 = vpop.permute.xlu0 %2866
        %2868 = vrot.lane.b32.xlu0 %v2858, 24
        %v2869 = vpop.permute.xlu0 %2868
        %2870 = vrot.lane.b32.xlu0 %v2859, 24
        %v2871 = vpop.permute.xlu0 %2870
        %2872 = vrot.lane.b32.xlu0 %v2860, 24
        %v2873 = vpop.permute.xlu0 %2872
        %2874 = vrot.lane.b32.xlu0 %v2861, 24
        %v2875 = vpop.permute.xlu0 %2874
        %2876 = vrot.lane.b32.xlu0 %v2862, 24
        %v2877 = vpop.permute.xlu0 %2876
        %2878 = vrot.lane.b32.xlu0 %v2863, 24
        %v2879 = vpop.permute.xlu0 %2878
        %v2880 = vunpack.c.l.b16 %v1184
        %v2881 = vunpack.c.l.b16 %v1194
        %v2882 = vunpack.c.l.b16 %v1208
        %v2883 = vunpack.c.l.b16 %v1218
        %v2884 = vunpack.c.l.b16 %v1232
        %v2885 = vunpack.c.l.b16 %v1242
        %v2886 = vunpack.c.l.b16 %v1256
        %v2887 = vunpack.c.l.b16 %v1266
        %v2888 = vunpack.c.l.b16 %v1280
        %v2889 = vunpack.c.l.b16 %v1290
        %v2890 = vunpack.c.l.b16 %v1304
        %v2891 = vunpack.c.l.b16 %v1314
        %v2892 = vunpack.c.l.b16 %v1328
        %v2893 = vunpack.c.l.b16 %v1338
        %v2894 = vunpack.c.l.b16 %v1352
        %v2895 = vunpack.c.l.b16 %v1362
        %v2896 = vpack.c.b16 %v2881, %v2880
        %v2897 = vpack.c.b16 %v2883, %v2882
        %v2898 = vpack.c.b16 %v2885, %v2884
        %v2899 = vpack.c.b16 %v2887, %v2886
        %v2900 = vpack.c.b16 %v2889, %v2888
        %v2901 = vpack.c.b16 %v2891, %v2890
        %v2902 = vpack.c.b16 %v2893, %v2892
        %v2903 = vpack.c.b16 %v2895, %v2894
        %2904 = vrot.lane.b32.xlu0 %v2896, 32
        %v2905 = vpop.permute.xlu0 %2904
        %2906 = vrot.lane.b32.xlu0 %v2897, 32
        %v2907 = vpop.permute.xlu0 %2906
        %2908 = vrot.lane.b32.xlu0 %v2898, 32
        %v2909 = vpop.permute.xlu0 %2908
        %2910 = vrot.lane.b32.xlu0 %v2899, 32
        %v2911 = vpop.permute.xlu0 %2910
        %2912 = vrot.lane.b32.xlu0 %v2900, 32
        %v2913 = vpop.permute.xlu0 %2912
        %2914 = vrot.lane.b32.xlu0 %v2901, 32
        %v2915 = vpop.permute.xlu0 %2914
        %2916 = vrot.lane.b32.xlu0 %v2902, 32
        %v2917 = vpop.permute.xlu0 %2916
        %2918 = vrot.lane.b32.xlu0 %v2903, 32
        %v2919 = vpop.permute.xlu0 %2918
        %v2920 = vunpack.c.l.b16 %v1401
        %v2921 = vunpack.c.l.b16 %v1404
        %v2922 = vunpack.c.l.b16 %v1408
        %v2923 = vunpack.c.l.b16 %v1411
        %v2924 = vunpack.c.l.b16 %v1415
        %v2925 = vunpack.c.l.b16 %v1418
        %v2926 = vunpack.c.l.b16 %v1422
        %v2927 = vunpack.c.l.b16 %v1425
        %v2928 = vunpack.c.l.b16 %v1429
        %v2929 = vunpack.c.l.b16 %v1432
        %v2930 = vunpack.c.l.b16 %v1436
        %v2931 = vunpack.c.l.b16 %v1439
        %v2932 = vunpack.c.l.b16 %v1443
        %v2933 = vunpack.c.l.b16 %v1446
        %v2934 = vunpack.c.l.b16 %v1450
        %v2935 = vunpack.c.l.b16 %v1453
        %v2936 = vpack.c.b16 %v2921, %v2920
        %v2937 = vpack.c.b16 %v2923, %v2922
        %v2938 = vpack.c.b16 %v2925, %v2924
        %v2939 = vpack.c.b16 %v2927, %v2926
        %v2940 = vpack.c.b16 %v2929, %v2928
        %v2941 = vpack.c.b16 %v2931, %v2930
        %v2942 = vpack.c.b16 %v2933, %v2932
        %v2943 = vpack.c.b16 %v2935, %v2934
        %2944 = vrot.lane.b32.xlu0 %v2936, 48
        %v2945 = vpop.permute.xlu0 %2944
        %2946 = vrot.lane.b32.xlu0 %v2937, 48
        %v2947 = vpop.permute.xlu0 %2946
        %2948 = vrot.lane.b32.xlu0 %v2938, 48
        %v2949 = vpop.permute.xlu0 %2948
        %2950 = vrot.lane.b32.xlu0 %v2939, 48
        %v2951 = vpop.permute.xlu0 %2950
        %2952 = vrot.lane.b32.xlu0 %v2940, 48
        %v2953 = vpop.permute.xlu0 %2952
        %2954 = vrot.lane.b32.xlu0 %v2941, 48
        %v2955 = vpop.permute.xlu0 %2954
        %2956 = vrot.lane.b32.xlu0 %v2942, 48
        %v2957 = vpop.permute.xlu0 %2956
        %2958 = vrot.lane.b32.xlu0 %v2943, 48
        %v2959 = vpop.permute.xlu0 %2958
        %v2960 = vunpack.c.l.b16 %v1489
        %v2961 = vunpack.c.l.b16 %v1492
        %v2962 = vunpack.c.l.b16 %v1496
        %v2963 = vunpack.c.l.b16 %v1499
        %v2964 = vunpack.c.l.b16 %v1503
        %v2965 = vunpack.c.l.b16 %v1506
        %v2966 = vunpack.c.l.b16 %v1510
        %v2967 = vunpack.c.l.b16 %v1513
        %v2968 = vunpack.c.l.b16 %v1517
        %v2969 = vunpack.c.l.b16 %v1520
        %v2970 = vunpack.c.l.b16 %v1524
        %v2971 = vunpack.c.l.b16 %v1527
        %v2972 = vunpack.c.l.b16 %v1531
        %v2973 = vunpack.c.l.b16 %v1534
        %v2974 = vunpack.c.l.b16 %v1538
        %v2975 = vunpack.c.l.b16 %v1541
        %v2976 = vpack.c.b16 %v2961, %v2960
        %v2977 = vpack.c.b16 %v2963, %v2962
        %v2978 = vpack.c.b16 %v2965, %v2964
        %v2979 = vpack.c.b16 %v2967, %v2966
        %v2980 = vpack.c.b16 %v2969, %v2968
        %v2981 = vpack.c.b16 %v2971, %v2970
        %v2982 = vpack.c.b16 %v2973, %v2972
        %v2983 = vpack.c.b16 %v2975, %v2974
        %2984 = vrot.lane.b32.xlu0 %v2976, 56
        %v2985 = vpop.permute.xlu0 %2984
        %2986 = vrot.lane.b32.xlu0 %v2977, 56
        %v2987 = vpop.permute.xlu0 %2986
        %2988 = vrot.lane.b32.xlu0 %v2978, 56
        %v2989 = vpop.permute.xlu0 %2988
        %2990 = vrot.lane.b32.xlu0 %v2979, 56
        %v2991 = vpop.permute.xlu0 %2990
        %2992 = vrot.lane.b32.xlu0 %v2980, 56
        %v2993 = vpop.permute.xlu0 %2992
        %2994 = vrot.lane.b32.xlu0 %v2981, 56
        %v2995 = vpop.permute.xlu0 %2994
        %2996 = vrot.lane.b32.xlu0 %v2982, 56
        %v2997 = vpop.permute.xlu0 %2996
        %2998 = vrot.lane.b32.xlu0 %v2983, 56
        %v2999 = vpop.permute.xlu0 %2998
        %v3008 = vunpack.c.l.b16 %v1542
        %v3009 = vunpack.c.l.b16 %v1543
        %v3010 = vunpack.c.l.b16 %v1544
        %v3011 = vunpack.c.l.b16 %v1545
        %v3012 = vunpack.c.l.b16 %v1546
        %v3013 = vunpack.c.l.b16 %v1547
        %v3014 = vunpack.c.l.b16 %v1548
        %v3015 = vunpack.c.l.b16 %v1549
        %v3016 = vunpack.c.l.b16 %v1550
        %v3017 = vunpack.c.l.b16 %v1551
        %v3018 = vunpack.c.l.b16 %v1552
        %v3019 = vunpack.c.l.b16 %v1553
        %v3020 = vunpack.c.l.b16 %v1554
        %v3021 = vunpack.c.l.b16 %v1555
        %v3022 = vunpack.c.l.b16 %v1556
        %v3023 = vunpack.c.l.b16 %v1557
        %v3024 = vpack.c.b16 %v3009, %v3008
        %v3025 = vpack.c.b16 %v3011, %v3010
        %v3026 = vpack.c.b16 %v3013, %v3012
        %v3027 = vpack.c.b16 %v3015, %v3014
        %v3028 = vpack.c.b16 %v3017, %v3016
        %v3029 = vpack.c.b16 %v3019, %v3018
        %v3030 = vpack.c.b16 %v3021, %v3020
        %v3031 = vpack.c.b16 %v3023, %v3022
        %3032 = vrot.lane.b32.xlu0 %v3024, 72
        %v3033 = vpop.permute.xlu0 %3032
        %3034 = vrot.lane.b32.xlu0 %v3025, 72
        %v3035 = vpop.permute.xlu0 %3034
        %3036 = vrot.lane.b32.xlu0 %v3026, 72
        %v3037 = vpop.permute.xlu0 %3036
        %3038 = vrot.lane.b32.xlu0 %v3027, 72
        %v3039 = vpop.permute.xlu0 %3038
        %3040 = vrot.lane.b32.xlu0 %v3028, 72
        %v3041 = vpop.permute.xlu0 %3040
        %3042 = vrot.lane.b32.xlu0 %v3029, 72
        %v3043 = vpop.permute.xlu0 %3042
        %3044 = vrot.lane.b32.xlu0 %v3030, 72
        %v3045 = vpop.permute.xlu0 %3044
        %3046 = vrot.lane.b32.xlu0 %v3031, 72
        %v3047 = vpop.permute.xlu0 %3046
        %v3056 = vunpack.c.l.b16 %v1558
        %v3057 = vunpack.c.l.b16 %v1559
        %v3058 = vunpack.c.l.b16 %v1560
        %v3059 = vunpack.c.l.b16 %v1561
        %v3060 = vunpack.c.l.b16 %v1562
        %v3061 = vunpack.c.l.b16 %v1563
        %v3062 = vunpack.c.l.b16 %v1564
        %v3063 = vunpack.c.l.b16 %v1565
        %v3064 = vunpack.c.l.b16 %v1566
        %v3065 = vunpack.c.l.b16 %v1567
        %v3066 = vunpack.c.l.b16 %v1568
        %v3067 = vunpack.c.l.b16 %v1569
        %v3068 = vunpack.c.l.b16 %v1570
        %v3069 = vunpack.c.l.b16 %v1571
        %v3070 = vunpack.c.l.b16 %v1572
        %v3071 = vunpack.c.l.b16 %v1573
        %v3072 = vpack.c.b16 %v3057, %v3056
        %v3073 = vpack.c.b16 %v3059, %v3058
        %v3074 = vpack.c.b16 %v3061, %v3060
        %v3075 = vpack.c.b16 %v3063, %v3062
        %v3076 = vpack.c.b16 %v3065, %v3064
        %v3077 = vpack.c.b16 %v3067, %v3066
        %v3078 = vpack.c.b16 %v3069, %v3068
        %v3079 = vpack.c.b16 %v3071, %v3070
        %3080 = vrot.lane.b32.xlu0 %v3072, 80
        %v3081 = vpop.permute.xlu0 %3080
        %3082 = vrot.lane.b32.xlu0 %v3073, 80
        %v3083 = vpop.permute.xlu0 %3082
        %3084 = vrot.lane.b32.xlu0 %v3074, 80
        %v3085 = vpop.permute.xlu0 %3084
        %3086 = vrot.lane.b32.xlu0 %v3075, 80
        %v3087 = vpop.permute.xlu0 %3086
        %3088 = vrot.lane.b32.xlu0 %v3076, 80
        %v3089 = vpop.permute.xlu0 %3088
        %3090 = vrot.lane.b32.xlu0 %v3077, 80
        %v3091 = vpop.permute.xlu0 %3090
        %3092 = vrot.lane.b32.xlu0 %v3078, 80
        %v3093 = vpop.permute.xlu0 %3092
        %3094 = vrot.lane.b32.xlu0 %v3079, 80
        %v3095 = vpop.permute.xlu0 %3094
        %v3096 = vunpack.c.l.b16 %v1595
        %v3097 = vunpack.c.l.b16 %v1605
        %v3098 = vunpack.c.l.b16 %v1619
        %v3099 = vunpack.c.l.b16 %v1629
        %v3100 = vunpack.c.l.b16 %v1643
        %v3101 = vunpack.c.l.b16 %v1653
        %v3102 = vunpack.c.l.b16 %v1667
        %v3103 = vunpack.c.l.b16 %v1677
        %v3104 = vunpack.c.l.b16 %v1691
        %v3105 = vunpack.c.l.b16 %v1701
        %v3106 = vunpack.c.l.b16 %v1715
        %v3107 = vunpack.c.l.b16 %v1725
        %v3108 = vunpack.c.l.b16 %v1739
        %v3109 = vunpack.c.l.b16 %v1749
        %v3110 = vunpack.c.l.b16 %v1763
        %v3111 = vunpack.c.l.b16 %v1773
        %v3112 = vpack.c.b16 %v3097, %v3096
        %v3113 = vpack.c.b16 %v3099, %v3098
        %v3114 = vpack.c.b16 %v3101, %v3100
        %v3115 = vpack.c.b16 %v3103, %v3102
        %v3116 = vpack.c.b16 %v3105, %v3104
        %v3117 = vpack.c.b16 %v3107, %v3106
        %v3118 = vpack.c.b16 %v3109, %v3108
        %v3119 = vpack.c.b16 %v3111, %v3110
        %3120 = vrot.lane.b32.xlu0 %v3112, 96
        %v3121 = vpop.permute.xlu0 %3120
        %3122 = vrot.lane.b32.xlu0 %v3113, 96
        %v3123 = vpop.permute.xlu0 %3122
        %3124 = vrot.lane.b32.xlu0 %v3114, 96
        %v3125 = vpop.permute.xlu0 %3124
        %3126 = vrot.lane.b32.xlu0 %v3115, 96
        %v3127 = vpop.permute.xlu0 %3126
        %3128 = vrot.lane.b32.xlu0 %v3116, 96
        %v3129 = vpop.permute.xlu0 %3128
        %3130 = vrot.lane.b32.xlu0 %v3117, 96
        %v3131 = vpop.permute.xlu0 %3130
        %3132 = vrot.lane.b32.xlu0 %v3118, 96
        %v3133 = vpop.permute.xlu0 %3132
        %3134 = vrot.lane.b32.xlu0 %v3119, 96
        %v3135 = vpop.permute.xlu0 %3134
        %v3136 = vunpack.c.l.b16 %v1795
        %v3137 = vunpack.c.l.b16 %v1805
        %v3138 = vunpack.c.l.b16 %v1819
        %v3139 = vunpack.c.l.b16 %v1829
        %v3140 = vunpack.c.l.b16 %v1843
        %v3141 = vunpack.c.l.b16 %v1853
        %v3142 = vunpack.c.l.b16 %v1867
        %v3143 = vunpack.c.l.b16 %v1877
        %v3144 = vunpack.c.l.b16 %v1891
        %v3145 = vunpack.c.l.b16 %v1901
        %v3146 = vunpack.c.l.b16 %v1915
        %v3147 = vunpack.c.l.b16 %v1925
        %v3148 = vunpack.c.l.b16 %v1939
        %v3149 = vunpack.c.l.b16 %v1949
        %v3150 = vunpack.c.l.b16 %v1963
        %v3151 = vunpack.c.l.b16 %v1973
        %v3152 = vpack.c.b16 %v3137, %v3136
        %v3153 = vpack.c.b16 %v3139, %v3138
        %v3154 = vpack.c.b16 %v3141, %v3140
        %v3155 = vpack.c.b16 %v3143, %v3142
        %v3156 = vpack.c.b16 %v3145, %v3144
        %v3157 = vpack.c.b16 %v3147, %v3146
        %v3158 = vpack.c.b16 %v3149, %v3148
        %v3159 = vpack.c.b16 %v3151, %v3150
        %3160 = vrot.lane.b32.xlu0 %v3152, 104
        %v3161 = vpop.permute.xlu0 %3160
        %3162 = vrot.lane.b32.xlu0 %v3153, 104
        %v3163 = vpop.permute.xlu0 %3162
        %3164 = vrot.lane.b32.xlu0 %v3154, 104
        %v3165 = vpop.permute.xlu0 %3164
        %3166 = vrot.lane.b32.xlu0 %v3155, 104
        %v3167 = vpop.permute.xlu0 %3166
        %3168 = vrot.lane.b32.xlu0 %v3156, 104
        %v3169 = vpop.permute.xlu0 %3168
        %3170 = vrot.lane.b32.xlu0 %v3157, 104
        %v3171 = vpop.permute.xlu0 %3170
        %3172 = vrot.lane.b32.xlu0 %v3158, 104
        %v3173 = vpop.permute.xlu0 %3172
        %3174 = vrot.lane.b32.xlu0 %v3159, 104
        %v3175 = vpop.permute.xlu0 %3174
        %v3176 = vunpack.c.l.b16 %v2009
        %v3177 = vunpack.c.l.b16 %v2012
        %v3178 = vunpack.c.l.b16 %v2016
        %v3179 = vunpack.c.l.b16 %v2019
        %v3180 = vunpack.c.l.b16 %v2023
        %v3181 = vunpack.c.l.b16 %v2026
        %v3182 = vunpack.c.l.b16 %v2030
        %v3183 = vunpack.c.l.b16 %v2033
        %v3184 = vunpack.c.l.b16 %v2037
        %v3185 = vunpack.c.l.b16 %v2040
        %v3186 = vunpack.c.l.b16 %v2044
        %v3187 = vunpack.c.l.b16 %v2047
        %v3188 = vunpack.c.l.b16 %v2051
        %v3189 = vunpack.c.l.b16 %v2054
        %v3190 = vunpack.c.l.b16 %v2058
        %v3191 = vunpack.c.l.b16 %v2061
        %v3192 = vpack.c.b16 %v3177, %v3176
        %v3193 = vpack.c.b16 %v3179, %v3178
        %v3194 = vpack.c.b16 %v3181, %v3180
        %v3195 = vpack.c.b16 %v3183, %v3182
        %v3196 = vpack.c.b16 %v3185, %v3184
        %v3197 = vpack.c.b16 %v3187, %v3186
        %v3198 = vpack.c.b16 %v3189, %v3188
        %v3199 = vpack.c.b16 %v3191, %v3190
        %3200 = vrot.lane.b32.xlu0 %v3192, 120
        %v3201 = vpop.permute.xlu0 %3200
        %3202 = vrot.lane.b32.xlu0 %v3193, 120
        %v3203 = vpop.permute.xlu0 %3202
        %3204 = vrot.lane.b32.xlu0 %v3194, 120
        %v3205 = vpop.permute.xlu0 %3204
        %3206 = vrot.lane.b32.xlu0 %v3195, 120
        %v3207 = vpop.permute.xlu0 %3206
        %3208 = vrot.lane.b32.xlu0 %v3196, 120
        %v3209 = vpop.permute.xlu0 %3208
        %3210 = vrot.lane.b32.xlu0 %v3197, 120
        %v3211 = vpop.permute.xlu0 %3210
        %3212 = vrot.lane.b32.xlu0 %v3198, 120
        %v3213 = vpop.permute.xlu0 %3212
        %3214 = vrot.lane.b32.xlu0 %v3199, 120
        %v3215 = vpop.permute.xlu0 %3214
        %v3216 = vunpack.c.l.b16 %v2097
        %v3217 = vunpack.c.l.b16 %v2100
        %v3218 = vunpack.c.l.b16 %v2104
        %v3219 = vunpack.c.l.b16 %v2107
        %v3220 = vunpack.c.l.b16 %v2111
        %v3221 = vunpack.c.l.b16 %v2114
        %v3222 = vunpack.c.l.b16 %v2118
        %v3223 = vunpack.c.l.b16 %v2121
        %v3224 = vunpack.c.l.b16 %v2125
        %v3225 = vunpack.c.l.b16 %v2128
        %v3226 = vunpack.c.l.b16 %v2132
        %v3227 = vunpack.c.l.b16 %v2135
        %v3228 = vunpack.c.l.b16 %v2139
        %v3229 = vunpack.c.l.b16 %v2142
        %v3230 = vunpack.c.l.b16 %v2146
        %v3231 = vunpack.c.l.b16 %v2149
        %v3232 = vpack.c.b16 %v3217, %v3216
        %v3233 = vpack.c.b16 %v3219, %v3218
        %v3234 = vpack.c.b16 %v3221, %v3220
        %v3235 = vpack.c.b16 %v3223, %v3222
        %v3236 = vpack.c.b16 %v3225, %v3224
        %v3237 = vpack.c.b16 %v3227, %v3226
        %v3238 = vpack.c.b16 %v3229, %v3228
        %v3239 = vpack.c.b16 %v3231, %v3230
        %v3248 = vunpack.c.l.b16 %v2151
        %v3249 = vunpack.c.l.b16 %v2152
        %v3250 = vunpack.c.l.b16 %v2153
        %v3251 = vunpack.c.l.b16 %v2154
        %v3252 = vunpack.c.l.b16 %v2155
        %v3253 = vunpack.c.l.b16 %v2156
        %v3254 = vunpack.c.l.b16 %v2157
        %v3255 = vunpack.c.l.b16 %v2158
        %v3256 = vunpack.c.l.b16 %v2159
        %v3257 = vunpack.c.l.b16 %v2160
        %v3258 = vunpack.c.l.b16 %v2161
        %v3259 = vunpack.c.l.b16 %v2162
        %v3260 = vunpack.c.l.b16 %v2163
        %v3261 = vunpack.c.l.b16 %v2164
        %v3262 = vunpack.c.l.b16 %v2165
        %v3263 = vunpack.c.l.b16 %v2166
        %v3264 = vpack.c.b16 %v3249, %v3248
        %v3265 = vpack.c.b16 %v3251, %v3250
        %v3266 = vpack.c.b16 %v3253, %v3252
        %v3267 = vpack.c.b16 %v3255, %v3254
        %v3268 = vpack.c.b16 %v3257, %v3256
        %v3269 = vpack.c.b16 %v3259, %v3258
        %v3270 = vpack.c.b16 %v3261, %v3260
        %v3271 = vpack.c.b16 %v3263, %v3262
        %3272 = vrot.lane.b32.xlu0 %v3264, 16
        %v3273 = vpop.permute.xlu0 %3272
        %3274 = vrot.lane.b32.xlu0 %v3265, 16
        %v3275 = vpop.permute.xlu0 %3274
        %3276 = vrot.lane.b32.xlu0 %v3266, 16
        %v3277 = vpop.permute.xlu0 %3276
        %3278 = vrot.lane.b32.xlu0 %v3267, 16
        %v3279 = vpop.permute.xlu0 %3278
        %3280 = vrot.lane.b32.xlu0 %v3268, 16
        %v3281 = vpop.permute.xlu0 %3280
        %3282 = vrot.lane.b32.xlu0 %v3269, 16
        %v3283 = vpop.permute.xlu0 %3282
        %3284 = vrot.lane.b32.xlu0 %v3270, 16
        %v3285 = vpop.permute.xlu0 %3284
        %3286 = vrot.lane.b32.xlu0 %v3271, 16
        %v3287 = vpop.permute.xlu0 %3286
        %v3296 = vunpack.c.l.b16 %v2168
        %v3297 = vunpack.c.l.b16 %v2169
        %v3298 = vunpack.c.l.b16 %v2170
        %v3299 = vunpack.c.l.b16 %v2171
        %v3300 = vunpack.c.l.b16 %v2172
        %v3301 = vunpack.c.l.b16 %v2173
        %v3302 = vunpack.c.l.b16 %v2174
        %v3303 = vunpack.c.l.b16 %v2175
        %v3304 = vunpack.c.l.b16 %v2176
        %v3305 = vunpack.c.l.b16 %v2177
        %v3306 = vunpack.c.l.b16 %v2178
        %v3307 = vunpack.c.l.b16 %v2179
        %v3308 = vunpack.c.l.b16 %v2180
        %v3309 = vunpack.c.l.b16 %v2181
        %v3310 = vunpack.c.l.b16 %v2182
        %v3311 = vunpack.c.l.b16 %v2183
        %v3312 = vpack.c.b16 %v3297, %v3296
        %v3313 = vpack.c.b16 %v3299, %v3298
        %v3314 = vpack.c.b16 %v3301, %v3300
        %v3315 = vpack.c.b16 %v3303, %v3302
        %v3316 = vpack.c.b16 %v3305, %v3304
        %v3317 = vpack.c.b16 %v3307, %v3306
        %v3318 = vpack.c.b16 %v3309, %v3308
        %v3319 = vpack.c.b16 %v3311, %v3310
        %3320 = vrot.lane.b32.xlu0 %v3312, 24
        %v3321 = vpop.permute.xlu0 %3320
        %3322 = vrot.lane.b32.xlu0 %v3313, 24
        %v3323 = vpop.permute.xlu0 %3322
        %3324 = vrot.lane.b32.xlu0 %v3314, 24
        %v3325 = vpop.permute.xlu0 %3324
        %3326 = vrot.lane.b32.xlu0 %v3315, 24
        %v3327 = vpop.permute.xlu0 %3326
        %3328 = vrot.lane.b32.xlu0 %v3316, 24
        %v3329 = vpop.permute.xlu0 %3328
        %3330 = vrot.lane.b32.xlu0 %v3317, 24
        %v3331 = vpop.permute.xlu0 %3330
        %3332 = vrot.lane.b32.xlu0 %v3318, 24
        %v3333 = vpop.permute.xlu0 %3332
        %3334 = vrot.lane.b32.xlu0 %v3319, 24
        %v3335 = vpop.permute.xlu0 %3334
        %v3336 = vunpack.c.l.b16 %v2205
        %v3337 = vunpack.c.l.b16 %v2215
        %v3338 = vunpack.c.l.b16 %v2229
        %v3339 = vunpack.c.l.b16 %v2239
        %v3340 = vunpack.c.l.b16 %v2253
        %v3341 = vunpack.c.l.b16 %v2263
        %v3342 = vunpack.c.l.b16 %v2277
        %v3343 = vunpack.c.l.b16 %v2287
        %v3344 = vunpack.c.l.b16 %v2301
        %v3345 = vunpack.c.l.b16 %v2311
        %v3346 = vunpack.c.l.b16 %v2325
        %v3347 = vunpack.c.l.b16 %v2335
        %v3348 = vunpack.c.l.b16 %v2349
        %v3349 = vunpack.c.l.b16 %v2359
        %v3350 = vunpack.c.l.b16 %v2373
        %v3351 = vunpack.c.l.b16 %v2383
        %v3352 = vpack.c.b16 %v3337, %v3336
        %v3353 = vpack.c.b16 %v3339, %v3338
        %v3354 = vpack.c.b16 %v3341, %v3340
        %v3355 = vpack.c.b16 %v3343, %v3342
        %v3356 = vpack.c.b16 %v3345, %v3344
        %v3357 = vpack.c.b16 %v3347, %v3346
        %v3358 = vpack.c.b16 %v3349, %v3348
        %v3359 = vpack.c.b16 %v3351, %v3350
        %3360 = vrot.lane.b32.xlu0 %v3352, 40
        %v3361 = vpop.permute.xlu0 %3360
        %3362 = vrot.lane.b32.xlu0 %v3353, 40
        %v3363 = vpop.permute.xlu0 %3362
        %3364 = vrot.lane.b32.xlu0 %v3354, 40
        %v3365 = vpop.permute.xlu0 %3364
        %3366 = vrot.lane.b32.xlu0 %v3355, 40
        %v3367 = vpop.permute.xlu0 %3366
        %3368 = vrot.lane.b32.xlu0 %v3356, 40
        %v3369 = vpop.permute.xlu0 %3368
        %3370 = vrot.lane.b32.xlu0 %v3357, 40
        %v3371 = vpop.permute.xlu0 %3370
        %3372 = vrot.lane.b32.xlu0 %v3358, 40
        %v3373 = vpop.permute.xlu0 %3372
        %3374 = vrot.lane.b32.xlu0 %v3359, 40
        %v3375 = vpop.permute.xlu0 %3374
        %v3376 = vunpack.c.l.b16 %v2405
        %v3377 = vunpack.c.l.b16 %v2415
        %v3378 = vunpack.c.l.b16 %v2429
        %v3379 = vunpack.c.l.b16 %v2439
        %v3380 = vunpack.c.l.b16 %v2453
        %v3381 = vunpack.c.l.b16 %v2463
        %v3382 = vunpack.c.l.b16 %v2477
        %v3383 = vunpack.c.l.b16 %v2487
        %v3384 = vunpack.c.l.b16 %v2501
        %v3385 = vunpack.c.l.b16 %v2511
        %v3386 = vunpack.c.l.b16 %v2525
        %v3387 = vunpack.c.l.b16 %v2535
        %v3388 = vunpack.c.l.b16 %v2549
        %v3389 = vunpack.c.l.b16 %v2559
        %v3390 = vunpack.c.l.b16 %v2573
        %v3391 = vunpack.c.l.b16 %v2583
        %v3392 = vpack.c.b16 %v3377, %v3376
        %v3393 = vpack.c.b16 %v3379, %v3378
        %v3394 = vpack.c.b16 %v3381, %v3380
        %v3395 = vpack.c.b16 %v3383, %v3382
        %v3396 = vpack.c.b16 %v3385, %v3384
        %v3397 = vpack.c.b16 %v3387, %v3386
        %v3398 = vpack.c.b16 %v3389, %v3388
        %v3399 = vpack.c.b16 %v3391, %v3390
        %3400 = vrot.lane.b32.xlu0 %v3392, 48
        %v3401 = vpop.permute.xlu0 %3400
        %3402 = vrot.lane.b32.xlu0 %v3393, 48
        %v3403 = vpop.permute.xlu0 %3402
        %3404 = vrot.lane.b32.xlu0 %v3394, 48
        %v3405 = vpop.permute.xlu0 %3404
        %3406 = vrot.lane.b32.xlu0 %v3395, 48
        %v3407 = vpop.permute.xlu0 %3406
        %3408 = vrot.lane.b32.xlu0 %v3396, 48
        %v3409 = vpop.permute.xlu0 %3408
        %3410 = vrot.lane.b32.xlu0 %v3397, 48
        %v3411 = vpop.permute.xlu0 %3410
        %3412 = vrot.lane.b32.xlu0 %v3398, 48
        %v3413 = vpop.permute.xlu0 %3412
        %3414 = vrot.lane.b32.xlu0 %v3399, 48
        %v3415 = vpop.permute.xlu0 %3414
        %vm3416 = vcmask 64512
        %v3419 = vsel %vm3416, %v2784, %v2825
        %v3422 = vsel %vm3416, %v2785, %v2827
        %v3425 = vsel %vm3416, %v2786, %v2829
        %v3428 = vsel %vm3416, %v2787, %v2831
        %v3431 = vsel %vm3416, %v2788, %v2833
        %v3434 = vsel %vm3416, %v2789, %v2835
        %v3437 = vsel %vm3416, %v2790, %v2837
        %v3440 = vsel %vm3416, %v2791, %v2839
        %vm3441 = vcmask 195584
        %v3443 = vsel %vm3441, %v3419, %v2865
        %v3445 = vsel %vm3441, %v3422, %v2867
        %v3447 = vsel %vm3441, %v3425, %v2869
        %v3449 = vsel %vm3441, %v3428, %v2871
        %v3451 = vsel %vm3441, %v3431, %v2873
        %v3453 = vsel %vm3441, %v3434, %v2875
        %v3455 = vsel %vm3441, %v3437, %v2877
        %v3457 = vsel %vm3441, %v3440, %v2879
        %vm3458 = vcmask 261120
        %v3460 = vsel %vm3458, %v3443, %v2905
        %v3462 = vsel %vm3458, %v3445, %v2907
        %v3464 = vsel %vm3458, %v3447, %v2909
        %v3466 = vsel %vm3458, %v3449, %v2911
        %v3468 = vsel %vm3458, %v3451, %v2913
        %v3470 = vsel %vm3458, %v3453, %v2915
        %v3472 = vsel %vm3458, %v3455, %v2917
        %v3474 = vsel %vm3458, %v3457, %v2919
        %vm3475 = vcmask 392192
        %v3477 = vsel %vm3475, %v3460, %v2945
        %v3479 = vsel %vm3475, %v3462, %v2947
        %v3481 = vsel %vm3475, %v3464, %v2949
        %v3483 = vsel %vm3475, %v3466, %v2951
        %v3485 = vsel %vm3475, %v3468, %v2953
        %v3487 = vsel %vm3475, %v3470, %v2955
        %v3489 = vsel %vm3475, %v3472, %v2957
        %v3491 = vsel %vm3475, %v3474, %v2959
        %vm3492 = vcmask 457728
        %v3494 = vsel %vm3492, %v3477, %v2985
        %v3496 = vsel %vm3492, %v3479, %v2987
        %v3498 = vsel %vm3492, %v3481, %v2989
        %v3500 = vsel %vm3492, %v3483, %v2991
        %v3502 = vsel %vm3492, %v3485, %v2993
        %v3504 = vsel %vm3492, %v3487, %v2995
        %v3506 = vsel %vm3492, %v3489, %v2997
        %v3508 = vsel %vm3492, %v3491, %v2999
        %vm3509 = vcmask 588800
        %v3511 = vsel %vm3509, %v3494, %v3033
        %v3513 = vsel %vm3509, %v3496, %v3035
        %v3515 = vsel %vm3509, %v3498, %v3037
        %v3517 = vsel %vm3509, %v3500, %v3039
        %v3519 = vsel %vm3509, %v3502, %v3041
        %v3521 = vsel %vm3509, %v3504, %v3043
        %v3523 = vsel %vm3509, %v3506, %v3045
        %v3525 = vsel %vm3509, %v3508, %v3047
        %vm3526 = vcmask 654336
        %v3528 = vsel %vm3526, %v3511, %v3081
        %v3530 = vsel %vm3526, %v3513, %v3083
        %v3532 = vsel %vm3526, %v3515, %v3085
        %v3534 = vsel %vm3526, %v3517, %v3087
        %v3536 = vsel %vm3526, %v3519, %v3089
        %v3538 = vsel %vm3526, %v3521, %v3091
        %v3540 = vsel %vm3526, %v3523, %v3093
        %v3542 = vsel %vm3526, %v3525, %v3095
        %vm3543 = vcmask 785408
        %v3545 = vsel %vm3543, %v3528, %v3121
        %v3547 = vsel %vm3543, %v3530, %v3123
        %v3549 = vsel %vm3543, %v3532, %v3125
        %v3551 = vsel %vm3543, %v3534, %v3127
        %v3553 = vsel %vm3543, %v3536, %v3129
        %v3555 = vsel %vm3543, %v3538, %v3131
        %v3557 = vsel %vm3543, %v3540, %v3133
        %v3559 = vsel %vm3543, %v3542, %v3135
        %vm3560 = vcmask 850944
        %v3562 = vsel %vm3560, %v3545, %v3161
        %v3564 = vsel %vm3560, %v3547, %v3163
        %v3566 = vsel %vm3560, %v3549, %v3165
        %v3568 = vsel %vm3560, %v3551, %v3167
        %v3570 = vsel %vm3560, %v3553, %v3169
        %v3572 = vsel %vm3560, %v3555, %v3171
        %v3574 = vsel %vm3560, %v3557, %v3173
        %v3576 = vsel %vm3560, %v3559, %v3175
        %vm3577 = vcmask 982016
        %v3579 = vsel %vm3577, %v3562, %v3201
        %v3582 = vsel %vm3577, %v3564, %v3203
        %v3585 = vsel %vm3577, %v3566, %v3205
        %v3588 = vsel %vm3577, %v3568, %v3207
        %v3591 = vsel %vm3577, %v3570, %v3209
        %v3594 = vsel %vm3577, %v3572, %v3211
        %v3597 = vsel %vm3577, %v3574, %v3213
        %v3600 = vsel %vm3577, %v3576, %v3215
        %vm3602 = vcmask 130048
        %v3605 = vsel %vm3602, %v3232, %v3273
        %v3608 = vsel %vm3602, %v3233, %v3275
        %v3611 = vsel %vm3602, %v3234, %v3277
        %v3614 = vsel %vm3602, %v3235, %v3279
        %v3617 = vsel %vm3602, %v3236, %v3281
        %v3620 = vsel %vm3602, %v3237, %v3283
        %v3623 = vsel %vm3602, %v3238, %v3285
        %v3626 = vsel %vm3602, %v3239, %v3287
        %v3628 = vsel %vm3441, %v3605, %v3321
        %v3630 = vsel %vm3441, %v3608, %v3323
        %v3632 = vsel %vm3441, %v3611, %v3325
        %v3634 = vsel %vm3441, %v3614, %v3327
        %v3636 = vsel %vm3441, %v3617, %v3329
        %v3638 = vsel %vm3441, %v3620, %v3331
        %v3640 = vsel %vm3441, %v3623, %v3333
        %v3642 = vsel %vm3441, %v3626, %v3335
        %vm3643 = vcmask 326656
        %v3645 = vsel %vm3643, %v3628, %v3361
        %v3647 = vsel %vm3643, %v3630, %v3363
        %v3649 = vsel %vm3643, %v3632, %v3365
        %v3651 = vsel %vm3643, %v3634, %v3367
        %v3653 = vsel %vm3643, %v3636, %v3369
        %v3655 = vsel %vm3643, %v3638, %v3371
        %v3657 = vsel %vm3643, %v3640, %v3373
        %v3659 = vsel %vm3643, %v3642, %v3375
        %v3661 = vsel %vm3475, %v3645, %v3401
        %v3663 = vsel %vm3475, %v3647, %v3403
        %v3665 = vsel %vm3475, %v3649, %v3405
        %v3667 = vsel %vm3475, %v3651, %v3407
        %v3669 = vsel %vm3475, %v3653, %v3409
        %v3671 = vsel %vm3475, %v3655, %v3411
        %v3673 = vsel %vm3475, %v3657, %v3413
        %v3675 = vsel %vm3475, %v3659, %v3415
        %v3676 = vunpack.c.l.b16 %v2619
        %v3677 = vunpack.c.l.b16 %v2622
        %v3678 = vunpack.c.l.b16 %v2626
        %v3679 = vunpack.c.l.b16 %v2629
        %v3680 = vunpack.c.l.b16 %v2633
        %v3681 = vunpack.c.l.b16 %v2636
        %v3682 = vunpack.c.l.b16 %v2640
        %v3683 = vunpack.c.l.b16 %v2643
        %v3684 = vunpack.c.l.b16 %v2647
        %v3685 = vunpack.c.l.b16 %v2650
        %v3686 = vunpack.c.l.b16 %v2654
        %v3687 = vunpack.c.l.b16 %v2657
        %v3688 = vunpack.c.l.b16 %v2661
        %v3689 = vunpack.c.l.b16 %v2664
        %v3690 = vunpack.c.l.b16 %v2668
        %v3691 = vunpack.c.l.b16 %v2671
        %v3692 = vpack.c.b16 %v3677, %v3676
        %v3693 = vpack.c.b16 %v3679, %v3678
        %v3694 = vpack.c.b16 %v3681, %v3680
        %v3695 = vpack.c.b16 %v3683, %v3682
        %v3696 = vpack.c.b16 %v3685, %v3684
        %v3697 = vpack.c.b16 %v3687, %v3686
        %v3698 = vpack.c.b16 %v3689, %v3688
        %v3699 = vpack.c.b16 %v3691, %v3690
        %v3700 = vunpack.c.l.b16 %v2707
        %v3701 = vunpack.c.l.b16 %v2710
        %v3702 = vunpack.c.l.b16 %v2714
        %v3703 = vunpack.c.l.b16 %v2717
        %v3704 = vunpack.c.l.b16 %v2721
        %v3705 = vunpack.c.l.b16 %v2724
        %v3706 = vunpack.c.l.b16 %v2728
        %v3707 = vunpack.c.l.b16 %v2731
        %v3708 = vunpack.c.l.b16 %v2735
        %v3709 = vunpack.c.l.b16 %v2738
        %v3710 = vunpack.c.l.b16 %v2742
        %v3711 = vunpack.c.l.b16 %v2745
        %v3712 = vunpack.c.l.b16 %v2749
        %v3713 = vunpack.c.l.b16 %v2752
        %v3714 = vunpack.c.l.b16 %v2756
        %v3715 = vunpack.c.l.b16 %v2759
        %v3716 = vpack.c.b16 %v3701, %v3700
        %v3717 = vpack.c.b16 %v3703, %v3702
        %v3718 = vpack.c.b16 %v3705, %v3704
        %v3719 = vpack.c.b16 %v3707, %v3706
        %v3720 = vpack.c.b16 %v3709, %v3708
        %v3721 = vpack.c.b16 %v3711, %v3710
        %v3722 = vpack.c.b16 %v3713, %v3712
        %v3723 = vpack.c.b16 %v3715, %v3714
        %3724 = vrot.lane.b32.xlu0 %v3716, 8
        %v3725 = vpop.permute.xlu0 %3724
        %3726 = vrot.lane.b32.xlu0 %v3717, 8
        %v3727 = vpop.permute.xlu0 %3726
        %3728 = vrot.lane.b32.xlu0 %v3718, 8
        %v3729 = vpop.permute.xlu0 %3728
        %3730 = vrot.lane.b32.xlu0 %v3719, 8
        %v3731 = vpop.permute.xlu0 %3730
        %3732 = vrot.lane.b32.xlu0 %v3720, 8
        %v3733 = vpop.permute.xlu0 %3732
        %3734 = vrot.lane.b32.xlu0 %v3721, 8
        %v3735 = vpop.permute.xlu0 %3734
        %3736 = vrot.lane.b32.xlu0 %v3722, 8
        %v3737 = vpop.permute.xlu0 %3736
        %3738 = vrot.lane.b32.xlu0 %v3723, 8
        %v3739 = vpop.permute.xlu0 %3738
        %v3742 = vsel %vm3416, %v3692, %v3725
        %v3745 = vsel %vm3416, %v3693, %v3727
        %v3748 = vsel %vm3416, %v3694, %v3729
        %v3751 = vsel %vm3416, %v3695, %v3731
        %v3754 = vsel %vm3416, %v3696, %v3733
        %v3757 = vsel %vm3416, %v3697, %v3735
        %v3760 = vsel %vm3416, %v3698, %v3737
        %v3763 = vsel %vm3416, %v3699, %v3739
        %3772 = vrot.lane.b32.xlu0 %v3742, 64
        %v3773 = vpop.permute.xlu0 %3772
        %3774 = vrot.lane.b32.xlu0 %v3745, 64
        %v3775 = vpop.permute.xlu0 %3774
        %3776 = vrot.lane.b32.xlu0 %v3748, 64
        %v3777 = vpop.permute.xlu0 %3776
        %3778 = vrot.lane.b32.xlu0 %v3751, 64
        %v3779 = vpop.permute.xlu0 %3778
        %3780 = vrot.lane.b32.xlu0 %v3754, 64
        %v3781 = vpop.permute.xlu0 %3780
        %3782 = vrot.lane.b32.xlu0 %v3757, 64
        %v3783 = vpop.permute.xlu0 %3782
        %3784 = vrot.lane.b32.xlu0 %v3760, 64
        %v3785 = vpop.permute.xlu0 %3784
        %3786 = vrot.lane.b32.xlu0 %v3763, 64
        %v3787 = vpop.permute.xlu0 %3786
        %vm3788 = vcmask 523264
        %v3790 = vsel %vm3788, %v3661, %v3773
        %v3792 = vsel %vm3788, %v3663, %v3775
        %v3794 = vsel %vm3788, %v3665, %v3777
        %v3796 = vsel %vm3788, %v3667, %v3779
        %v3798 = vsel %vm3788, %v3669, %v3781
        %v3800 = vsel %vm3788, %v3671, %v3783
        %v3802 = vsel %vm3788, %v3673, %v3785
        %v3804 = vsel %vm3788, %v3675, %v3787
        %v3805 = vld [vmem:[%s2] sm:$0xf]
        %v3806 = vld [vmem:[%s2 + $0x4] sm:$0xf]
        %v3807 = vld [vmem:[%s2 + $0x8] sm:$0xf]
        %v3808 = vld [vmem:[%s2 + $0xc] sm:$0xf]
        %v3809 = vld [vmem:[%s2 + $0x10] sm:$0xf]
        %v3810 = vld [vmem:[%s2 + $0x14] sm:$0xf]
        %v3811 = vld [vmem:[%s2 + $0x18] sm:$0xf]
        %v3812 = vld [vmem:[%s2 + $0x1c] sm:$0xf]
        %v3813 = vld [vmem:[%s2 + $0x20] sm:$0xf]
        %v3814 = vld [vmem:[%s2 + $0x24] sm:$0xf]
        %v3815 = vld [vmem:[%s2 + $0x28] sm:$0xf]
        %v3816 = vld [vmem:[%s2 + $0x2c] sm:$0xf]
        %v3817 = vld [vmem:[%s2 + $0x30] sm:$0xf]
        %v3818 = vld [vmem:[%s2 + $0x34] sm:$0xf]
        %v3819 = vld [vmem:[%s2 + $0x38] sm:$0xf]
        %v3820 = vld [vmem:[%s2 + $0x3c] sm:$0xf]
        %v3821 = vld [vmem:[%s2 + $0x40] sm:$0xf]
        %v3822 = vld [vmem:[%s2 + $0x44] sm:$0xf]
        %v3823 = vld [vmem:[%s2 + $0x48] sm:$0xf]
        %v3824 = vld [vmem:[%s2 + $0x4c] sm:$0xf]
        %v3825 = vld [vmem:[%s2 + $0x50] sm:$0xf]
        %v3826 = vld [vmem:[%s2 + $0x54] sm:$0xf]
        %v3827 = vld [vmem:[%s2 + $0x58] sm:$0xf]
        %v3828 = vld [vmem:[%s2 + $0x5c] sm:$0xf]
        %v3829 = vld [vmem:[%s2 + $0x60] sm:$0xf]
        %v3830 = vld [vmem:[%s2 + $0x64] sm:$0xf]
        %v3831 = vld [vmem:[%s2 + $0x68] sm:$0xf]
        %v3832 = vld [vmem:[%s3] sm:$0x1]
        %v3834 = vperm.slane %v3832, 0
        %v3863 = vunpack.c.l.b16 %v3805
        %v3864 = vunpack.c.l.b16 %v3806
        %v3865 = vunpack.c.l.b16 %v3807
        %v3866 = vunpack.c.l.b16 %v3808
        %v3867 = vunpack.c.l.b16 %v3809
        %v3868 = vunpack.c.l.b16 %v3810
        %v3869 = vunpack.c.l.b16 %v3811
        %v3870 = vunpack.c.l.b16 %v3812
        %v3871 = vunpack.c.l.b16 %v3813
        %v3872 = vunpack.c.l.b16 %v3814
        %v3873 = vunpack.c.l.b16 %v3815
        %v3874 = vunpack.c.l.b16 %v3816
        %v3875 = vunpack.c.l.b16 %v3817
        %v3876 = vunpack.c.l.b16 %v3818
        %v3877 = vunpack.c.l.b16 %v3819
        %v3878 = vunpack.c.l.b16 %v3820
        %v3879 = vunpack.c.l.b16 %v3821
        %v3880 = vunpack.c.l.b16 %v3822
        %v3881 = vunpack.c.l.b16 %v3823
        %v3882 = vunpack.c.l.b16 %v3824
        %v3883 = vunpack.c.l.b16 %v3825
        %v3884 = vunpack.c.l.b16 %v3826
        %v3885 = vunpack.c.l.b16 %v3827
        %v3886 = vunpack.c.l.b16 %v3828
        %v3887 = vunpack.c.l.b16 %v3829
        %v3888 = vunpack.c.l.b16 %v3830
        %v3889 = vunpack.c.l.b16 %v3831
        %v3890 = vpack.c.b16 %v3864, %v3863
        %v3891 = vpack.c.b16 %v3866, %v3865
        %v3892 = vpack.c.b16 %v3868, %v3867
        %v3893 = vpack.c.b16 %v3870, %v3869
        %v3894 = vpack.c.b16 %v3872, %v3871
        %v3895 = vpack.c.b16 %v3874, %v3873
        %v3896 = vpack.c.b16 %v3876, %v3875
        %v3897 = vpack.c.b16 %v3878, %v3877
        %v3898 = vpack.c.b16 %v3880, %v3879
        %v3899 = vpack.c.b16 %v3882, %v3881
        %v3900 = vpack.c.b16 %v3884, %v3883
        %v3901 = vpack.c.b16 %v3886, %v3885
        %v3902 = vpack.c.b16 %v3888, %v3887
        %v3903 = vpack.c.b16 %v3889, %v3889
        %vm3917 = vcmask 719872
        %v3918 = vsel %vm3917, %v3790, 0
        %v3920 = vsel %vm3917, %v3792, 0
        %v3922 = vsel %vm3917, %v3794, 0
        %v3924 = vsel %vm3917, %v3796, 0
        %v3926 = vsel %vm3917, %v3798, 0
        %v3928 = vsel %vm3917, %v3800, 0
        %v3930 = vsel %vm3917, %v3802, 0
        %v3932 = vsel %vm3917, %v3804, 0
        %vm3934 = vcmask 1043456
        %v3936 = vsel %vm3934, %v3903, 0
        %3938 = vmatpush.bf16.msra.mxu0 %v3897
        %3939 = vmatpush.bf16.msra.mxu0 %v3896
        %3940 = vmatpush.bf16.msra.mxu0 %v3895
        %3941 = vmatpush.bf16.msra.mxu0 %v3894
        %3942 = vmatpush.bf16.msra.mxu0 %v3893
        %3943 = vmatpush.bf16.msra.mxu0 %v3892
        %3944 = vmatpush.bf16.msra.mxu0 %v3891
        %3945 = vmatpush.bf16.msra.mxu0 %v3890
        %3946 = vmatmul.bf16.gmra.mxu0 %v3579
        %v3947 = vpop.f32.mrf.mxu0
        %v3948 = vadd.f32 %v3834, %v3947
        %v3949 = vpop.f32.mrf.mxu0
        %v3950 = vadd.f32 %v3834, %v3949
        %3951 = vmatmul.bf16.gmra.mxu0 %v3582
        %v3952 = vpop.f32.mrf.mxu0
        %v3953 = vadd.f32 %v3834, %v3952
        %v3954 = vpop.f32.mrf.mxu0
        %v3955 = vadd.f32 %v3834, %v3954
        %3956 = vmatmul.bf16.gmra.mxu0 %v3585
        %v3957 = vpop.f32.mrf.mxu0
        %v3958 = vadd.f32 %v3834, %v3957
        %v3959 = vpop.f32.mrf.mxu0
        %v3960 = vadd.f32 %v3834, %v3959
        %3961 = vmatmul.bf16.gmra.mxu0 %v3588
        %v3962 = vpop.f32.mrf.mxu0
        %v3963 = vadd.f32 %v3834, %v3962
        %v3964 = vpop.f32.mrf.mxu0
        %v3965 = vadd.f32 %v3834, %v3964
        %3966 = vmatmul.bf16.gmra.mxu0 %v3591
        %v3967 = vpop.f32.mrf.mxu0
        %v3968 = vadd.f32 %v3834, %v3967
        %v3969 = vpop.f32.mrf.mxu0
        %v3970 = vadd.f32 %v3834, %v3969
        %3971 = vmatmul.bf16.gmra.mxu0 %v3594
        %v3972 = vpop.f32.mrf.mxu0
        %v3973 = vadd.f32 %v3834, %v3972
        %v3974 = vpop.f32.mrf.mxu0
        %v3975 = vadd.f32 %v3834, %v3974
        %3976 = vmatmul.bf16.gmra.mxu0 %v3597
        %v3977 = vpop.f32.mrf.mxu0
        %v3978 = vadd.f32 %v3834, %v3977
        %v3979 = vpop.f32.mrf.mxu0
        %v3980 = vadd.f32 %v3834, %v3979
        %3981 = vmatmul.bf16.gmra.mxu0 %v3600
        %v3982 = vpop.f32.mrf.mxu0
        %v3983 = vadd.f32 %v3834, %v3982
        %v3984 = vpop.f32.mrf.mxu0
        %v3985 = vadd.f32 %v3834, %v3984
        %3986 = vdwg.mxu0
        %3987 = vmatpush.bf16.msra.mxu0 0
        %3988 = vmatpush.bf16.msra.mxu0 0
        %3989 = vmatpush.bf16.msra.mxu0 %v3936
        %3990 = vmatpush.bf16.msra.mxu0 %v3902
        %3991 = vmatpush.bf16.msra.mxu0 %v3901
        %3992 = vmatpush.bf16.msra.mxu0 %v3900
        %3993 = vmatpush.bf16.msra.mxu0 %v3899
        %3994 = vmatpush.bf16.msra.mxu0 %v3898
        %3995 = vmatmul.bf16.gmra.mxu0 %v3918
        %v3996 = vpop.f32.mrf.mxu0
        %v3997 = vadd.f32 %v3948, %v3996
        %v3998 = vpop.f32.mrf.mxu0
        %v3999 = vadd.f32 %v3950, %v3998
        %4000 = vmatmul.bf16.gmra.mxu0 %v3920
        %v4001 = vpop.f32.mrf.mxu0
        %v4002 = vadd.f32 %v3953, %v4001
        %v4003 = vpop.f32.mrf.mxu0
        %v4004 = vadd.f32 %v3955, %v4003
        %4005 = vmatmul.bf16.gmra.mxu0 %v3922
        %v4006 = vpop.f32.mrf.mxu0
        %v4007 = vadd.f32 %v3958, %v4006
        %v4008 = vpop.f32.mrf.mxu0
        %v4009 = vadd.f32 %v3960, %v4008
        %4010 = vmatmul.bf16.gmra.mxu0 %v3924
        %v4011 = vpop.f32.mrf.mxu0
        %v4012 = vadd.f32 %v3963, %v4011
        %v4013 = vpop.f32.mrf.mxu0
        %v4014 = vadd.f32 %v3965, %v4013
        %4015 = vmatmul.bf16.gmra.mxu0 %v3926
        %v4016 = vpop.f32.mrf.mxu0
        %v4017 = vadd.f32 %v3968, %v4016
        %v4018 = vpop.f32.mrf.mxu0
        %v4019 = vadd.f32 %v3970, %v4018
        %4020 = vmatmul.bf16.gmra.mxu0 %v3928
        %v4021 = vpop.f32.mrf.mxu0
        %v4022 = vadd.f32 %v3973, %v4021
        %v4023 = vpop.f32.mrf.mxu0
        %v4024 = vadd.f32 %v3975, %v4023
        %4025 = vmatmul.bf16.gmra.mxu0 %v3930
        %v4026 = vpop.f32.mrf.mxu0
        %v4027 = vadd.f32 %v3978, %v4026
        %v4028 = vpop.f32.mrf.mxu0
        %v4029 = vadd.f32 %v3980, %v4028
        %4030 = vmatmul.bf16.gmra.mxu0 %v3932
        %v4031 = vpop.f32.mrf.mxu0
        %v4032 = vadd.f32 %v3983, %v4031
        %v4033 = vpop.f32.mrf.mxu0
        %v4034 = vadd.f32 %v3985, %v4033
        %4035 = vdwg.mxu0
        %v4036 = vmax.f32 %v3997, 0.0
        %v4037 = vmax.f32 %v3999, 0.0
        %v4038 = vmax.f32 %v4002, 0.0
        %v4039 = vmax.f32 %v4004, 0.0
        %v4040 = vmax.f32 %v4007, 0.0
        %v4041 = vmax.f32 %v4009, 0.0
        %v4042 = vmax.f32 %v4012, 0.0
        %v4043 = vmax.f32 %v4014, 0.0
        %v4044 = vmax.f32 %v4017, 0.0
        %v4045 = vmax.f32 %v4019, 0.0
        %v4046 = vmax.f32 %v4022, 0.0
        %v4047 = vmax.f32 %v4024, 0.0
        %v4048 = vmax.f32 %v4027, 0.0
        %v4049 = vmax.f32 %v4029, 0.0
        %v4050 = vmax.f32 %v4032, 0.0
        %v4051 = vmax.f32 %v4034, 0.0
        %v4052 = vpack.c.bf16 %v4036, %v4036
        %v4053 = vpack.c.bf16 %v4037, %v4037
        %v4054 = vpack.c.bf16 %v4038, %v4038
        %v4055 = vpack.c.bf16 %v4039, %v4039
        %v4056 = vpack.c.bf16 %v4040, %v4040
        %v4057 = vpack.c.bf16 %v4041, %v4041
        %v4058 = vpack.c.bf16 %v4042, %v4042
        %v4059 = vpack.c.bf16 %v4043, %v4043
        %v4060 = vpack.c.bf16 %v4044, %v4044
        %v4061 = vpack.c.bf16 %v4045, %v4045
        %v4062 = vpack.c.bf16 %v4046, %v4046
        %v4063 = vpack.c.bf16 %v4047, %v4047
        %v4064 = vpack.c.bf16 %v4048, %v4048
        %v4065 = vpack.c.bf16 %v4049, %v4049
        %v4066 = vpack.c.bf16 %v4050, %v4050
        %v4067 = vpack.c.bf16 %v4051, %v4051
        %4068 = vst.msk [vmem:[%s219] sm:$0xf] %vm584, %v4052
        %4069 = vst.msk [vmem:[%s219 + $0x4] sm:$0xf] %vm584, %v4053
        %4070 = vst.msk [vmem:[%s219 + $0x8] sm:$0xf] %vm584, %v4054
        %4071 = vst.msk [vmem:[%s219 + $0xc] sm:$0xf] %vm584, %v4055
        %4072 = vst.msk [vmem:[%s219 + $0x10] sm:$0xf] %vm584, %v4056
        %4073 = vst.msk [vmem:[%s219 + $0x14] sm:$0xf] %vm584, %v4057
        %4074 = vst.msk [vmem:[%s219 + $0x18] sm:$0xf] %vm584, %v4058
        %4075 = vst.msk [vmem:[%s219 + $0x1c] sm:$0xf] %vm584, %v4059
        %4076 = vst.msk [vmem:[%s219 + $0x20] sm:$0xf] %vm584, %v4060
        %4077 = vst.msk [vmem:[%s219 + $0x24] sm:$0xf] %vm584, %v4061
        %4078 = vst.msk [vmem:[%s219 + $0x28] sm:$0xf] %vm584, %v4062
        %4079 = vst.msk [vmem:[%s219 + $0x2c] sm:$0xf] %vm584, %v4063
        %4080 = vst.msk [vmem:[%s219 + $0x30] sm:$0xf] %vm584, %v4064
        %4081 = vst.msk [vmem:[%s219 + $0x34] sm:$0xf] %vm584, %v4065
        %4082 = vst.msk [vmem:[%s219 + $0x38] sm:$0xf] %vm584, %v4066
        %4083 = vst.msk [vmem:[%s219 + $0x3c] sm:$0xf] %vm584, %v4067
        %s4084 = sand.u32 %s134, 1
        %s4085 = scalar_lea.sflag [#allocation5], %s4084
        %s4086 = sand.u32 %s134, 1
        %s4087 = smul.addr %s4086, 64
        %s4088 = scalar_lea.vmem [#allocation4], %s4087
        // Predicated region
        $region53: #{tpu_custom_call.1} parent=35 // pred_check
          %p4089 = pneg %p144
        $region54: #{tpu_custom_call.1} parent=35 // pred_check_branch
          %4091 = sbr.rel (%p4089) target = $region56
        $region55: #{tpu_custom_call.1} parent=35 // pred_region
          %s4092 = smul.u32 8, %s23
          %4094 = vsyncadd %s4085, 0
          %s4095 = smul.addr %s4092, 2
          %s4096 = smul.addr %s22, 32
          %s4097 = sadd.s32 %s4095, %s4096
          %s4098 = smul.addr %s4097, 4
          %s4099 = scalar_lea.hbm %s4, %s4098
          %s4100 = sshll.u32 %s4088, 4
          %s4101 = int_to_ptr.vmem [resolvable:$true] %s4100
          %s4102 = sshll.u32 %s4099, 4
          %s4103 = int_to_ptr.hbm [resolvable:$true] %s4102
          %4108 = dma.vmem_to_hbm [thread:$0]  %s4101, 1024, %s4103, %s4085, 64, 64, 4
        $region56: #{tpu_custom_call.1} parent=35 // pred_fallthru
          _
      $region36: #{tpu_custom_call.1} parent=5 // pred_fallthru
        _
      %p4109 = scmp.le.s32.totalorder 2, %s13
      // Predicated region
      $region57: #{tpu_custom_call.1} parent=5 // pred_check
        %p4110 = pneg %p4109
      $region58: #{tpu_custom_call.1} parent=5 // pred_check_branch
        %4112 = sbr.rel (%p4110) target = $region60
      $region59: #{tpu_custom_call.1} parent=5 // pred_region
        %s4113 = ssub.s32 %s13, 2
        // Predicated region
        $region61: #{tpu_custom_call.1} parent=59 // pred_check
          %p4114 = pneg %p150
        $region62: #{tpu_custom_call.1} parent=59 // pred_check_branch
          %4116 = sbr.rel (%p4114) target = $region64
        $region63: #{tpu_custom_call.1} parent=59 // pred_region
          %s4117 = sand.u32 %s135, 1
          %s4118 = scalar_lea.sflag [#allocation5], %s4117
          %s4119 = sand.u32 %s135, 1
          %s4120 = smul.addr %s4119, 64
          %s4121 = scalar_lea.vmem [#allocation4], %s4120
          %4123 = dma.done %s4118, 1024
        $region64: #{tpu_custom_call.1} parent=59 // pred_fallthru
          _
      $region60: #{tpu_custom_call.1} parent=5 // pred_fallthru
        _
    $region6: #{tpu_custom_call.1} parent=1 // loop_footer
      %s17 = sadd.s32 1, %s13
    $region7: #{tpu_custom_call.1} parent=1 // loop_footer_branch
      %12 = sbr.rel target = $region3
    $region8: #{tpu_custom_call.1} parent=1 // loop_exit
      _
    %4124 = vsyncpa [#allocation5], 1
    %s4125 = scalar_lea.sflag [#allocation5], 1
    %4126 = vsyncpa %s4125, 1

</llo_original>
